<compile_context>
chip_gen: v7x
topology: tpu7x:2x2x1
jax: 0.10.0
libtpu: 0.0.40
codegen_flags: <defaults>
</compile_context>

<pallas_src>
import numpy as np
import jax
import jax.numpy as jnp
from jax.experimental import pallas as pl
from jax.experimental.pallas import tpu as pltpu

NEG_SLOPE = 0.01   # nn.LeakyReLU default
LANE = 128


def _leaky(x):
    return jnp.where(x > 0, x, NEG_SLOPE * x)


def _round_up(x, m):
    return (x + m - 1) // m * m


def _a_tile_bf16(a_ref):
    # int8 {0,1} adjacency tile -> bf16 for the MXU fast path (exact values).
    return a_ref[...].astype(jnp.float32).astype(jnp.bfloat16)


# ---------------------------------------------------------------------------
# Stage 1: encoders + input layer + (dis * z @ Wg1), tiled over node rows.
# ---------------------------------------------------------------------------
def _encoder_kernel(des_ref, tweet_ref, nc_ref, dis_ref,
                    wd_ref, bd_ref, wt_ref, bt_ref, wnc_ref, bnc_ref,
                    wi_d_ref, wi_t_ref, wi_nc_ref, bi_ref, wg1_ref,
                    y1_ref):
    d = _leaky(jnp.dot(des_ref[...], wd_ref[...],
                       preferred_element_type=jnp.float32) + bd_ref[...])
    t = _leaky(jnp.dot(tweet_ref[...], wt_ref[...],
                       preferred_element_type=jnp.float32) + bt_ref[...])
    nc = _leaky(jnp.dot(nc_ref[...], wnc_ref[...],
                        preferred_element_type=jnp.float32) + bnc_ref[...])
    # concat(d, t, n, c) @ W_in == d@Wi[:q] + t@Wi[q:2q] + [n|c]@Wi[2q:]
    # (split W_in instead of a sub-128-lane concat; dropout is identity).
    z = _leaky(jnp.dot(d, wi_d_ref[...], preferred_element_type=jnp.float32)
               + jnp.dot(t, wi_t_ref[...], preferred_element_type=jnp.float32)
               + jnp.dot(nc, wi_nc_ref[...], preferred_element_type=jnp.float32)
               + bi_ref[...])
    # Fold GCNConv1's weight and the column-side d^-1/2 here so the O(N^2)
    # stages only stream the int8 adjacency and bf16 Y.
    y1_ref[...] = (dis_ref[...] *
                   jnp.dot(z, wg1_ref[...], preferred_element_type=jnp.float32)
                   ).astype(y1_ref.dtype)


# ---------------------------------------------------------------------------
# Stage 2: H1 = A_hat @ Y1 + bg1 ; Y2' = dis * (H1 @ Wg2)
#          block-sparse tiled reduction over nonzero adjacency column blocks.
# ---------------------------------------------------------------------------
def _gcn1_kernel(cid_ref, nnz_ref, a_ref, y1_ref, dis_ref, bg1_ref, wg2_ref,
                 y2_ref, acc_ref):
    i = pl.program_id(0)
    k = pl.program_id(1)

    @pl.when(k == 0)
    def _():
        acc_ref[...] = jnp.zeros_like(acc_ref)

    @pl.when(k < nnz_ref[i])                     # skip padded / all-zero blocks
    def _():
        acc_ref[...] += jnp.dot(_a_tile_bf16(a_ref), y1_ref[...],
                                preferred_element_type=jnp.float32)

    @pl.when(k == pl.num_programs(1) - 1)
    def _():
        dis = dis_ref[...]                       # (tm, 1) row-side d^-1/2
        h1 = dis * acc_ref[...] + bg1_ref[...]   # GCNConv1 (no activation)
        y2_ref[...] = (dis * jnp.dot(h1, wg2_ref[...],   # fold Wg2 + next dis
                                     preferred_element_type=jnp.float32)
                       ).astype(y2_ref.dtype)


# ---------------------------------------------------------------------------
# Stage 3: H2 = A_hat @ Y2 + bg2 ; out = LeakyReLU(H2@Wo1+bo1) @ Wo2 + bo2
# ---------------------------------------------------------------------------
def _gcn2_head_kernel(cid_ref, nnz_ref, a_ref, y2_ref, dis_ref,
                      bg2_ref, wo1_ref, bo1_ref, wo2_ref, bo2_ref,
                      out_ref, acc_ref):
    i = pl.program_id(0)
    k = pl.program_id(1)

    @pl.when(k == 0)
    def _():
        acc_ref[...] = jnp.zeros_like(acc_ref)

    @pl.when(k < nnz_ref[i])
    def _():
        acc_ref[...] += jnp.dot(_a_tile_bf16(a_ref), y2_ref[...],
                                preferred_element_type=jnp.float32)

    @pl.when(k == pl.num_programs(1) - 1)
    def _():
        h2 = dis_ref[...] * acc_ref[...] + bg2_ref[...]      # GCNConv2
        o1 = _leaky(jnp.dot(h2, wo1_ref[...],
                            preferred_element_type=jnp.float32) + bo1_ref[...])
        out_ref[...] = (jnp.dot(o1, wo2_ref[...],
                                preferred_element_type=jnp.float32)
                        + bo2_ref[...]).astype(out_ref.dtype)


# ---------------------------------------------------------------------------
# Wrapper
# ---------------------------------------------------------------------------
def botgcn_forward(des, tweet, num_prop, cat_prop, adj, d_inv_sqrt, params, *,
                   tm=512, tk=1024, vmem_limit_bytes=48 * 1024 * 1024):
    """Fused BotGCN forward (eval mode).

    adj        : dense (N, N) {0,1} adjacency WITH self loops (row = target).
    d_inv_sqrt : (N,) f32 so that A_hat = diag(d^-1/2) @ adj @ diag(d^-1/2).

    Note: not jit-able — the block-sparsity metadata is computed host-side.
    """
    n = des.shape[0]
    hidden = params["wi"].shape[0]
    assert hidden % 4 == 0
    q = hidden // 4
    h_pad = max(LANE, _round_up(hidden, LANE))   # lane-dense hidden dim

    # ---- tile sizes: divide n_pad; keep >= 2 row tiles for megacore (v7x) --
    n_pad = _round_up(n, LANE)
    tm = min(tm, n_pad)
    tk = min(tk, n_pad)
    if n_pad >= 2 * LANE:
        tm = min(tm, n_pad // 2)                 # >= 2 parallel row tiles
    tm = max(LANE, tm // LANE * LANE)
    tk = max(LANE, tk // LANE * LANE)
    while n_pad % tm:
        tm -= LANE
    while n_pad % tk:
        tk -= LANE
    nb_r, nb_c = n_pad // tm, n_pad // tk

    # ---- pad node dim; large operands bf16 / int8, f32 accumulation --------
    def pad_rows(x, dt):
        return jnp.pad(x, ((0, n_pad - x.shape[0]), (0, 0))).astype(dt)

    des_p = pad_rows(des, jnp.bfloat16)
    tweet_p = pad_rows(tweet, jnp.bfloat16)
    nc_p = pad_rows(jnp.concatenate([num_prop, cat_prop], axis=1), jnp.bfloat16)
    adj_p = jnp.pad(adj, ((0, n_pad - n), (0, n_pad - n))).astype(jnp.int8)
    dis_p = pad_rows(d_inv_sqrt.reshape(-1, 1), jnp.float32)   # padded rows -> 0

    # ---- block-sparsity metadata for the O(N^2) stages (host numpy) --------
    blk_nz = np.asarray(
        jnp.any(adj_p.reshape(nb_r, tm, nb_c, tk) != 0, axis=(1, 3)))
    nnz = blk_nz.sum(axis=1).astype(np.int32)                  # (nb_r,)
    k_max = max(1, int(nnz.max()))
    col_ids = np.zeros((nb_r, k_max), np.int32)
    for i in range(nb_r):
        idx = np.nonzero(blk_nz[i])[0]
        if idx.size:
            col_ids[i, :idx.size] = idx
            col_ids[i, idx.size:] = idx[-1]      # repeated index -> DMA elided
    col_ids_j = jnp.asarray(col_ids)
    nnz_j = jnp.asarray(nnz)

    # ---- weight packing: hidden zero-padded to h_pad lanes (exact) ---------
    def pad_w(w, rows, cols):
        out = jnp.zeros((rows, cols), jnp.float32)
        return out.at[:w.shape[0], :w.shape[1]].set(w.astype(jnp.float32))

    f_nc = nc_p.shape[1]
    n_dim = params["wn"].shape[0]
    # Block-diagonal pack of num/cat encoder weights: [num|cat] @ w_nc = [n|c].
    w_nc = jnp.zeros((f_nc, 2 * q), jnp.float32)
    w_nc = w_nc.at[:n_dim, :q].set(params["wn"])
    w_nc = w_nc.at[n_dim:, q:].set(params["wc"]).astype(jnp.bfloat16)
    b_nc = jnp.concatenate([params["bn"], params["bc"]], axis=1)

    wd = params["wd"].astype(jnp.bfloat16)
    wt = params["wt"].astype(jnp.bfloat16)

    wi = params["wi"]
    wi_d = pad_w(wi[:q], q, h_pad)
    wi_t = pad_w(wi[q:2 * q], q, h_pad)
    wi_nc = pad_w(wi[2 * q:], 2 * q, h_pad)
    bi_p = pad_w(params["bi"], 1, h_pad)
    wg1_p = pad_w(params["wg1"], h_pad, h_pad)
    bg1_p = pad_w(params["bg1"], 1, h_pad)
    wg2_p = pad_w(params["wg2"], h_pad, h_pad)
    bg2_p = pad_w(params["bg2"], 1, h_pad)
    wo1_p = pad_w(params["wo1"], h_pad, h_pad)
    bo1_p = pad_w(params["bo1"], 1, h_pad)
    wo2_p = pad_w(params["wo2"], h_pad, LANE)    # 2-wide head -> 128 lanes
    bo2_p = pad_w(params["bo2"], 1, LANE)

    row = lambda f: pl.BlockSpec((tm, f), lambda i: (i, 0))
    w1 = lambda a: pl.BlockSpec(a.shape, lambda i: (0, 0))

    # --- Stage 1: encoders + input layer + dis*(z@Wg1), row-parallel --------
    y1 = pl.pallas_call(
        _encoder_kernel,
        out_shape=jax.ShapeDtypeStruct((n_pad, h_pad), jnp.bfloat16),
        grid_spec=pltpu.PrefetchScalarGridSpec(
            num_scalar_prefetch=0,
            grid=(nb_r,),
            in_specs=[
                row(des_p.shape[1]), row(tweet_p.shape[1]), row(f_nc), row(1),
                w1(wd), w1(params["bd"]), w1(wt), w1(params["bt"]),
                w1(w_nc), w1(b_nc),
                w1(wi_d), w1(wi_t), w1(wi_nc), w1(bi_p), w1(wg1_p),
            ],
            out_specs=pl.BlockSpec((tm, h_pad), lambda i: (i, 0)),
        ),
        compiler_params=pltpu.CompilerParams(
            dimension_semantics=("parallel",),
            vmem_limit_bytes=vmem_limit_bytes),
    )(des_p, tweet_p, nc_p, dis_p,
      wd, params["bd"], wt, params["bt"], w_nc, b_nc,
      wi_d, wi_t, wi_nc, bi_p, wg1_p)

    # --- Stages 2/3: block-sparse tiled adj @ Y reductions (O(N^2) work) ----
    grid = (nb_r, k_max)
    a_spec = pl.BlockSpec((tm, tk), lambda i, k, cid, nz: (i, cid[i, k]))
    y_spec = pl.BlockSpec((tk, h_pad), lambda i, k, cid, nz: (cid[i, k], 0))
    dis_spec = pl.BlockSpec((tm, 1), lambda i, k, cid, nz: (i, 0))
    w2 = lambda a: pl.BlockSpec(a.shape, lambda i, k, cid, nz: (0, 0))
    gcn_cparams = pltpu.CompilerParams(
        dimension_semantics=("parallel", "arbitrary"),
        vmem_limit_bytes=vmem_limit_bytes)

    y2 = pl.pallas_call(
        _gcn1_kernel,
        out_shape=jax.ShapeDtypeStruct((n_pad, h_pad), jnp.bfloat16),
        grid_spec=pltpu.PrefetchScalarGridSpec(
            num_scalar_prefetch=2, grid=grid,
            in_specs=[a_spec, y_spec, dis_spec, w2(bg1_p), w2(wg2_p)],
            out_specs=pl.BlockSpec((tm, h_pad), lambda i, k, cid, nz: (i, 0)),
            scratch_shapes=[pltpu.VMEM((tm, h_pad), jnp.float32)],
        ),
        compiler_params=gcn_cparams,
    )(col_ids_j, nnz_j, adj_p, y1, dis_p, bg1_p, wg2_p)

    out_p = pl.pallas_call(
        _gcn2_head_kernel,
        out_shape=jax.ShapeDtypeStruct((n_pad, LANE), jnp.float32),
        grid_spec=pltpu.PrefetchScalarGridSpec(
            num_scalar_prefetch=2, grid=grid,
            in_specs=[a_spec, y_spec, dis_spec,
                      w2(bg2_p), w2(wo1_p), w2(bo1_p), w2(wo2_p), w2(bo2_p)],
            out_specs=pl.BlockSpec((tm, LANE), lambda i, k, cid, nz: (i, 0)),
            scratch_shapes=[pltpu.VMEM((tm, h_pad), jnp.float32)],
        ),
        compiler_params=gcn_cparams,
    )(col_ids_j, nnz_j, adj_p, y2, dis_p, bg2_p, wo1_p, bo1_p, wo2_p, bo2_p)

    return out_p[:n, :2]


# ---------------------------------------------------------------------------
# Host-side glue: params, adjacency + GCN normalization, pure-JAX reference.
# ---------------------------------------------------------------------------
def _linear_params(key, fan_in, fan_out):
    kw, kb = jax.random.split(key)
    bound = 1.0 / jnp.sqrt(jnp.float32(fan_in))
    w = jax.random.uniform(kw, (fan_in, fan_out), jnp.float32, -bound, bound)
    b = jax.random.uniform(kb, (1, fan_out), jnp.float32, -bound, bound)
    return w, b


def make_params(key, hidden_dim, des_size=768, tweet_size=768,
                num_prop_size=5, cat_prop_size=3):
    q = hidden_dim // 4
    keys = jax.random.split(key, 9)
    p = {}
    p["wd"], p["bd"] = _linear_params(keys[0], des_size, q)
    p["wt"], p["bt"] = _linear_params(keys[1], tweet_size, q)
    p["wn"], p["bn"] = _linear_params(keys[2], num_prop_size, q)
    p["wc"], p["bc"] = _linear_params(keys[3], cat_prop_size, q)
    p["wi"], p["bi"] = _linear_params(keys[4], hidden_dim, hidden_dim)
    p["wg1"], p["bg1"] = _linear_params(keys[5], hidden_dim, hidden_dim)
    p["wg2"], p["bg2"] = _linear_params(keys[6], hidden_dim, hidden_dim)
    p["wo1"], p["bo1"] = _linear_params(keys[7], hidden_dim, hidden_dim)
    p["wo2"], p["bo2"] = _linear_params(keys[8], hidden_dim, 2)
    return p


def build_adjacency(edge_index, num_nodes):
    """Dense {0,1} adjacency with self loops + d^-1/2 (GCN symmetric norm).

    edge_index is (2, E): row 0 = source j, row 1 = target i.
    NOTE: duplicate edges are deduplicated (PyG's gcn_norm would count them).
    """
    src, dst = edge_index[0], edge_index[1]
    adj = jnp.zeros((num_nodes, num_nodes), jnp.float32)
    adj = adj.at[dst, src].set(1.0)
    adj = jnp.maximum(adj, jnp.eye(num_nodes, dtype=jnp.float32))
    deg = adj.sum(axis=1)
    return adj, jax.lax.rsqrt(deg)


def _botgcn_reference(des, tweet, num_prop, cat_prop, a_hat, p):
    d = _leaky(des @ p["wd"] + p["bd"])
    t = _leaky(tweet @ p["wt"] + p["bt"])
    n_ = _leaky(num_prop @ p["wn"] + p["bn"])
    c = _leaky(cat_prop @ p["wc"] + p["bc"])
    x = jnp.concatenate([d, t, n_, c], axis=1)
    x = _leaky(x @ p["wi"] + p["bi"])
    x = a_hat @ (x @ p["wg1"]) + p["bg1"]
    x = a_hat @ (x @ p["wg2"]) + p["bg2"]
    x = _leaky(x @ p["wo1"] + p["bo1"])
    return x @ p["wo2"] + p["bo2"]


if __name__ == "__main__":
    key = jax.random.PRNGKey(0)
    (k_des, k_tw, k_np_, k_cp, k_e1, k_e2, k_e3, k_e4,
     k_params) = jax.random.split(key, 9)

    N = 256             # number of graph nodes (kept small for the demo)
    HIDDEN = 32         # hidden_dim (hidden // 4 = 8)
    DES, TWEET, NUMP, CATP = 768, 768, 5, 3

    des = jax.random.normal(k_des, (N, DES), jnp.float32)
    tweet = jax.random.normal(k_tw, (N, TWEET), jnp.float32)
    num_prop = jax.random.normal(k_np_, (N, NUMP), jnp.float32)
    cat_prop = jax.random.normal(k_cp, (N, CATP), jnp.float32)

    # Clustered edges so some (tm, tk) adjacency blocks are all-zero and the
    # block-skipping (scalar-prefetch index_map + pl.when gating) is exercised.
    e1 = jax.random.randint(k_e1, (2, 400), 0, N // 2, jnp.int32)
    e2 = jax.random.randint(k_e2, (2, 400), N // 2, N, jnp.int32)
    e3 = jnp.stack([jax.random.randint(k_e3, (200,), 0, N // 2, jnp.int32),
                    jax.random.randint(k_e4, (200,), N // 2, N, jnp.int32)])
    edge_index = jnp.concatenate([e1, e2, e3], axis=1)

    adj, d_inv_sqrt = build_adjacency(edge_index, N)
    params = make_params(k_params, HIDDEN, DES, TWEET, NUMP, CATP)

    # Small tiles so the demo exercises a real (row x block-sparse reduction)
    # grid; defaults (tm=512, tk=1024) are intended for large graphs.
    out = botgcn_forward(des, tweet, num_prop, cat_prop, adj, d_inv_sqrt,
                         params, tm=128, tk=128)
    out = jax.block_until_ready(out)
    assert out.shape == (N, 2) and out.dtype == jnp.float32

    a_hat = d_inv_sqrt[:, None] * adj * d_inv_sqrt[None, :]
    ref = _botgcn_reference(des, tweet, num_prop, cat_prop, a_hat, params)
    # A_hat is exact now (int8 {0,1} + f32 degree scaling); remaining error
    # comes from bf16 des/tweet and the bf16 Y1/Y2 round-trips.
    assert bool(jnp.allclose(out, ref, rtol=1e-1, atol=1e-1)), \
        float(jnp.max(jnp.abs(out - ref)))
    print("KERNEL_OK")
</pallas_src>

<mosaic_0001>
module attributes {stable_mosaic.version = 11 : i64} {
  func.func @_encoder_kernel(%arg0: i32, %arg1: memref<128x768xbf16, #tpu.memory_space<vmem>>, %arg2: memref<128x768xbf16, #tpu.memory_space<vmem>>, %arg3: memref<128x8xbf16, #tpu.memory_space<vmem>>, %arg4: memref<128x1xf32, #tpu.memory_space<vmem>>, %arg5: memref<768x8xbf16, #tpu.memory_space<vmem>>, %arg6: memref<1x8xf32, #tpu.memory_space<vmem>>, %arg7: memref<768x8xbf16, #tpu.memory_space<vmem>>, %arg8: memref<1x8xf32, #tpu.memory_space<vmem>>, %arg9: memref<8x16xbf16, #tpu.memory_space<vmem>>, %arg10: memref<1x16xf32, #tpu.memory_space<vmem>>, %arg11: memref<8x128xf32, #tpu.memory_space<vmem>>, %arg12: memref<8x128xf32, #tpu.memory_space<vmem>>, %arg13: memref<16x128xf32, #tpu.memory_space<vmem>>, %arg14: memref<1x128xf32, #tpu.memory_space<vmem>>, %arg15: memref<128x128xf32, #tpu.memory_space<vmem>>, %arg16: memref<128x128xbf16, #tpu.memory_space<vmem>>) attributes {dimension_semantics = [#tpu.dimension_semantics<parallel>], iteration_bounds = array<i64: 2>, scalar_prefetch = 0 : i64, scratch_operands = 0 : i64, tpu.core_type = #tpu.core_type<tc>, window_params = [{transform_indices = @transform_0, window_bounds = array<i64: 128, 768>}, {transform_indices = @transform_1, window_bounds = array<i64: 128, 768>}, {transform_indices = @transform_2, window_bounds = array<i64: 128, 8>}, {transform_indices = @transform_3, window_bounds = array<i64: 128, 1>}, {pipeline_mode = #tpu.pipeline_mode<synchronous>, transform_indices = @transform_4, window_bounds = array<i64: 768, 8>}, {pipeline_mode = #tpu.pipeline_mode<synchronous>, transform_indices = @transform_5, window_bounds = array<i64: 1, 8>}, {pipeline_mode = #tpu.pipeline_mode<synchronous>, transform_indices = @transform_6, window_bounds = array<i64: 768, 8>}, {pipeline_mode = #tpu.pipeline_mode<synchronous>, transform_indices = @transform_7, window_bounds = array<i64: 1, 8>}, {pipeline_mode = #tpu.pipeline_mode<synchronous>, transform_indices = @transform_8, window_bounds = array<i64: 8, 16>}, {pipeline_mode = #tpu.pipeline_mode<synchronous>, transform_indices = @transform_9, window_bounds = array<i64: 1, 16>}, {pipeline_mode = #tpu.pipeline_mode<synchronous>, transform_indices = @transform_10, window_bounds = array<i64: 8, 128>}, {pipeline_mode = #tpu.pipeline_mode<synchronous>, transform_indices = @transform_11, window_bounds = array<i64: 8, 128>}, {pipeline_mode = #tpu.pipeline_mode<synchronous>, transform_indices = @transform_12, window_bounds = array<i64: 16, 128>}, {pipeline_mode = #tpu.pipeline_mode<synchronous>, transform_indices = @transform_13, window_bounds = array<i64: 1, 128>}, {pipeline_mode = #tpu.pipeline_mode<synchronous>, transform_indices = @transform_14, window_bounds = array<i64: 128, 128>}, {transform_indices = @transform_15, window_bounds = array<i64: 128, 128>}]} {
    %c0 = arith.constant 0 : index
    %c0_0 = arith.constant 0 : index
    %0 = vector.load %arg1[%c0, %c0_0] : memref<128x768xbf16, #tpu.memory_space<vmem>>, vector<128x768xbf16>
    %c0_1 = arith.constant 0 : index
    %c0_2 = arith.constant 0 : index
    %1 = vector.load %arg5[%c0_1, %c0_2] : memref<768x8xbf16, #tpu.memory_space<vmem>>, vector<768x8xbf16>
    %cst = arith.constant dense<0.000000e+00> : vector<128x8xf32>
    %2 = tpu.matmul %0, %1, %cst {dimension_numbers = #tpu.dot_dimension_numbers<[1], [0], [0], [1], [0, 0, 1, 1], [], []>} : vector<128x768xbf16>, vector<768x8xbf16>, vector<128x8xf32> -> vector<128x8xf32>
    %c0_3 = arith.constant 0 : index
    %c0_4 = arith.constant 0 : index
    %3 = vector.load %arg6[%c0_3, %c0_4] : memref<1x8xf32, #tpu.memory_space<vmem>>, vector<1x8xf32>
    %4 = vector.broadcast %3 : vector<1x8xf32> to vector<128x8xf32>
    %5 = arith.addf %2, %4 : vector<128x8xf32>
    %cst_5 = arith.constant 0.000000e+00 : f32
    %6 = vector.broadcast %cst_5 : f32 to vector<128x8xf32>
    %7 = arith.cmpf ogt, %5, %6 : vector<128x8xf32>
    %cst_6 = arith.constant 0.00999999977 : f32
    %8 = vector.broadcast %cst_6 : f32 to vector<128x8xf32>
    %9 = arith.mulf %8, %5 : vector<128x8xf32>
    %10 = arith.select %7, %5, %9 : vector<128x8xi1>, vector<128x8xf32>
    %c0_7 = arith.constant 0 : index
    %c0_8 = arith.constant 0 : index
    %11 = vector.load %arg2[%c0_7, %c0_8] : memref<128x768xbf16, #tpu.memory_space<vmem>>, vector<128x768xbf16>
    %c0_9 = arith.constant 0 : index
    %c0_10 = arith.constant 0 : index
    %12 = vector.load %arg7[%c0_9, %c0_10] : memref<768x8xbf16, #tpu.memory_space<vmem>>, vector<768x8xbf16>
    %cst_11 = arith.constant dense<0.000000e+00> : vector<128x8xf32>
    %13 = tpu.matmul %11, %12, %cst_11 {dimension_numbers = #tpu.dot_dimension_numbers<[1], [0], [0], [1], [0, 0, 1, 1], [], []>} : vector<128x768xbf16>, vector<768x8xbf16>, vector<128x8xf32> -> vector<128x8xf32>
    %c0_12 = arith.constant 0 : index
    %c0_13 = arith.constant 0 : index
    %14 = vector.load %arg8[%c0_12, %c0_13] : memref<1x8xf32, #tpu.memory_space<vmem>>, vector<1x8xf32>
    %15 = vector.broadcast %14 : vector<1x8xf32> to vector<128x8xf32>
    %16 = arith.addf %13, %15 : vector<128x8xf32>
    %cst_14 = arith.constant 0.000000e+00 : f32
    %17 = vector.broadcast %cst_14 : f32 to vector<128x8xf32>
    %18 = arith.cmpf ogt, %16, %17 : vector<128x8xf32>
    %cst_15 = arith.constant 0.00999999977 : f32
    %19 = vector.broadcast %cst_15 : f32 to vector<128x8xf32>
    %20 = arith.mulf %19, %16 : vector<128x8xf32>
    %21 = arith.select %18, %16, %20 : vector<128x8xi1>, vector<128x8xf32>
    %c0_16 = arith.constant 0 : index
    %c0_17 = arith.constant 0 : index
    %22 = vector.load %arg3[%c0_16, %c0_17] : memref<128x8xbf16, #tpu.memory_space<vmem>>, vector<128x8xbf16>
    %c0_18 = arith.constant 0 : index
    %c0_19 = arith.constant 0 : index
    %23 = vector.load %arg9[%c0_18, %c0_19] : memref<8x16xbf16, #tpu.memory_space<vmem>>, vector<8x16xbf16>
    %cst_20 = arith.constant dense<0.000000e+00> : vector<128x16xf32>
    %24 = tpu.matmul %22, %23, %cst_20 {dimension_numbers = #tpu.dot_dimension_numbers<[1], [0], [0], [1], [0, 0, 1, 1], [], []>} : vector<128x8xbf16>, vector<8x16xbf16>, vector<128x16xf32> -> vector<128x16xf32>
    %c0_21 = arith.constant 0 : index
    %c0_22 = arith.constant 0 : index
    %25 = vector.load %arg10[%c0_21, %c0_22] : memref<1x16xf32, #tpu.memory_space<vmem>>, vector<1x16xf32>
    %26 = vector.broadcast %25 : vector<1x16xf32> to vector<128x16xf32>
    %27 = arith.addf %24, %26 : vector<128x16xf32>
    %cst_23 = arith.constant 0.000000e+00 : f32
    %28 = vector.broadcast %cst_23 : f32 to vector<128x16xf32>
    %29 = arith.cmpf ogt, %27, %28 : vector<128x16xf32>
    %cst_24 = arith.constant 0.00999999977 : f32
    %30 = vector.broadcast %cst_24 : f32 to vector<128x16xf32>
    %31 = arith.mulf %30, %27 : vector<128x16xf32>
    %32 = arith.select %29, %27, %31 : vector<128x16xi1>, vector<128x16xf32>
    %c0_25 = arith.constant 0 : index
    %c0_26 = arith.constant 0 : index
    %33 = vector.load %arg11[%c0_25, %c0_26] : memref<8x128xf32, #tpu.memory_space<vmem>>, vector<8x128xf32>
    %cst_27 = arith.constant dense<0.000000e+00> : vector<128x128xf32>
    %34 = tpu.matmul %10, %33, %cst_27 {dimension_numbers = #tpu.dot_dimension_numbers<[1], [0], [0], [1], [0, 0, 1, 1], [], []>} : vector<128x8xf32>, vector<8x128xf32>, vector<128x128xf32> -> vector<128x128xf32>
    %c0_28 = arith.constant 0 : index
    %c0_29 = arith.constant 0 : index
    %35 = vector.load %arg12[%c0_28, %c0_29] : memref<8x128xf32, #tpu.memory_space<vmem>>, vector<8x128xf32>
    %cst_30 = arith.constant dense<0.000000e+00> : vector<128x128xf32>
    %36 = tpu.matmul %21, %35, %cst_30 {dimension_numbers = #tpu.dot_dimension_numbers<[1], [0], [0], [1], [0, 0, 1, 1], [], []>} : vector<128x8xf32>, vector<8x128xf32>, vector<128x128xf32> -> vector<128x128xf32>
    %37 = arith.addf %34, %36 : vector<128x128xf32>
    %c0_31 = arith.constant 0 : index
    %c0_32 = arith.constant 0 : index
    %38 = vector.load %arg13[%c0_31, %c0_32] : memref<16x128xf32, #tpu.memory_space<vmem>>, vector<16x128xf32>
    %cst_33 = arith.constant dense<0.000000e+00> : vector<128x128xf32>
    %39 = tpu.matmul %32, %38, %cst_33 {dimension_numbers = #tpu.dot_dimension_numbers<[1], [0], [0], [1], [0, 0, 1, 1], [], []>} : vector<128x16xf32>, vector<16x128xf32>, vector<128x128xf32> -> vector<128x128xf32>
    %40 = arith.addf %37, %39 : vector<128x128xf32>
    %c0_34 = arith.constant 0 : index
    %c0_35 = arith.constant 0 : index
    %41 = vector.load %arg14[%c0_34, %c0_35] : memref<1x128xf32, #tpu.memory_space<vmem>>, vector<1x128xf32>
    %42 = vector.broadcast %41 : vector<1x128xf32> to vector<128x128xf32>
    %43 = arith.addf %40, %42 : vector<128x128xf32>
    %cst_36 = arith.constant 0.000000e+00 : f32
    %44 = vector.broadcast %cst_36 : f32 to vector<128x128xf32>
    %45 = arith.cmpf ogt, %43, %44 : vector<128x128xf32>
    %cst_37 = arith.constant 0.00999999977 : f32
    %46 = vector.broadcast %cst_37 : f32 to vector<128x128xf32>
    %47 = arith.mulf %46, %43 : vector<128x128xf32>
    %48 = arith.select %45, %43, %47 : vector<128x128xi1>, vector<128x128xf32>
    %c0_38 = arith.constant 0 : index
    %c0_39 = arith.constant 0 : index
    %49 = vector.load %arg4[%c0_38, %c0_39] : memref<128x1xf32, #tpu.memory_space<vmem>>, vector<128x1xf32>
    %c0_40 = arith.constant 0 : index
    %c0_41 = arith.constant 0 : index
    %50 = vector.load %arg15[%c0_40, %c0_41] : memref<128x128xf32, #tpu.memory_space<vmem>>, vector<128x128xf32>
    %cst_42 = arith.constant dense<0.000000e+00> : vector<128x128xf32>
    %51 = tpu.matmul %48, %50, %cst_42 {dimension_numbers = #tpu.dot_dimension_numbers<[1], [0], [0], [1], [0, 0, 1, 1], [], []>} : vector<128x128xf32>, vector<128x128xf32>, vector<128x128xf32> -> vector<128x128xf32>
    %52 = vector.broadcast %49 : vector<128x1xf32> to vector<128x128xf32>
    %53 = arith.mulf %52, %51 : vector<128x128xf32>
    %54 = arith.truncf %53 : vector<128x128xf32> to vector<128x128xbf16>
    %c0_43 = arith.constant 0 : index
    %c0_44 = arith.constant 0 : index
    %55 = vector.load %arg16[%c0_43, %c0_44] : memref<128x128xbf16, #tpu.memory_space<vmem>>, vector<128x128xbf16>
    tpu.vector_store %arg16[%c0_43, %c0_44], %54 {strides = array<i32>} : memref<128x128xbf16, #tpu.memory_space<vmem>>, vector<128x128xbf16>,
    return
  }
  func.func @transform_0(%arg0: i32) -> (i32, i32) {
    %c0_i32 = arith.constant 0 : i32
    %c0_i32_0 = arith.constant 0 : i32
    return %arg0, %c0_i32 : i32, i32
  }
  func.func @transform_1(%arg0: i32) -> (i32, i32) {
    %c0_i32 = arith.constant 0 : i32
    %c0_i32_0 = arith.constant 0 : i32
    return %arg0, %c0_i32 : i32, i32
  }
  func.func @transform_2(%arg0: i32) -> (i32, i32) {
    %c0_i32 = arith.constant 0 : i32
    %c0_i32_0 = arith.constant 0 : i32
    return %arg0, %c0_i32 : i32, i32
  }
  func.func @transform_3(%arg0: i32) -> (i32, i32) {
    %c0_i32 = arith.constant 0 : i32
    %c0_i32_0 = arith.constant 0 : i32
    return %arg0, %c0_i32 : i32, i32
  }
  func.func @transform_4(%arg0: i32) -> (i32, i32) {
    %c0_i32 = arith.constant 0 : i32
    %c0_i32_0 = arith.constant 0 : i32
    %c0_i32_1 = arith.constant 0 : i32
    return %c0_i32, %c0_i32_0 : i32, i32
  }
  func.func @transform_5(%arg0: i32) -> (i32, i32) {
    %c0_i32 = arith.constant 0 : i32
    %c0_i32_0 = arith.constant 0 : i32
    %c0_i32_1 = arith.constant 0 : i32
    return %c0_i32, %c0_i32_0 : i32, i32
  }
  func.func @transform_6(%arg0: i32) -> (i32, i32) {
    %c0_i32 = arith.constant 0 : i32
    %c0_i32_0 = arith.constant 0 : i32
    %c0_i32_1 = arith.constant 0 : i32
    return %c0_i32, %c0_i32_0 : i32, i32
  }
  func.func @transform_7(%arg0: i32) -> (i32, i32) {
    %c0_i32 = arith.constant 0 : i32
    %c0_i32_0 = arith.constant 0 : i32
    %c0_i32_1 = arith.constant 0 : i32
    return %c0_i32, %c0_i32_0 : i32, i32
  }
  func.func @transform_8(%arg0: i32) -> (i32, i32) {
    %c0_i32 = arith.constant 0 : i32
    %c0_i32_0 = arith.constant 0 : i32
    %c0_i32_1 = arith.constant 0 : i32
    return %c0_i32, %c0_i32_0 : i32, i32
  }
  func.func @transform_9(%arg0: i32) -> (i32, i32) {
    %c0_i32 = arith.constant 0 : i32
    %c0_i32_0 = arith.constant 0 : i32
    %c0_i32_1 = arith.constant 0 : i32
    return %c0_i32, %c0_i32_0 : i32, i32
  }
  func.func @transform_10(%arg0: i32) -> (i32, i32) {
    %c0_i32 = arith.constant 0 : i32
    %c0_i32_0 = arith.constant 0 : i32
    %c0_i32_1 = arith.constant 0 : i32
    return %c0_i32, %c0_i32_0 : i32, i32
  }
  func.func @transform_11(%arg0: i32) -> (i32, i32) {
    %c0_i32 = arith.constant 0 : i32
    %c0_i32_0 = arith.constant 0 : i32
    %c0_i32_1 = arith.constant 0 : i32
    return %c0_i32, %c0_i32_0 : i32, i32
  }
  func.func @transform_12(%arg0: i32) -> (i32, i32) {
    %c0_i32 = arith.constant 0 : i32
    %c0_i32_0 = arith.constant 0 : i32
    %c0_i32_1 = arith.constant 0 : i32
    return %c0_i32, %c0_i32_0 : i32, i32
  }
  func.func @transform_13(%arg0: i32) -> (i32, i32) {
    %c0_i32 = arith.constant 0 : i32
    %c0_i32_0 = arith.constant 0 : i32
    %c0_i32_1 = arith.constant 0 : i32
    return %c0_i32, %c0_i32_0 : i32, i32
  }
  func.func @transform_14(%arg0: i32) -> (i32, i32) {
    %c0_i32 = arith.constant 0 : i32
    %c0_i32_0 = arith.constant 0 : i32
    %c0_i32_1 = arith.constant 0 : i32
    return %c0_i32, %c0_i32_0 : i32, i32
  }
  func.func @transform_15(%arg0: i32) -> (i32, i32) {
    %c0_i32 = arith.constant 0 : i32
    %c0_i32_0 = arith.constant 0 : i32
    return %arg0, %c0_i32 : i32, i32
  }
}

</mosaic_0001>

<llo_original>
// kernel: tpu_custom_call.1
$region0: #{tpu_custom_call.1}
  #allocation0 [shape = 'u32[]', space=smem, size = 0x4, offset = 0x4, fixed_abs, tag = 'smem constant byte address 0x4 - core index']
  #allocation1 [shape = 'u32[144,128]{1,0:T(1,128)}', space=vmem, size = 0x12000, scoped, tag = 'internal scratch']
  %s0 = inlined_call_operand.vmem [shape: bf16[256,768], index: 0, kind: input, shape index: {}]
  %s1 = inlined_call_operand.hbm [shape: bf16[256,768], index: 1, kind: input, shape index: {}]
  %s2 = inlined_call_operand.vmem [shape: bf16[256,8], index: 2, kind: input, shape index: {}]
  %s3 = inlined_call_operand.vmem [shape: f32[256,1], index: 3, kind: input, shape index: {}]
  %s4 = inlined_call_operand.vmem [shape: bf16[768,8], index: 4, kind: input, shape index: {}]
  %s5 = inlined_call_operand.vmem [shape: f32[1,8], index: 5, kind: input, shape index: {}]
  %s6 = inlined_call_operand.vmem [shape: bf16[768,8], index: 6, kind: input, shape index: {}]
  %s7 = inlined_call_operand.vmem [shape: f32[1,8], index: 7, kind: input, shape index: {}]
  %s8 = inlined_call_operand.vmem [shape: bf16[8,16], index: 8, kind: input, shape index: {}]
  %s9 = inlined_call_operand.vmem [shape: f32[1,16], index: 9, kind: input, shape index: {}]
  %s10 = inlined_call_operand.vmem [shape: f32[8,128], index: 10, kind: input, shape index: {}]
  %s11 = inlined_call_operand.vmem [shape: f32[8,128], index: 11, kind: input, shape index: {}]
  %s12 = inlined_call_operand.vmem [shape: f32[16,128], index: 12, kind: input, shape index: {}]
  %s13 = inlined_call_operand.vmem [shape: f32[1,128], index: 13, kind: input, shape index: {}]
  %s14 = inlined_call_operand.vmem [shape: f32[128,128], index: 14, kind: input, shape index: {}]
  %s15 = inlined_call_operand.hbm [shape: bf16[256,128], index: 15, kind: output, shape index: {}]
  %s16 = sld [smem:[#allocation0]]
  $region97: #{tpu_custom_call.1} parent=0
    _
  %s18 = ssub.s32 1, %s16
  %s19 = scalar_select 0, %s18, %s16
  $region1: #{tpu_custom_call.1} parent=0
    #allocation2 [shape = 'u8[393216]{0}', space=vmem, size = 0x60000, scoped, tag = 'input window, operand 1']
    #allocation3 [shape = 's32[2]{0}', space=sflag, size = 0x8, scoped, tag = 'scoped memory for tpu_custom_call.1']
    #allocation4 [shape = 's32[2]{0}', space=sflag, size = 0x8, scoped, tag = 'scoped memory for tpu_custom_call.1']
    #allocation5 [shape = 'u8[65536]{0}', space=vmem, size = 0x10000, scoped, tag = 'output window, operand 0']
    %20 = vsyncpa [#allocation3], 0
    %s21 = scalar_lea.sflag [#allocation3], 1
    %22 = vsyncpa %s21, 0
    %23 = vsyncpa [#allocation4], 0
    %s24 = scalar_lea.sflag [#allocation4], 1
    %25 = vsyncpa %s24, 0
    loop: start=0, step=1, limit=4
    $region2: #{tpu_custom_call.1} parent=1 // loop_pre_header
      _
    $region3: #{tpu_custom_call.1} parent=1 // loop_header
      %s27 = sphi 0, %s31
      %p28 = scmp.ge.s32.totalorder %s27, 4
      %s37 = sphi 0, %s39
      %s40 = sphi 0, %s37
      %s41 = sphi 0, %s40
      %s57 = sphi 0, %s41
      %s63 = sphi 0, %s65
      %s66 = sphi 0, %s63
      %s67 = sphi 0, %s66
      %s83 = sphi 0, %s67
      %s89 = sphi 0, %s91
      %s92 = sphi 0, %s89
      %s93 = sphi 0, %s92
      %s109 = sphi 0, %s93
      %s115 = sphi 0, %s117
      %s118 = sphi 0, %s115
      %s119 = sphi 0, %s118
      %s135 = sphi 0, %s119
      %s139 = sphi 0, %s139
      %s141 = sphi 0, %s139
      %s142 = sphi 0, %s141
      %s156 = sphi 0, %s142
      %s160 = sphi 0, %s160
      %s162 = sphi 0, %s160
      %s163 = sphi 0, %s162
      %s177 = sphi 0, %s163
      %s181 = sphi 0, %s181
      %s183 = sphi 0, %s181
      %s184 = sphi 0, %s183
      %s198 = sphi 0, %s184
      %s202 = sphi 0, %s202
      %s204 = sphi 0, %s202
      %s205 = sphi 0, %s204
      %s219 = sphi 0, %s205
      %s223 = sphi 0, %s223
      %s225 = sphi 0, %s223
      %s226 = sphi 0, %s225
      %s240 = sphi 0, %s226
      %s244 = sphi 0, %s244
      %s246 = sphi 0, %s244
      %s247 = sphi 0, %s246
      %s261 = sphi 0, %s247
      %s265 = sphi 0, %s265
      %s267 = sphi 0, %s265
      %s268 = sphi 0, %s267
      %s282 = sphi 0, %s268
      %s286 = sphi 0, %s286
      %s288 = sphi 0, %s286
      %s289 = sphi 0, %s288
      %s303 = sphi 0, %s289
      %s307 = sphi 0, %s307
      %s309 = sphi 0, %s307
      %s310 = sphi 0, %s309
      %s324 = sphi 0, %s310
      %s328 = sphi 0, %s328
      %s330 = sphi 0, %s328
      %s331 = sphi 0, %s330
      %s345 = sphi 0, %s331
      %s349 = sphi 0, %s349
      %s351 = sphi 0, %s349
      %s352 = sphi 0, %s351
      %s366 = sphi 0, %s352
      %s372 = sphi 0, %s374
      %s375 = sphi 0, %s372
      %s376 = sphi 0, %s375
      %s392 = sphi 0, %s376
    $region4: #{tpu_custom_call.1} parent=1 // loop_header_branch
      %30 = sbr.rel (%p28) target = $region8
    $region5: #{tpu_custom_call.1} parent=1 // loop_body
      %s32 = ssub.s32 %s27, 1
      %s33 = ssub.s32 %s27, 2
      %s34 = sadd.s32 %s27, 1
      %s35 = ssub.s32 %s27, %s34
      %p36 = scmp.eq.s32.totalorder %s35, 0
      %s38 = sadd.s32 %s37, 1
      %s39 = scalar_select %p36, %s37, %s38
      %p42 = pneg %p36
      %p43 = scmp.eq.s32.totalorder %s27, 1
      %p44 = por %p42, %p43
      %p45 = scmp.ne.s32.totalorder %s37, %s40
      %p46 = scmp.eq.s32.totalorder %s27, 0
      %p47 = por %p45, %p46
      %p48 = scmp.ne.s32.totalorder %s37, %s40
      %p49 = scmp.eq.s32.totalorder %s32, 1
      %p50 = por %p48, %p49
      %p51 = scmp.ne.s32.totalorder %s40, %s41
      %p52 = scmp.eq.s32.totalorder %s32, 0
      %p53 = por %p51, %p52
      %p54 = scmp.ne.s32.totalorder %s40, %s41
      %p55 = scmp.eq.s32.totalorder %s33, 1
      %p56 = por %p54, %p55
      %p58 = scmp.ne.s32.totalorder %s41, %s57
      %p59 = scmp.eq.s32.totalorder %s33, 0
      %p60 = por %p58, %p59
      %s61 = ssub.s32 %s27, %s34
      %p62 = scmp.eq.s32.totalorder %s61, 0
      %s64 = sadd.s32 %s63, 1
      %s65 = scalar_select %p62, %s63, %s64
      %p68 = pneg %p62
      %p69 = scmp.eq.s32.totalorder %s27, 1
      %p70 = por %p68, %p69
      %p71 = scmp.ne.s32.totalorder %s63, %s66
      %p72 = scmp.eq.s32.totalorder %s27, 0
      %p73 = por %p71, %p72
      %p74 = scmp.ne.s32.totalorder %s63, %s66
      %p75 = scmp.eq.s32.totalorder %s32, 1
      %p76 = por %p74, %p75
      %p77 = scmp.ne.s32.totalorder %s66, %s67
      %p78 = scmp.eq.s32.totalorder %s32, 0
      %p79 = por %p77, %p78
      %p80 = scmp.ne.s32.totalorder %s66, %s67
      %p81 = scmp.eq.s32.totalorder %s33, 1
      %p82 = por %p80, %p81
      %p84 = scmp.ne.s32.totalorder %s67, %s83
      %p85 = scmp.eq.s32.totalorder %s33, 0
      %p86 = por %p84, %p85
      %s87 = ssub.s32 %s27, %s34
      %p88 = scmp.eq.s32.totalorder %s87, 0
      %s90 = sadd.s32 %s89, 1
      %s91 = scalar_select %p88, %s89, %s90
      %p94 = pneg %p88
      %p95 = scmp.eq.s32.totalorder %s27, 1
      %p96 = por %p94, %p95
      %p97 = scmp.ne.s32.totalorder %s89, %s92
      %p98 = scmp.eq.s32.totalorder %s27, 0
      %p99 = por %p97, %p98
      %p100 = scmp.ne.s32.totalorder %s89, %s92
      %p101 = scmp.eq.s32.totalorder %s32, 1
      %p102 = por %p100, %p101
      %p103 = scmp.ne.s32.totalorder %s92, %s93
      %p104 = scmp.eq.s32.totalorder %s32, 0
      %p105 = por %p103, %p104
      %p106 = scmp.ne.s32.totalorder %s92, %s93
      %p107 = scmp.eq.s32.totalorder %s33, 1
      %p108 = por %p106, %p107
      %p110 = scmp.ne.s32.totalorder %s93, %s109
      %p111 = scmp.eq.s32.totalorder %s33, 0
      %p112 = por %p110, %p111
      %s113 = ssub.s32 %s27, %s34
      %p114 = scmp.eq.s32.totalorder %s113, 0
      %s116 = sadd.s32 %s115, 1
      %s117 = scalar_select %p114, %s115, %s116
      %p120 = pneg %p114
      %p121 = scmp.eq.s32.totalorder %s27, 1
      %p122 = por %p120, %p121
      %p123 = scmp.ne.s32.totalorder %s115, %s118
      %p124 = scmp.eq.s32.totalorder %s27, 0
      %p125 = por %p123, %p124
      %p126 = scmp.ne.s32.totalorder %s115, %s118
      %p127 = scmp.eq.s32.totalorder %s32, 1
      %p128 = por %p126, %p127
      %p129 = scmp.ne.s32.totalorder %s118, %s119
      %p130 = scmp.eq.s32.totalorder %s32, 0
      %p131 = por %p129, %p130
      %p132 = scmp.ne.s32.totalorder %s118, %s119
      %p133 = scmp.eq.s32.totalorder %s33, 1
      %p134 = por %p132, %p133
      %p136 = scmp.ne.s32.totalorder %s119, %s135
      %p137 = scmp.eq.s32.totalorder %s33, 0
      %p138 = por %p136, %p137
      %s140 = sadd.s32 %s139, 1
      %p143 = scmp.eq.s32.totalorder %s27, 1
      %p144 = scmp.ne.s32.totalorder %s139, %s141
      %p145 = scmp.eq.s32.totalorder %s27, 0
      %p146 = por %p144, %p145
      %p147 = scmp.ne.s32.totalorder %s139, %s141
      %p148 = scmp.eq.s32.totalorder %s32, 1
      %p149 = por %p147, %p148
      %p150 = scmp.ne.s32.totalorder %s141, %s142
      %p151 = scmp.eq.s32.totalorder %s32, 0
      %p152 = por %p150, %p151
      %p153 = scmp.ne.s32.totalorder %s141, %s142
      %p154 = scmp.eq.s32.totalorder %s33, 1
      %p155 = por %p153, %p154
      %p157 = scmp.ne.s32.totalorder %s142, %s156
      %p158 = scmp.eq.s32.totalorder %s33, 0
      %p159 = por %p157, %p158
      %s161 = sadd.s32 %s160, 1
      %p164 = scmp.eq.s32.totalorder %s27, 1
      %p165 = scmp.ne.s32.totalorder %s160, %s162
      %p166 = scmp.eq.s32.totalorder %s27, 0
      %p167 = por %p165, %p166
      %p168 = scmp.ne.s32.totalorder %s160, %s162
      %p169 = scmp.eq.s32.totalorder %s32, 1
      %p170 = por %p168, %p169
      %p171 = scmp.ne.s32.totalorder %s162, %s163
      %p172 = scmp.eq.s32.totalorder %s32, 0
      %p173 = por %p171, %p172
      %p174 = scmp.ne.s32.totalorder %s162, %s163
      %p175 = scmp.eq.s32.totalorder %s33, 1
      %p176 = por %p174, %p175
      %p178 = scmp.ne.s32.totalorder %s163, %s177
      %p179 = scmp.eq.s32.totalorder %s33, 0
      %p180 = por %p178, %p179
      %s182 = sadd.s32 %s181, 1
      %p185 = scmp.eq.s32.totalorder %s27, 1
      %p186 = scmp.ne.s32.totalorder %s181, %s183
      %p187 = scmp.eq.s32.totalorder %s27, 0
      %p188 = por %p186, %p187
      %p189 = scmp.ne.s32.totalorder %s181, %s183
      %p190 = scmp.eq.s32.totalorder %s32, 1
      %p191 = por %p189, %p190
      %p192 = scmp.ne.s32.totalorder %s183, %s184
      %p193 = scmp.eq.s32.totalorder %s32, 0
      %p194 = por %p192, %p193
      %p195 = scmp.ne.s32.totalorder %s183, %s184
      %p196 = scmp.eq.s32.totalorder %s33, 1
      %p197 = por %p195, %p196
      %p199 = scmp.ne.s32.totalorder %s184, %s198
      %p200 = scmp.eq.s32.totalorder %s33, 0
      %p201 = por %p199, %p200
      %s203 = sadd.s32 %s202, 1
      %p206 = scmp.eq.s32.totalorder %s27, 1
      %p207 = scmp.ne.s32.totalorder %s202, %s204
      %p208 = scmp.eq.s32.totalorder %s27, 0
      %p209 = por %p207, %p208
      %p210 = scmp.ne.s32.totalorder %s202, %s204
      %p211 = scmp.eq.s32.totalorder %s32, 1
      %p212 = por %p210, %p211
      %p213 = scmp.ne.s32.totalorder %s204, %s205
      %p214 = scmp.eq.s32.totalorder %s32, 0
      %p215 = por %p213, %p214
      %p216 = scmp.ne.s32.totalorder %s204, %s205
      %p217 = scmp.eq.s32.totalorder %s33, 1
      %p218 = por %p216, %p217
      %p220 = scmp.ne.s32.totalorder %s205, %s219
      %p221 = scmp.eq.s32.totalorder %s33, 0
      %p222 = por %p220, %p221
      %s224 = sadd.s32 %s223, 1
      %p227 = scmp.eq.s32.totalorder %s27, 1
      %p228 = scmp.ne.s32.totalorder %s223, %s225
      %p229 = scmp.eq.s32.totalorder %s27, 0
      %p230 = por %p228, %p229
      %p231 = scmp.ne.s32.totalorder %s223, %s225
      %p232 = scmp.eq.s32.totalorder %s32, 1
      %p233 = por %p231, %p232
      %p234 = scmp.ne.s32.totalorder %s225, %s226
      %p235 = scmp.eq.s32.totalorder %s32, 0
      %p236 = por %p234, %p235
      %p237 = scmp.ne.s32.totalorder %s225, %s226
      %p238 = scmp.eq.s32.totalorder %s33, 1
      %p239 = por %p237, %p238
      %p241 = scmp.ne.s32.totalorder %s226, %s240
      %p242 = scmp.eq.s32.totalorder %s33, 0
      %p243 = por %p241, %p242
      %s245 = sadd.s32 %s244, 1
      %p248 = scmp.eq.s32.totalorder %s27, 1
      %p249 = scmp.ne.s32.totalorder %s244, %s246
      %p250 = scmp.eq.s32.totalorder %s27, 0
      %p251 = por %p249, %p250
      %p252 = scmp.ne.s32.totalorder %s244, %s246
      %p253 = scmp.eq.s32.totalorder %s32, 1
      %p254 = por %p252, %p253
      %p255 = scmp.ne.s32.totalorder %s246, %s247
      %p256 = scmp.eq.s32.totalorder %s32, 0
      %p257 = por %p255, %p256
      %p258 = scmp.ne.s32.totalorder %s246, %s247
      %p259 = scmp.eq.s32.totalorder %s33, 1
      %p260 = por %p258, %p259
      %p262 = scmp.ne.s32.totalorder %s247, %s261
      %p263 = scmp.eq.s32.totalorder %s33, 0
      %p264 = por %p262, %p263
      %s266 = sadd.s32 %s265, 1
      %p269 = scmp.eq.s32.totalorder %s27, 1
      %p270 = scmp.ne.s32.totalorder %s265, %s267
      %p271 = scmp.eq.s32.totalorder %s27, 0
      %p272 = por %p270, %p271
      %p273 = scmp.ne.s32.totalorder %s265, %s267
      %p274 = scmp.eq.s32.totalorder %s32, 1
      %p275 = por %p273, %p274
      %p276 = scmp.ne.s32.totalorder %s267, %s268
      %p277 = scmp.eq.s32.totalorder %s32, 0
      %p278 = por %p276, %p277
      %p279 = scmp.ne.s32.totalorder %s267, %s268
      %p280 = scmp.eq.s32.totalorder %s33, 1
      %p281 = por %p279, %p280
      %p283 = scmp.ne.s32.totalorder %s268, %s282
      %p284 = scmp.eq.s32.totalorder %s33, 0
      %p285 = por %p283, %p284
      %s287 = sadd.s32 %s286, 1
      %p290 = scmp.eq.s32.totalorder %s27, 1
      %p291 = scmp.ne.s32.totalorder %s286, %s288
      %p292 = scmp.eq.s32.totalorder %s27, 0
      %p293 = por %p291, %p292
      %p294 = scmp.ne.s32.totalorder %s286, %s288
      %p295 = scmp.eq.s32.totalorder %s32, 1
      %p296 = por %p294, %p295
      %p297 = scmp.ne.s32.totalorder %s288, %s289
      %p298 = scmp.eq.s32.totalorder %s32, 0
      %p299 = por %p297, %p298
      %p300 = scmp.ne.s32.totalorder %s288, %s289
      %p301 = scmp.eq.s32.totalorder %s33, 1
      %p302 = por %p300, %p301
      %p304 = scmp.ne.s32.totalorder %s289, %s303
      %p305 = scmp.eq.s32.totalorder %s33, 0
      %p306 = por %p304, %p305
      %s308 = sadd.s32 %s307, 1
      %p311 = scmp.eq.s32.totalorder %s27, 1
      %p312 = scmp.ne.s32.totalorder %s307, %s309
      %p313 = scmp.eq.s32.totalorder %s27, 0
      %p314 = por %p312, %p313
      %p315 = scmp.ne.s32.totalorder %s307, %s309
      %p316 = scmp.eq.s32.totalorder %s32, 1
      %p317 = por %p315, %p316
      %p318 = scmp.ne.s32.totalorder %s309, %s310
      %p319 = scmp.eq.s32.totalorder %s32, 0
      %p320 = por %p318, %p319
      %p321 = scmp.ne.s32.totalorder %s309, %s310
      %p322 = scmp.eq.s32.totalorder %s33, 1
      %p323 = por %p321, %p322
      %p325 = scmp.ne.s32.totalorder %s310, %s324
      %p326 = scmp.eq.s32.totalorder %s33, 0
      %p327 = por %p325, %p326
      %s329 = sadd.s32 %s328, 1
      %p332 = scmp.eq.s32.totalorder %s27, 1
      %p333 = scmp.ne.s32.totalorder %s328, %s330
      %p334 = scmp.eq.s32.totalorder %s27, 0
      %p335 = por %p333, %p334
      %p336 = scmp.ne.s32.totalorder %s328, %s330
      %p337 = scmp.eq.s32.totalorder %s32, 1
      %p338 = por %p336, %p337
      %p339 = scmp.ne.s32.totalorder %s330, %s331
      %p340 = scmp.eq.s32.totalorder %s32, 0
      %p341 = por %p339, %p340
      %p342 = scmp.ne.s32.totalorder %s330, %s331
      %p343 = scmp.eq.s32.totalorder %s33, 1
      %p344 = por %p342, %p343
      %p346 = scmp.ne.s32.totalorder %s331, %s345
      %p347 = scmp.eq.s32.totalorder %s33, 0
      %p348 = por %p346, %p347
      %s350 = sadd.s32 %s349, 1
      %p353 = scmp.eq.s32.totalorder %s27, 1
      %p354 = scmp.ne.s32.totalorder %s349, %s351
      %p355 = scmp.eq.s32.totalorder %s27, 0
      %p356 = por %p354, %p355
      %p357 = scmp.ne.s32.totalorder %s349, %s351
      %p358 = scmp.eq.s32.totalorder %s32, 1
      %p359 = por %p357, %p358
      %p360 = scmp.ne.s32.totalorder %s351, %s352
      %p361 = scmp.eq.s32.totalorder %s32, 0
      %p362 = por %p360, %p361
      %p363 = scmp.ne.s32.totalorder %s351, %s352
      %p364 = scmp.eq.s32.totalorder %s33, 1
      %p365 = por %p363, %p364
      %p367 = scmp.ne.s32.totalorder %s352, %s366
      %p368 = scmp.eq.s32.totalorder %s33, 0
      %p369 = por %p367, %p368
      %s370 = ssub.s32 %s27, %s34
      %p371 = scmp.eq.s32.totalorder %s370, 0
      %s373 = sadd.s32 %s372, 1
      %s374 = scalar_select %p371, %s372, %s373
      %p377 = pneg %p371
      %p378 = scmp.eq.s32.totalorder %s27, 1
      %p379 = por %p377, %p378
      %p380 = scmp.ne.s32.totalorder %s372, %s375
      %p381 = scmp.eq.s32.totalorder %s27, 0
      %p382 = por %p380, %p381
      %p383 = scmp.ne.s32.totalorder %s372, %s375
      %p384 = scmp.eq.s32.totalorder %s32, 1
      %p385 = por %p383, %p384
      %p386 = scmp.ne.s32.totalorder %s375, %s376
      %p387 = scmp.eq.s32.totalorder %s32, 0
      %p388 = por %p386, %p387
      %p389 = scmp.ne.s32.totalorder %s375, %s376
      %p390 = scmp.eq.s32.totalorder %s33, 1
      %p391 = por %p389, %p390
      %p393 = scmp.ne.s32.totalorder %s376, %s392
      %p394 = scmp.eq.s32.totalorder %s33, 0
      %p395 = por %p393, %p394
      %p396 = scmp.le.s32.totalorder 1, %s27
      %p397 = scmp.lt.s32.totalorder %s27, 3
      %p398 = pnand %p396, %p397
      %p399 = pneg %p398
      // Predicated region
      $region9: #{tpu_custom_call.1} parent=5 // pred_check
        _
      $region10: #{tpu_custom_call.1} parent=5 // pred_check_branch
        %401 = sbr.rel (%p398) target = $region12
      $region11: #{tpu_custom_call.1} parent=5 // pred_region
        %s402 = ssub.s32 %s27, 1
        // Predicated region
        $region13: #{tpu_custom_call.1} parent=11 // pred_check
          %p403 = pneg %p152
        $region14: #{tpu_custom_call.1} parent=11 // pred_check_branch
          %405 = sbr.rel (%p403) target = $region16
        $region15: #{tpu_custom_call.1} parent=11 // pred_region
          _
        $region16: #{tpu_custom_call.1} parent=11 // pred_fallthru
          _
        // Predicated region
        $region17: #{tpu_custom_call.1} parent=11 // pred_check
          %p406 = pneg %p173
        $region18: #{tpu_custom_call.1} parent=11 // pred_check_branch
          %408 = sbr.rel (%p406) target = $region20
        $region19: #{tpu_custom_call.1} parent=11 // pred_region
          _
        $region20: #{tpu_custom_call.1} parent=11 // pred_fallthru
          _
        // Predicated region
        $region21: #{tpu_custom_call.1} parent=11 // pred_check
          %p409 = pneg %p194
        $region22: #{tpu_custom_call.1} parent=11 // pred_check_branch
          %411 = sbr.rel (%p409) target = $region24
        $region23: #{tpu_custom_call.1} parent=11 // pred_region
          _
        $region24: #{tpu_custom_call.1} parent=11 // pred_fallthru
          _
        // Predicated region
        $region25: #{tpu_custom_call.1} parent=11 // pred_check
          %p412 = pneg %p215
        $region26: #{tpu_custom_call.1} parent=11 // pred_check_branch
          %414 = sbr.rel (%p412) target = $region28
        $region27: #{tpu_custom_call.1} parent=11 // pred_region
          _
        $region28: #{tpu_custom_call.1} parent=11 // pred_fallthru
          _
        // Predicated region
        $region29: #{tpu_custom_call.1} parent=11 // pred_check
          %p415 = pneg %p236
        $region30: #{tpu_custom_call.1} parent=11 // pred_check_branch
          %417 = sbr.rel (%p415) target = $region32
        $region31: #{tpu_custom_call.1} parent=11 // pred_region
          _
        $region32: #{tpu_custom_call.1} parent=11 // pred_fallthru
          _
        // Predicated region
        $region33: #{tpu_custom_call.1} parent=11 // pred_check
          %p418 = pneg %p257
        $region34: #{tpu_custom_call.1} parent=11 // pred_check_branch
          %420 = sbr.rel (%p418) target = $region36
        $region35: #{tpu_custom_call.1} parent=11 // pred_region
          _
        $region36: #{tpu_custom_call.1} parent=11 // pred_fallthru
          _
        // Predicated region
        $region37: #{tpu_custom_call.1} parent=11 // pred_check
          %p421 = pneg %p278
        $region38: #{tpu_custom_call.1} parent=11 // pred_check_branch
          %423 = sbr.rel (%p421) target = $region40
        $region39: #{tpu_custom_call.1} parent=11 // pred_region
          _
        $region40: #{tpu_custom_call.1} parent=11 // pred_fallthru
          _
        // Predicated region
        $region41: #{tpu_custom_call.1} parent=11 // pred_check
          %p424 = pneg %p299
        $region42: #{tpu_custom_call.1} parent=11 // pred_check_branch
          %426 = sbr.rel (%p424) target = $region44
        $region43: #{tpu_custom_call.1} parent=11 // pred_region
          _
        $region44: #{tpu_custom_call.1} parent=11 // pred_fallthru
          _
        // Predicated region
        $region45: #{tpu_custom_call.1} parent=11 // pred_check
          %p427 = pneg %p320
        $region46: #{tpu_custom_call.1} parent=11 // pred_check_branch
          %429 = sbr.rel (%p427) target = $region48
        $region47: #{tpu_custom_call.1} parent=11 // pred_region
          _
        $region48: #{tpu_custom_call.1} parent=11 // pred_fallthru
          _
        // Predicated region
        $region49: #{tpu_custom_call.1} parent=11 // pred_check
          %p430 = pneg %p341
        $region50: #{tpu_custom_call.1} parent=11 // pred_check_branch
          %432 = sbr.rel (%p430) target = $region52
        $region51: #{tpu_custom_call.1} parent=11 // pred_region
          _
        $region52: #{tpu_custom_call.1} parent=11 // pred_fallthru
          _
        // Predicated region
        $region53: #{tpu_custom_call.1} parent=11 // pred_check
          %p433 = pneg %p362
        $region54: #{tpu_custom_call.1} parent=11 // pred_check_branch
          %435 = sbr.rel (%p433) target = $region56
        $region55: #{tpu_custom_call.1} parent=11 // pred_region
          _
        $region56: #{tpu_custom_call.1} parent=11 // pred_fallthru
          _
      $region12: #{tpu_custom_call.1} parent=5 // pred_fallthru
        _
      %p436 = scmp.lt.s32.totalorder %s27, 2
      // Predicated region
      $region57: #{tpu_custom_call.1} parent=5 // pred_check
        %p437 = pneg %p436
      $region58: #{tpu_custom_call.1} parent=5 // pred_check_branch
        %439 = sbr.rel (%p437) target = $region60
      $region59: #{tpu_custom_call.1} parent=5 // pred_region
        // Predicated region
        $region61: #{tpu_custom_call.1} parent=59 // pred_check
          %p440 = pneg %p47
        $region62: #{tpu_custom_call.1} parent=59 // pred_check_branch
          %442 = sbr.rel (%p440) target = $region64
        $region63: #{tpu_custom_call.1} parent=59 // pred_region
          %s443 = smul.u32 16, %s27
          %p444 = scmp.lt.s32.totalorder %s443, 31
          %s445 = scalar_select %p444, %s443, 31
          %s446 = smul.addr %s445, 6
          %s447 = smul.addr %s446, 4
          %s448 = scalar_lea.vmem %s0, %s447
          %s449 = smul.u32 16, %s27
        $region64: #{tpu_custom_call.1} parent=59 // pred_fallthru
          _
        // Predicated region
        $region65: #{tpu_custom_call.1} parent=59 // pred_check
          %p450 = pneg %p73
        $region66: #{tpu_custom_call.1} parent=59 // pred_check_branch
          %452 = sbr.rel (%p450) target = $region68
        $region67: #{tpu_custom_call.1} parent=59 // pred_region
          %s453 = sand.u32 %s63, 1
          %s454 = scalar_lea.sflag [#allocation3], %s453
          %s455 = sand.u32 %s63, 1
          %s456 = smul.addr %s455, 384
          %s457 = scalar_lea.vmem [#allocation2], %s456
          %s458 = smul.u32 16, %s27
          %s460 = ssub.s32 6144, 6144
          %461 = vsyncadd %s454, %s460
          %s462 = smul.addr %s458, 6
          %s463 = smul.addr %s462, 64
          %s464 = scalar_lea.hbm %s1, %s463
          %s465 = sshll.u32 %s457, 4
          %s466 = int_to_ptr.vmem [resolvable:$true] %s465
          %471 = dma.hbm_to_vmem [thread:$0]  %s464, 6144, %s466, %s454, 384, 384, 24
        $region68: #{tpu_custom_call.1} parent=59 // pred_fallthru
          _
        // Predicated region
        $region69: #{tpu_custom_call.1} parent=59 // pred_check
          %p472 = pneg %p99
        $region70: #{tpu_custom_call.1} parent=59 // pred_check_branch
          %474 = sbr.rel (%p472) target = $region72
        $region71: #{tpu_custom_call.1} parent=59 // pred_region
          %s475 = smul.u32 16, %s27
          %p476 = scmp.lt.s32.totalorder %s475, 31
          %s477 = scalar_select %p476, %s475, 31
          %s478 = smul.addr %s477, 4
          %s479 = scalar_lea.vmem %s2, %s478
          %s480 = smul.u32 16, %s27
        $region72: #{tpu_custom_call.1} parent=59 // pred_fallthru
          _
        // Predicated region
        $region73: #{tpu_custom_call.1} parent=59 // pred_check
          %p481 = pneg %p125
        $region74: #{tpu_custom_call.1} parent=59 // pred_check_branch
          %483 = sbr.rel (%p481) target = $region76
        $region75: #{tpu_custom_call.1} parent=59 // pred_region
          %s484 = smul.u32 16, %s27
          %p485 = scmp.lt.s32.totalorder %s484, 31
          %s486 = scalar_select %p485, %s484, 31
          %s487 = smul.addr %s486, 8
          %s488 = scalar_lea.vmem %s3, %s487
          %s489 = smul.u32 16, %s27
        $region76: #{tpu_custom_call.1} parent=59 // pred_fallthru
          _
      $region60: #{tpu_custom_call.1} parent=5 // pred_fallthru
        _
      %p490 = scmp.le.s32.totalorder 1, %s27
      %p491 = scmp.lt.s32.totalorder %s27, 3
      %p492 = pnand %p490, %p491
      %p493 = pneg %p492
      // Predicated region
      $region77: #{tpu_custom_call.1} parent=5 // pred_check
        _
      $region78: #{tpu_custom_call.1} parent=5 // pred_check_branch
        %495 = sbr.rel (%p492) target = $region80
      $region79: #{tpu_custom_call.1} parent=5 // pred_region
        %s496 = ssub.s32 %s27, 1
        %s497 = sand.u32 %s66, 1
        %s498 = scalar_lea.sflag [#allocation3], %s497
        %s499 = sand.u32 %s66, 1
        %s500 = smul.addr %s499, 384
        %s501 = scalar_lea.vmem [#allocation2], %s500
        // Predicated region
        $region81: #{tpu_custom_call.1} parent=79 // pred_check
          %p502 = pneg %p79
        $region82: #{tpu_custom_call.1} parent=79 // pred_check_branch
          %504 = sbr.rel (%p502) target = $region84
        $region83: #{tpu_custom_call.1} parent=79 // pred_region
          %505 = dma.done %s498, 6144
        $region84: #{tpu_custom_call.1} parent=79 // pred_fallthru
          _
        %s506 = smul.u32 16, %s32
        %p507 = scmp.lt.s32.totalorder %s506, 31
        %s508 = scalar_select %p507, %s506, 31
        %s509 = smul.addr %s508, 6
        %s510 = smul.addr %s509, 4
        %s511 = scalar_lea.vmem %s0, %s510
        %p512 = pneg %p53
        %p513 = pneg %p50
        %s514 = sand.u32 %s66, 1
        %s515 = scalar_lea.sflag [#allocation3], %s514
        %s516 = sand.u32 %s66, 1
        %s517 = smul.addr %s516, 384
        %s518 = scalar_lea.vmem [#allocation2], %s517
        %p519 = pneg %p79
        %p520 = pneg %p76
        %s521 = smul.u32 16, %s32
        %p522 = scmp.lt.s32.totalorder %s521, 31
        %s523 = scalar_select %p522, %s521, 31
        %s524 = smul.addr %s523, 4
        %s525 = scalar_lea.vmem %s2, %s524
        %p526 = pneg %p105
        %p527 = pneg %p102
        %s528 = smul.u32 16, %s32
        %p529 = scmp.lt.s32.totalorder %s528, 31
        %s530 = scalar_select %p529, %s528, 31
        %s531 = smul.addr %s530, 8
        %s532 = scalar_lea.vmem %s3, %s531
        %p533 = pneg %p131
        %p534 = pneg %p128
        %p535 = pneg %p152
        %p536 = pneg %p149
        %p537 = pneg %p173
        %p538 = pneg %p170
        %p539 = pneg %p194
        %p540 = pneg %p191
        %p541 = pneg %p215
        %p542 = pneg %p212
        %p543 = pneg %p236
        %p544 = pneg %p233
        %p545 = pneg %p257
        %p546 = pneg %p254
        %p547 = pneg %p278
        %p548 = pneg %p275
        %p549 = pneg %p299
        %p550 = pneg %p296
        %p551 = pneg %p320
        %p552 = pneg %p317
        %p553 = pneg %p341
        %p554 = pneg %p338
        %p555 = pneg %p362
        %p556 = pneg %p359
        %p557 = pneg %p388
        %p558 = pneg %p385
        %s559 = sand.u32 %s375, 1
        %s560 = scalar_lea.sflag [#allocation4], %s559
        %s561 = sand.u32 %s375, 1
        %s562 = smul.addr %s561, 64
        %s563 = scalar_lea.vmem [#allocation5], %s562
        %s564 = smul.u32 16, %s32
        %p565 = scmp.lt.s32.totalorder %s564, 31
        %s566 = scalar_select %p565, %s564, 31
        %s567 = smul.addr %s566, 6
        %s568 = smul.addr %s567, 4
        %s569 = scalar_lea.vmem %s0, %s568
        %s570 = smul.u32 16, %s32
        %s571 = smul.u32 16, %s32
        %s572 = smul.u32 16, %s32
        %p573 = scmp.lt.s32.totalorder %s572, 31
        %s574 = scalar_select %p573, %s572, 31
        %s575 = smul.addr %s574, 4
        %s576 = scalar_lea.vmem %s2, %s575
        %s577 = smul.u32 16, %s32
        %s578 = smul.u32 16, %s32
        %p579 = scmp.lt.s32.totalorder %s578, 31
        %s580 = scalar_select %p579, %s578, 31
        %s581 = smul.addr %s580, 8
        %s582 = scalar_lea.vmem %s3, %s581
        %s583 = smul.u32 16, %s32
        %s584 = smul.u32 16, %s32
        %v586 = vld [vmem:[%s569] sm:$0xff]
        %v587 = vld [vmem:[%s569 + $0x8] sm:$0xff]
        %v588 = vld [vmem:[%s569 + $0x10] sm:$0xff]
        %v589 = vld [vmem:[%s569 + $0x18] sm:$0xff]
        %v590 = vld [vmem:[%s569 + $0x20] sm:$0xff]
        %v591 = vld [vmem:[%s569 + $0x28] sm:$0xff]
        %v592 = vld [vmem:[%s569 + $0x30] sm:$0xff]
        %v593 = vld [vmem:[%s569 + $0x38] sm:$0xff]
        %v594 = vld [vmem:[%s569 + $0x40] sm:$0xff]
        %v595 = vld [vmem:[%s569 + $0x48] sm:$0xff]
        %v596 = vld [vmem:[%s569 + $0x50] sm:$0xff]
        %v597 = vld [vmem:[%s569 + $0x58] sm:$0xff]
        %v598 = vld [vmem:[%s569 + $0x60] sm:$0xff]
        %v599 = vld [vmem:[%s569 + $0x68] sm:$0xff]
        %v600 = vld [vmem:[%s569 + $0x70] sm:$0xff]
        %v601 = vld [vmem:[%s569 + $0x78] sm:$0xff]
        %v602 = vld [vmem:[%s569 + $0x80] sm:$0xff]
        %v603 = vld [vmem:[%s569 + $0x88] sm:$0xff]
        %v604 = vld [vmem:[%s569 + $0x90] sm:$0xff]
        %v605 = vld [vmem:[%s569 + $0x98] sm:$0xff]
        %v606 = vld [vmem:[%s569 + $0xa0] sm:$0xff]
        %v607 = vld [vmem:[%s569 + $0xa8] sm:$0xff]
        %v608 = vld [vmem:[%s569 + $0xb0] sm:$0xff]
        %v609 = vld [vmem:[%s569 + $0xb8] sm:$0xff]
        %v610 = vld [vmem:[%s569 + $0xc0] sm:$0xff]
        %v611 = vld [vmem:[%s569 + $0xc8] sm:$0xff]
        %v612 = vld [vmem:[%s569 + $0xd0] sm:$0xff]
        %v613 = vld [vmem:[%s569 + $0xd8] sm:$0xff]
        %v614 = vld [vmem:[%s569 + $0xe0] sm:$0xff]
        %v615 = vld [vmem:[%s569 + $0xe8] sm:$0xff]
        %v616 = vld [vmem:[%s569 + $0xf0] sm:$0xff]
        %v617 = vld [vmem:[%s569 + $0xf8] sm:$0xff]
        %v618 = vld [vmem:[%s569 + $0x100] sm:$0xff]
        %v619 = vld [vmem:[%s569 + $0x108] sm:$0xff]
        %v620 = vld [vmem:[%s569 + $0x110] sm:$0xff]
        %v621 = vld [vmem:[%s569 + $0x118] sm:$0xff]
        %v622 = vld [vmem:[%s569 + $0x120] sm:$0xff]
        %v623 = vld [vmem:[%s569 + $0x128] sm:$0xff]
        %v624 = vld [vmem:[%s569 + $0x130] sm:$0xff]
        %v625 = vld [vmem:[%s569 + $0x138] sm:$0xff]
        %v626 = vld [vmem:[%s569 + $0x140] sm:$0xff]
        %v627 = vld [vmem:[%s569 + $0x148] sm:$0xff]
        %v628 = vld [vmem:[%s569 + $0x150] sm:$0xff]
        %v629 = vld [vmem:[%s569 + $0x158] sm:$0xff]
        %v630 = vld [vmem:[%s569 + $0x160] sm:$0xff]
        %v631 = vld [vmem:[%s569 + $0x168] sm:$0xff]
        %v632 = vld [vmem:[%s569 + $0x170] sm:$0xff]
        %v633 = vld [vmem:[%s569 + $0x178] sm:$0xff]
        %v634 = vld [vmem:[%s4] sm:$0xf]
        %v635 = vld [vmem:[%s4 + $0x4] sm:$0xf]
        %v636 = vld [vmem:[%s4 + $0x8] sm:$0xf]
        %v637 = vld [vmem:[%s4 + $0xc] sm:$0xf]
        %v638 = vld [vmem:[%s4 + $0x10] sm:$0xf]
        %v639 = vld [vmem:[%s4 + $0x14] sm:$0xf]
        %v640 = vld [vmem:[%s4 + $0x18] sm:$0xf]
        %v641 = vld [vmem:[%s4 + $0x1c] sm:$0xf]
        %v642 = vld [vmem:[%s4 + $0x20] sm:$0xf]
        %v643 = vld [vmem:[%s4 + $0x24] sm:$0xf]
        %v644 = vld [vmem:[%s4 + $0x28] sm:$0xf]
        %v645 = vld [vmem:[%s4 + $0x2c] sm:$0xf]
        %v646 = vld [vmem:[%s4 + $0x30] sm:$0xf]
        %v647 = vld [vmem:[%s4 + $0x34] sm:$0xf]
        %v648 = vld [vmem:[%s4 + $0x38] sm:$0xf]
        %v649 = vld [vmem:[%s4 + $0x3c] sm:$0xf]
        %v650 = vld [vmem:[%s4 + $0x40] sm:$0xf]
        %v651 = vld [vmem:[%s4 + $0x44] sm:$0xf]
        %v652 = vld [vmem:[%s4 + $0x48] sm:$0xf]
        %v653 = vld [vmem:[%s4 + $0x4c] sm:$0xf]
        %v654 = vld [vmem:[%s4 + $0x50] sm:$0xf]
        %v655 = vld [vmem:[%s4 + $0x54] sm:$0xf]
        %v656 = vld [vmem:[%s4 + $0x58] sm:$0xf]
        %v657 = vld [vmem:[%s4 + $0x5c] sm:$0xf]
        %v658 = vld [vmem:[%s4 + $0x60] sm:$0xf]
        %v659 = vld [vmem:[%s4 + $0x64] sm:$0xf]
        %v660 = vld [vmem:[%s4 + $0x68] sm:$0xf]
        %v661 = vld [vmem:[%s4 + $0x6c] sm:$0xf]
        %v662 = vld [vmem:[%s4 + $0x70] sm:$0xf]
        %v663 = vld [vmem:[%s4 + $0x74] sm:$0xf]
        %v664 = vld [vmem:[%s4 + $0x78] sm:$0xf]
        %v665 = vld [vmem:[%s4 + $0x7c] sm:$0xf]
        %v666 = vld [vmem:[%s4 + $0x80] sm:$0xf]
        %v667 = vld [vmem:[%s4 + $0x84] sm:$0xf]
        %v668 = vld [vmem:[%s4 + $0x88] sm:$0xf]
        %v669 = vld [vmem:[%s4 + $0x8c] sm:$0xf]
        %v670 = vld [vmem:[%s4 + $0x90] sm:$0xf]
        %v671 = vld [vmem:[%s4 + $0x94] sm:$0xf]
        %v672 = vld [vmem:[%s4 + $0x98] sm:$0xf]
        %v673 = vld [vmem:[%s4 + $0x9c] sm:$0xf]
        %v674 = vld [vmem:[%s4 + $0xa0] sm:$0xf]
        %v675 = vld [vmem:[%s4 + $0xa4] sm:$0xf]
        %v676 = vld [vmem:[%s4 + $0xa8] sm:$0xf]
        %v677 = vld [vmem:[%s4 + $0xac] sm:$0xf]
        %v678 = vld [vmem:[%s4 + $0xb0] sm:$0xf]
        %v679 = vld [vmem:[%s4 + $0xb4] sm:$0xf]
        %v680 = vld [vmem:[%s4 + $0xb8] sm:$0xf]
        %v681 = vld [vmem:[%s4 + $0xbc] sm:$0xf]
        %v682 = vld [vmem:[%s4 + $0xc0] sm:$0xf]
        %v683 = vld [vmem:[%s4 + $0xc4] sm:$0xf]
        %v684 = vld [vmem:[%s4 + $0xc8] sm:$0xf]
        %v685 = vld [vmem:[%s4 + $0xcc] sm:$0xf]
        %v686 = vld [vmem:[%s4 + $0xd0] sm:$0xf]
        %v687 = vld [vmem:[%s4 + $0xd4] sm:$0xf]
        %v688 = vld [vmem:[%s4 + $0xd8] sm:$0xf]
        %v689 = vld [vmem:[%s4 + $0xdc] sm:$0xf]
        %v690 = vld [vmem:[%s4 + $0xe0] sm:$0xf]
        %v691 = vld [vmem:[%s4 + $0xe4] sm:$0xf]
        %v692 = vld [vmem:[%s4 + $0xe8] sm:$0xf]
        %v693 = vld [vmem:[%s4 + $0xec] sm:$0xf]
        %v694 = vld [vmem:[%s4 + $0xf0] sm:$0xf]
        %v695 = vld [vmem:[%s4 + $0xf4] sm:$0xf]
        %v696 = vld [vmem:[%s4 + $0xf8] sm:$0xf]
        %v697 = vld [vmem:[%s4 + $0xfc] sm:$0xf]
        %v698 = vld [vmem:[%s4 + $0x100] sm:$0xf]
        %v699 = vld [vmem:[%s4 + $0x104] sm:$0xf]
        %v700 = vld [vmem:[%s4 + $0x108] sm:$0xf]
        %v701 = vld [vmem:[%s4 + $0x10c] sm:$0xf]
        %v702 = vld [vmem:[%s4 + $0x110] sm:$0xf]
        %v703 = vld [vmem:[%s4 + $0x114] sm:$0xf]
        %v704 = vld [vmem:[%s4 + $0x118] sm:$0xf]
        %v705 = vld [vmem:[%s4 + $0x11c] sm:$0xf]
        %v706 = vld [vmem:[%s4 + $0x120] sm:$0xf]
        %v707 = vld [vmem:[%s4 + $0x124] sm:$0xf]
        %v708 = vld [vmem:[%s4 + $0x128] sm:$0xf]
        %v709 = vld [vmem:[%s4 + $0x12c] sm:$0xf]
        %v710 = vld [vmem:[%s4 + $0x130] sm:$0xf]
        %v711 = vld [vmem:[%s4 + $0x134] sm:$0xf]
        %v712 = vld [vmem:[%s4 + $0x138] sm:$0xf]
        %v713 = vld [vmem:[%s4 + $0x13c] sm:$0xf]
        %v714 = vld [vmem:[%s4 + $0x140] sm:$0xf]
        %v715 = vld [vmem:[%s4 + $0x144] sm:$0xf]
        %v716 = vld [vmem:[%s4 + $0x148] sm:$0xf]
        %v717 = vld [vmem:[%s4 + $0x14c] sm:$0xf]
        %v718 = vld [vmem:[%s4 + $0x150] sm:$0xf]
        %v719 = vld [vmem:[%s4 + $0x154] sm:$0xf]
        %v720 = vld [vmem:[%s4 + $0x158] sm:$0xf]
        %v721 = vld [vmem:[%s4 + $0x15c] sm:$0xf]
        %v722 = vld [vmem:[%s4 + $0x160] sm:$0xf]
        %v723 = vld [vmem:[%s4 + $0x164] sm:$0xf]
        %v724 = vld [vmem:[%s4 + $0x168] sm:$0xf]
        %v725 = vld [vmem:[%s4 + $0x16c] sm:$0xf]
        %v726 = vld [vmem:[%s4 + $0x170] sm:$0xf]
        %v727 = vld [vmem:[%s4 + $0x174] sm:$0xf]
        %v728 = vld [vmem:[%s4 + $0x178] sm:$0xf]
        %v729 = vld [vmem:[%s4 + $0x17c] sm:$0xf]
        %v730 = vld [vmem:[%s5] sm:$0x1]
        %v732 = vlaneseq
        %v733 = vshrl.u32 %v732, 7
        %v734 = vsub.s32 0, %v733
        %v735 = vrot.slane %v730, %v734
        %v785 = vunpack.c.l.b16 %v586
        %v786 = vunpack.c.h.b16 %v586
        %v787 = vunpack.c.l.b16 %v587
        %v788 = vunpack.c.h.b16 %v587
        %v789 = vunpack.c.l.b16 %v588
        %v790 = vunpack.c.h.b16 %v588
        %v791 = vunpack.c.l.b16 %v589
        %v792 = vunpack.c.h.b16 %v589
        %v793 = vunpack.c.l.b16 %v590
        %v794 = vunpack.c.h.b16 %v590
        %v795 = vunpack.c.l.b16 %v591
        %v796 = vunpack.c.h.b16 %v591
        %v797 = vunpack.c.l.b16 %v592
        %v798 = vunpack.c.h.b16 %v592
        %v799 = vunpack.c.l.b16 %v593
        %v800 = vunpack.c.h.b16 %v593
        %v801 = vunpack.c.l.b16 %v594
        %v802 = vunpack.c.h.b16 %v594
        %v803 = vunpack.c.l.b16 %v595
        %v804 = vunpack.c.h.b16 %v595
        %v805 = vunpack.c.l.b16 %v596
        %v806 = vunpack.c.h.b16 %v596
        %v807 = vunpack.c.l.b16 %v597
        %v808 = vunpack.c.h.b16 %v597
        %v809 = vunpack.c.l.b16 %v598
        %v810 = vunpack.c.h.b16 %v598
        %v811 = vunpack.c.l.b16 %v599
        %v812 = vunpack.c.h.b16 %v599
        %v813 = vunpack.c.l.b16 %v600
        %v814 = vunpack.c.h.b16 %v600
        %v815 = vunpack.c.l.b16 %v601
        %v816 = vunpack.c.h.b16 %v601
        %v817 = vunpack.c.l.b16 %v602
        %v818 = vunpack.c.h.b16 %v602
        %v819 = vunpack.c.l.b16 %v603
        %v820 = vunpack.c.h.b16 %v603
        %v821 = vunpack.c.l.b16 %v604
        %v822 = vunpack.c.h.b16 %v604
        %v823 = vunpack.c.l.b16 %v605
        %v824 = vunpack.c.h.b16 %v605
        %v825 = vunpack.c.l.b16 %v606
        %v826 = vunpack.c.h.b16 %v606
        %v827 = vunpack.c.l.b16 %v607
        %v828 = vunpack.c.h.b16 %v607
        %v829 = vunpack.c.l.b16 %v608
        %v830 = vunpack.c.h.b16 %v608
        %v831 = vunpack.c.l.b16 %v609
        %v832 = vunpack.c.h.b16 %v609
        %v833 = vunpack.c.l.b16 %v610
        %v834 = vunpack.c.h.b16 %v610
        %v835 = vunpack.c.l.b16 %v611
        %v836 = vunpack.c.h.b16 %v611
        %v837 = vunpack.c.l.b16 %v612
        %v838 = vunpack.c.h.b16 %v612
        %v839 = vunpack.c.l.b16 %v613
        %v840 = vunpack.c.h.b16 %v613
        %v841 = vunpack.c.l.b16 %v614
        %v842 = vunpack.c.h.b16 %v614
        %v843 = vunpack.c.l.b16 %v615
        %v844 = vunpack.c.h.b16 %v615
        %v845 = vunpack.c.l.b16 %v616
        %v846 = vunpack.c.h.b16 %v616
        %v847 = vunpack.c.l.b16 %v617
        %v848 = vunpack.c.h.b16 %v617
        %v849 = vunpack.c.l.b16 %v618
        %v850 = vunpack.c.h.b16 %v618
        %v851 = vunpack.c.l.b16 %v619
        %v852 = vunpack.c.h.b16 %v619
        %v853 = vunpack.c.l.b16 %v620
        %v854 = vunpack.c.h.b16 %v620
        %v855 = vunpack.c.l.b16 %v621
        %v856 = vunpack.c.h.b16 %v621
        %v857 = vunpack.c.l.b16 %v622
        %v858 = vunpack.c.h.b16 %v622
        %v859 = vunpack.c.l.b16 %v623
        %v860 = vunpack.c.h.b16 %v623
        %v861 = vunpack.c.l.b16 %v624
        %v862 = vunpack.c.h.b16 %v624
        %v863 = vunpack.c.l.b16 %v625
        %v864 = vunpack.c.h.b16 %v625
        %v865 = vunpack.c.l.b16 %v626
        %v866 = vunpack.c.h.b16 %v626
        %v867 = vunpack.c.l.b16 %v627
        %v868 = vunpack.c.h.b16 %v627
        %v869 = vunpack.c.l.b16 %v628
        %v870 = vunpack.c.h.b16 %v628
        %v871 = vunpack.c.l.b16 %v629
        %v872 = vunpack.c.h.b16 %v629
        %v873 = vunpack.c.l.b16 %v630
        %v874 = vunpack.c.h.b16 %v630
        %v875 = vunpack.c.l.b16 %v631
        %v876 = vunpack.c.h.b16 %v631
        %v877 = vunpack.c.l.b16 %v632
        %v878 = vunpack.c.h.b16 %v632
        %v879 = vunpack.c.l.b16 %v633
        %v880 = vunpack.c.h.b16 %v633
        %v881 = vpack.c.b16 %v791, %v785
        %v882 = vpack.c.b16 %v792, %v786
        %v883 = vpack.c.b16 %v793, %v787
        %v884 = vpack.c.b16 %v794, %v788
        %v885 = vpack.c.b16 %v795, %v789
        %v886 = vpack.c.b16 %v796, %v790
        %v887 = vpack.c.b16 %v803, %v797
        %v888 = vpack.c.b16 %v804, %v798
        %v889 = vpack.c.b16 %v805, %v799
        %v890 = vpack.c.b16 %v806, %v800
        %v891 = vpack.c.b16 %v807, %v801
        %v892 = vpack.c.b16 %v808, %v802
        %v893 = vpack.c.b16 %v815, %v809
        %v894 = vpack.c.b16 %v816, %v810
        %v895 = vpack.c.b16 %v817, %v811
        %v896 = vpack.c.b16 %v818, %v812
        %v897 = vpack.c.b16 %v819, %v813
        %v898 = vpack.c.b16 %v820, %v814
        %v899 = vpack.c.b16 %v827, %v821
        %v900 = vpack.c.b16 %v828, %v822
        %v901 = vpack.c.b16 %v829, %v823
        %v902 = vpack.c.b16 %v830, %v824
        %v903 = vpack.c.b16 %v831, %v825
        %v904 = vpack.c.b16 %v832, %v826
        %v905 = vpack.c.b16 %v839, %v833
        %v906 = vpack.c.b16 %v840, %v834
        %v907 = vpack.c.b16 %v841, %v835
        %v908 = vpack.c.b16 %v842, %v836
        %v909 = vpack.c.b16 %v843, %v837
        %v910 = vpack.c.b16 %v844, %v838
        %v911 = vpack.c.b16 %v851, %v845
        %v912 = vpack.c.b16 %v852, %v846
        %v913 = vpack.c.b16 %v853, %v847
        %v914 = vpack.c.b16 %v854, %v848
        %v915 = vpack.c.b16 %v855, %v849
        %v916 = vpack.c.b16 %v856, %v850
        %v917 = vpack.c.b16 %v863, %v857
        %v918 = vpack.c.b16 %v864, %v858
        %v919 = vpack.c.b16 %v865, %v859
        %v920 = vpack.c.b16 %v866, %v860
        %v921 = vpack.c.b16 %v867, %v861
        %v922 = vpack.c.b16 %v868, %v862
        %v923 = vpack.c.b16 %v875, %v869
        %v924 = vpack.c.b16 %v876, %v870
        %v925 = vpack.c.b16 %v877, %v871
        %v926 = vpack.c.b16 %v878, %v872
        %v927 = vpack.c.b16 %v879, %v873
        %v928 = vpack.c.b16 %v880, %v874
        %v1073 = vunpack.c.l.b16 %v634
        %v1074 = vunpack.c.l.b16 %v635
        %v1075 = vunpack.c.l.b16 %v636
        %v1076 = vunpack.c.l.b16 %v637
        %v1077 = vunpack.c.l.b16 %v638
        %v1078 = vunpack.c.l.b16 %v639
        %v1079 = vunpack.c.l.b16 %v640
        %v1080 = vunpack.c.l.b16 %v641
        %v1081 = vunpack.c.l.b16 %v642
        %v1082 = vunpack.c.l.b16 %v643
        %v1083 = vunpack.c.l.b16 %v644
        %v1084 = vunpack.c.l.b16 %v645
        %v1085 = vunpack.c.l.b16 %v646
        %v1086 = vunpack.c.l.b16 %v647
        %v1087 = vunpack.c.l.b16 %v648
        %v1088 = vunpack.c.l.b16 %v649
        %v1089 = vunpack.c.l.b16 %v650
        %v1090 = vunpack.c.l.b16 %v651
        %v1091 = vunpack.c.l.b16 %v652
        %v1092 = vunpack.c.l.b16 %v653
        %v1093 = vunpack.c.l.b16 %v654
        %v1094 = vunpack.c.l.b16 %v655
        %v1095 = vunpack.c.l.b16 %v656
        %v1096 = vunpack.c.l.b16 %v657
        %v1097 = vunpack.c.l.b16 %v658
        %v1098 = vunpack.c.l.b16 %v659
        %v1099 = vunpack.c.l.b16 %v660
        %v1100 = vunpack.c.l.b16 %v661
        %v1101 = vunpack.c.l.b16 %v662
        %v1102 = vunpack.c.l.b16 %v663
        %v1103 = vunpack.c.l.b16 %v664
        %v1104 = vunpack.c.l.b16 %v665
        %v1105 = vunpack.c.l.b16 %v666
        %v1106 = vunpack.c.l.b16 %v667
        %v1107 = vunpack.c.l.b16 %v668
        %v1108 = vunpack.c.l.b16 %v669
        %v1109 = vunpack.c.l.b16 %v670
        %v1110 = vunpack.c.l.b16 %v671
        %v1111 = vunpack.c.l.b16 %v672
        %v1112 = vunpack.c.l.b16 %v673
        %v1113 = vunpack.c.l.b16 %v674
        %v1114 = vunpack.c.l.b16 %v675
        %v1115 = vunpack.c.l.b16 %v676
        %v1116 = vunpack.c.l.b16 %v677
        %v1117 = vunpack.c.l.b16 %v678
        %v1118 = vunpack.c.l.b16 %v679
        %v1119 = vunpack.c.l.b16 %v680
        %v1120 = vunpack.c.l.b16 %v681
        %v1121 = vunpack.c.l.b16 %v682
        %v1122 = vunpack.c.l.b16 %v683
        %v1123 = vunpack.c.l.b16 %v684
        %v1124 = vunpack.c.l.b16 %v685
        %v1125 = vunpack.c.l.b16 %v686
        %v1126 = vunpack.c.l.b16 %v687
        %v1127 = vunpack.c.l.b16 %v688
        %v1128 = vunpack.c.l.b16 %v689
        %v1129 = vunpack.c.l.b16 %v690
        %v1130 = vunpack.c.l.b16 %v691
        %v1131 = vunpack.c.l.b16 %v692
        %v1132 = vunpack.c.l.b16 %v693
        %v1133 = vunpack.c.l.b16 %v694
        %v1134 = vunpack.c.l.b16 %v695
        %v1135 = vunpack.c.l.b16 %v696
        %v1136 = vunpack.c.l.b16 %v697
        %v1137 = vunpack.c.l.b16 %v698
        %v1138 = vunpack.c.l.b16 %v699
        %v1139 = vunpack.c.l.b16 %v700
        %v1140 = vunpack.c.l.b16 %v701
        %v1141 = vunpack.c.l.b16 %v702
        %v1142 = vunpack.c.l.b16 %v703
        %v1143 = vunpack.c.l.b16 %v704
        %v1144 = vunpack.c.l.b16 %v705
        %v1145 = vunpack.c.l.b16 %v706
        %v1146 = vunpack.c.l.b16 %v707
        %v1147 = vunpack.c.l.b16 %v708
        %v1148 = vunpack.c.l.b16 %v709
        %v1149 = vunpack.c.l.b16 %v710
        %v1150 = vunpack.c.l.b16 %v711
        %v1151 = vunpack.c.l.b16 %v712
        %v1152 = vunpack.c.l.b16 %v713
        %v1153 = vunpack.c.l.b16 %v714
        %v1154 = vunpack.c.l.b16 %v715
        %v1155 = vunpack.c.l.b16 %v716
        %v1156 = vunpack.c.l.b16 %v717
        %v1157 = vunpack.c.l.b16 %v718
        %v1158 = vunpack.c.l.b16 %v719
        %v1159 = vunpack.c.l.b16 %v720
        %v1160 = vunpack.c.l.b16 %v721
        %v1161 = vunpack.c.l.b16 %v722
        %v1162 = vunpack.c.l.b16 %v723
        %v1163 = vunpack.c.l.b16 %v724
        %v1164 = vunpack.c.l.b16 %v725
        %v1165 = vunpack.c.l.b16 %v726
        %v1166 = vunpack.c.l.b16 %v727
        %v1167 = vunpack.c.l.b16 %v728
        %v1168 = vunpack.c.l.b16 %v729
        %v1169 = vpack.c.b16 %v1074, %v1073
        %v1170 = vpack.c.b16 %v1076, %v1075
        %v1171 = vpack.c.b16 %v1078, %v1077
        %v1172 = vpack.c.b16 %v1080, %v1079
        %v1173 = vpack.c.b16 %v1082, %v1081
        %v1174 = vpack.c.b16 %v1084, %v1083
        %v1175 = vpack.c.b16 %v1086, %v1085
        %v1176 = vpack.c.b16 %v1088, %v1087
        %v1177 = vpack.c.b16 %v1090, %v1089
        %v1178 = vpack.c.b16 %v1092, %v1091
        %v1179 = vpack.c.b16 %v1094, %v1093
        %v1180 = vpack.c.b16 %v1096, %v1095
        %v1181 = vpack.c.b16 %v1098, %v1097
        %v1182 = vpack.c.b16 %v1100, %v1099
        %v1183 = vpack.c.b16 %v1102, %v1101
        %v1184 = vpack.c.b16 %v1104, %v1103
        %v1185 = vpack.c.b16 %v1106, %v1105
        %v1186 = vpack.c.b16 %v1108, %v1107
        %v1187 = vpack.c.b16 %v1110, %v1109
        %v1188 = vpack.c.b16 %v1112, %v1111
        %v1189 = vpack.c.b16 %v1114, %v1113
        %v1190 = vpack.c.b16 %v1116, %v1115
        %v1191 = vpack.c.b16 %v1118, %v1117
        %v1192 = vpack.c.b16 %v1120, %v1119
        %v1193 = vpack.c.b16 %v1122, %v1121
        %v1194 = vpack.c.b16 %v1124, %v1123
        %v1195 = vpack.c.b16 %v1126, %v1125
        %v1196 = vpack.c.b16 %v1128, %v1127
        %v1197 = vpack.c.b16 %v1130, %v1129
        %v1198 = vpack.c.b16 %v1132, %v1131
        %v1199 = vpack.c.b16 %v1134, %v1133
        %v1200 = vpack.c.b16 %v1136, %v1135
        %v1201 = vpack.c.b16 %v1138, %v1137
        %v1202 = vpack.c.b16 %v1140, %v1139
        %v1203 = vpack.c.b16 %v1142, %v1141
        %v1204 = vpack.c.b16 %v1144, %v1143
        %v1205 = vpack.c.b16 %v1146, %v1145
        %v1206 = vpack.c.b16 %v1148, %v1147
        %v1207 = vpack.c.b16 %v1150, %v1149
        %v1208 = vpack.c.b16 %v1152, %v1151
        %v1209 = vpack.c.b16 %v1154, %v1153
        %v1210 = vpack.c.b16 %v1156, %v1155
        %v1211 = vpack.c.b16 %v1158, %v1157
        %v1212 = vpack.c.b16 %v1160, %v1159
        %v1213 = vpack.c.b16 %v1162, %v1161
        %v1214 = vpack.c.b16 %v1164, %v1163
        %v1215 = vpack.c.b16 %v1166, %v1165
        %v1216 = vpack.c.b16 %v1168, %v1167
        %1265 = vmatprep.subr.bf16.mxu0 0
        %1266 = vmatpush1.bf16.msra.mxu0 %v1169
        %1267 = vmatprep.subr.bf16.mxu0 0
        %1268 = vmatpush1.bf16.msra.mxu0 %v1170
        %1269 = vmatprep.subr.bf16.mxu0 0
        %1270 = vmatpush1.bf16.msra.mxu0 %v1171
        %1271 = vmatprep.subr.bf16.mxu0 0
        %1272 = vmatpush1.bf16.msra.mxu0 %v1172
        %1273 = vmatprep.subr.bf16.mxu0 0
        %1274 = vmatpush1.bf16.msra.mxu0 %v1173
        %1275 = vmatprep.subr.bf16.mxu0 0
        %1276 = vmatpush1.bf16.msra.mxu0 %v1174
        %1277 = vmatprep.subr.bf16.mxu0 0
        %1278 = vmatpush1.bf16.msra.mxu0 %v1175
        %1279 = vmatprep.subr.bf16.mxu0 0
        %1280 = vmatpush1.bf16.msra.mxu0 %v1176
        %1281 = vmatprep.subr.bf16.mxu0 0
        %1282 = vmatpush1.bf16.msra.mxu0 %v1177
        %1283 = vmatprep.subr.bf16.mxu0 0
        %1284 = vmatpush1.bf16.msra.mxu0 %v1178
        %1285 = vmatprep.subr.bf16.mxu0 0
        %1286 = vmatpush1.bf16.msra.mxu0 %v1179
        %1287 = vmatprep.subr.bf16.mxu0 0
        %1288 = vmatpush1.bf16.msra.mxu0 %v1180
        %1289 = vmatprep.subr.bf16.mxu0 0
        %1290 = vmatpush1.bf16.msra.mxu0 %v1181
        %1291 = vmatprep.subr.bf16.mxu0 0
        %1292 = vmatpush1.bf16.msra.mxu0 %v1182
        %1293 = vmatprep.subr.bf16.mxu0 0
        %1294 = vmatpush1.bf16.msra.mxu0 %v1183
        %1295 = vmatprep.subr.bf16.mxu0 0
        %1296 = vmatpush1.bf16.msra.mxu0 %v1184
        %1297 = vmatprep.mubr.bf16.mxu0 %v882
        %1298 = vmatmul.mubr.bf16.gmra.mrb[0].mxu0 %v881
        %v1299 = vpop.f32.mrb[0].mxu0
        %v1300 = vadd.f32 %v735, %v1299
        %v1301 = vpop.f32.mrb[0].mxu0
        %v1302 = vpop.f32.mrb[0].mxu0
        %v1303 = vadd.f32 %v735, %v1302
        %v1304 = vpop.f32.mrb[0].mxu0
        %1305 = vmatprep.mubr.bf16.mxu0 %v888
        %1306 = vmatmul.mubr.bf16.gmra.mrb[0].mxu0 %v887
        %v1307 = vpop.f32.mrb[0].mxu0
        %v1308 = vadd.f32 %v735, %v1307
        %v1309 = vpop.f32.mrb[0].mxu0
        %v1310 = vpop.f32.mrb[0].mxu0
        %v1311 = vadd.f32 %v735, %v1310
        %v1312 = vpop.f32.mrb[0].mxu0
        %1313 = vmatprep.mubr.bf16.mxu0 %v894
        %1314 = vmatmul.mubr.bf16.gmra.mrb[0].mxu0 %v893
        %v1315 = vpop.f32.mrb[0].mxu0
        %v1316 = vadd.f32 %v735, %v1315
        %v1317 = vpop.f32.mrb[0].mxu0
        %v1318 = vpop.f32.mrb[0].mxu0
        %v1319 = vadd.f32 %v735, %v1318
        %v1320 = vpop.f32.mrb[0].mxu0
        %1321 = vmatprep.mubr.bf16.mxu0 %v900
        %1322 = vmatmul.mubr.bf16.gmra.mrb[0].mxu0 %v899
        %v1323 = vpop.f32.mrb[0].mxu0
        %v1324 = vadd.f32 %v735, %v1323
        %v1325 = vpop.f32.mrb[0].mxu0
        %v1326 = vpop.f32.mrb[0].mxu0
        %v1327 = vadd.f32 %v735, %v1326
        %v1328 = vpop.f32.mrb[0].mxu0
        %1329 = vmatprep.mubr.bf16.mxu0 %v906
        %1330 = vmatmul.mubr.bf16.gmra.mrb[0].mxu0 %v905
        %v1331 = vpop.f32.mrb[0].mxu0
        %v1332 = vadd.f32 %v735, %v1331
        %v1333 = vpop.f32.mrb[0].mxu0
        %v1334 = vpop.f32.mrb[0].mxu0
        %v1335 = vadd.f32 %v735, %v1334
        %v1336 = vpop.f32.mrb[0].mxu0
        %1337 = vmatprep.mubr.bf16.mxu0 %v912
        %1338 = vmatmul.mubr.bf16.gmra.mrb[0].mxu0 %v911
        %v1339 = vpop.f32.mrb[0].mxu0
        %v1340 = vadd.f32 %v735, %v1339
        %v1341 = vpop.f32.mrb[0].mxu0
        %v1342 = vpop.f32.mrb[0].mxu0
        %v1343 = vadd.f32 %v735, %v1342
        %v1344 = vpop.f32.mrb[0].mxu0
        %1345 = vmatprep.mubr.bf16.mxu0 %v918
        %1346 = vmatmul.mubr.bf16.gmra.mrb[0].mxu0 %v917
        %v1347 = vpop.f32.mrb[0].mxu0
        %v1348 = vadd.f32 %v735, %v1347
        %v1349 = vpop.f32.mrb[0].mxu0
        %v1350 = vpop.f32.mrb[0].mxu0
        %v1351 = vadd.f32 %v735, %v1350
        %v1352 = vpop.f32.mrb[0].mxu0
        %1353 = vmatprep.mubr.bf16.mxu0 %v924
        %1354 = vmatmul.mubr.bf16.gmra.mrb[0].mxu0 %v923
        %v1355 = vpop.f32.mrb[0].mxu0
        %v1356 = vadd.f32 %v735, %v1355
        %v1357 = vpop.f32.mrb[0].mxu0
        %v1358 = vpop.f32.mrb[0].mxu0
        %v1359 = vadd.f32 %v735, %v1358
        %v1360 = vpop.f32.mrb[0].mxu0
        %1361 = vdwg.mxu0
        %1362 = vmatprep.subr.bf16.mxu0 0
        %1363 = vmatpush1.bf16.msra.mxu0 %v1185
        %1364 = vmatprep.subr.bf16.mxu0 0
        %1365 = vmatpush1.bf16.msra.mxu0 %v1186
        %1366 = vmatprep.subr.bf16.mxu0 0
        %1367 = vmatpush1.bf16.msra.mxu0 %v1187
        %1368 = vmatprep.subr.bf16.mxu0 0
        %1369 = vmatpush1.bf16.msra.mxu0 %v1188
        %1370 = vmatprep.subr.bf16.mxu0 0
        %1371 = vmatpush1.bf16.msra.mxu0 %v1189
        %1372 = vmatprep.subr.bf16.mxu0 0
        %1373 = vmatpush1.bf16.msra.mxu0 %v1190
        %1374 = vmatprep.subr.bf16.mxu0 0
        %1375 = vmatpush1.bf16.msra.mxu0 %v1191
        %1376 = vmatprep.subr.bf16.mxu0 0
        %1377 = vmatpush1.bf16.msra.mxu0 %v1192
        %1378 = vmatprep.subr.bf16.mxu0 0
        %1379 = vmatpush1.bf16.msra.mxu0 %v1193
        %1380 = vmatprep.subr.bf16.mxu0 0
        %1381 = vmatpush1.bf16.msra.mxu0 %v1194
        %1382 = vmatprep.subr.bf16.mxu0 0
        %1383 = vmatpush1.bf16.msra.mxu0 %v1195
        %1384 = vmatprep.subr.bf16.mxu0 0
        %1385 = vmatpush1.bf16.msra.mxu0 %v1196
        %1386 = vmatprep.subr.bf16.mxu0 0
        %1387 = vmatpush1.bf16.msra.mxu0 %v1197
        %1388 = vmatprep.subr.bf16.mxu0 0
        %1389 = vmatpush1.bf16.msra.mxu0 %v1198
        %1390 = vmatprep.subr.bf16.mxu0 0
        %1391 = vmatpush1.bf16.msra.mxu0 %v1199
        %1392 = vmatprep.subr.bf16.mxu0 0
        %1393 = vmatpush1.bf16.msra.mxu0 %v1200
        %1394 = vmatprep.mubr.bf16.mxu0 %v884
        %1395 = vmatmul.mubr.bf16.gmra.mrb[0].mxu0 %v883
        %v1396 = vpop.f32.mrb[0].mxu0
        %v1397 = vadd.f32 %v1300, %v1396
        %v1398 = vpop.f32.mrb[0].mxu0
        %v1399 = vpop.f32.mrb[0].mxu0
        %v1400 = vadd.f32 %v1303, %v1399
        %v1401 = vpop.f32.mrb[0].mxu0
        %1402 = vmatprep.mubr.bf16.mxu0 %v890
        %1403 = vmatmul.mubr.bf16.gmra.mrb[0].mxu0 %v889
        %v1404 = vpop.f32.mrb[0].mxu0
        %v1405 = vadd.f32 %v1308, %v1404
        %v1406 = vpop.f32.mrb[0].mxu0
        %v1407 = vpop.f32.mrb[0].mxu0
        %v1408 = vadd.f32 %v1311, %v1407
        %v1409 = vpop.f32.mrb[0].mxu0
        %1410 = vmatprep.mubr.bf16.mxu0 %v896
        %1411 = vmatmul.mubr.bf16.gmra.mrb[0].mxu0 %v895
        %v1412 = vpop.f32.mrb[0].mxu0
        %v1413 = vadd.f32 %v1316, %v1412
        %v1414 = vpop.f32.mrb[0].mxu0
        %v1415 = vpop.f32.mrb[0].mxu0
        %v1416 = vadd.f32 %v1319, %v1415
        %v1417 = vpop.f32.mrb[0].mxu0
        %1418 = vmatprep.mubr.bf16.mxu0 %v902
        %1419 = vmatmul.mubr.bf16.gmra.mrb[0].mxu0 %v901
        %v1420 = vpop.f32.mrb[0].mxu0
        %v1421 = vadd.f32 %v1324, %v1420
        %v1422 = vpop.f32.mrb[0].mxu0
        %v1423 = vpop.f32.mrb[0].mxu0
        %v1424 = vadd.f32 %v1327, %v1423
        %v1425 = vpop.f32.mrb[0].mxu0
        %1426 = vmatprep.mubr.bf16.mxu0 %v908
        %1427 = vmatmul.mubr.bf16.gmra.mrb[0].mxu0 %v907
        %v1428 = vpop.f32.mrb[0].mxu0
        %v1429 = vadd.f32 %v1332, %v1428
        %v1430 = vpop.f32.mrb[0].mxu0
        %v1431 = vpop.f32.mrb[0].mxu0
        %v1432 = vadd.f32 %v1335, %v1431
        %v1433 = vpop.f32.mrb[0].mxu0
        %1434 = vmatprep.mubr.bf16.mxu0 %v914
        %1435 = vmatmul.mubr.bf16.gmra.mrb[0].mxu0 %v913
        %v1436 = vpop.f32.mrb[0].mxu0
        %v1437 = vadd.f32 %v1340, %v1436
        %v1438 = vpop.f32.mrb[0].mxu0
        %v1439 = vpop.f32.mrb[0].mxu0
        %v1440 = vadd.f32 %v1343, %v1439
        %v1441 = vpop.f32.mrb[0].mxu0
        %1442 = vmatprep.mubr.bf16.mxu0 %v920
        %1443 = vmatmul.mubr.bf16.gmra.mrb[0].mxu0 %v919
        %v1444 = vpop.f32.mrb[0].mxu0
        %v1445 = vadd.f32 %v1348, %v1444
        %v1446 = vpop.f32.mrb[0].mxu0
        %v1447 = vpop.f32.mrb[0].mxu0
        %v1448 = vadd.f32 %v1351, %v1447
        %v1449 = vpop.f32.mrb[0].mxu0
        %1450 = vmatprep.mubr.bf16.mxu0 %v926
        %1451 = vmatmul.mubr.bf16.gmra.mrb[0].mxu0 %v925
        %v1452 = vpop.f32.mrb[0].mxu0
        %v1453 = vadd.f32 %v1356, %v1452
        %v1454 = vpop.f32.mrb[0].mxu0
        %v1455 = vpop.f32.mrb[0].mxu0
        %v1456 = vadd.f32 %v1359, %v1455
        %v1457 = vpop.f32.mrb[0].mxu0
        %1458 = vdwg.mxu0
        %1459 = vmatprep.subr.bf16.mxu0 0
        %1460 = vmatpush1.bf16.msra.mxu0 %v1201
        %1461 = vmatprep.subr.bf16.mxu0 0
        %1462 = vmatpush1.bf16.msra.mxu0 %v1202
        %1463 = vmatprep.subr.bf16.mxu0 0
        %1464 = vmatpush1.bf16.msra.mxu0 %v1203
        %1465 = vmatprep.subr.bf16.mxu0 0
        %1466 = vmatpush1.bf16.msra.mxu0 %v1204
        %1467 = vmatprep.subr.bf16.mxu0 0
        %1468 = vmatpush1.bf16.msra.mxu0 %v1205
        %1469 = vmatprep.subr.bf16.mxu0 0
        %1470 = vmatpush1.bf16.msra.mxu0 %v1206
        %1471 = vmatprep.subr.bf16.mxu0 0
        %1472 = vmatpush1.bf16.msra.mxu0 %v1207
        %1473 = vmatprep.subr.bf16.mxu0 0
        %1474 = vmatpush1.bf16.msra.mxu0 %v1208
        %1475 = vmatprep.subr.bf16.mxu0 0
        %1476 = vmatpush1.bf16.msra.mxu0 %v1209
        %1477 = vmatprep.subr.bf16.mxu0 0
        %1478 = vmatpush1.bf16.msra.mxu0 %v1210
        %1479 = vmatprep.subr.bf16.mxu0 0
        %1480 = vmatpush1.bf16.msra.mxu0 %v1211
        %1481 = vmatprep.subr.bf16.mxu0 0
        %1482 = vmatpush1.bf16.msra.mxu0 %v1212
        %1483 = vmatprep.subr.bf16.mxu0 0
        %1484 = vmatpush1.bf16.msra.mxu0 %v1213
        %1485 = vmatprep.subr.bf16.mxu0 0
        %1486 = vmatpush1.bf16.msra.mxu0 %v1214
        %1487 = vmatprep.subr.bf16.mxu0 0
        %1488 = vmatpush1.bf16.msra.mxu0 %v1215
        %1489 = vmatprep.subr.bf16.mxu0 0
        %1490 = vmatpush1.bf16.msra.mxu0 %v1216
        %1491 = vmatprep.mubr.bf16.mxu0 %v886
        %1492 = vmatmul.mubr.bf16.gmra.mrb[0].mxu0 %v885
        %v1493 = vpop.f32.mrb[0].mxu0
        %v1494 = vadd.f32 %v1397, %v1493
        %v1495 = vpop.f32.mrb[0].mxu0
        %v1496 = vpop.f32.mrb[0].mxu0
        %v1497 = vadd.f32 %v1400, %v1496
        %v1498 = vpop.f32.mrb[0].mxu0
        %1499 = vmatprep.mubr.bf16.mxu0 %v892
        %1500 = vmatmul.mubr.bf16.gmra.mrb[0].mxu0 %v891
        %v1501 = vpop.f32.mrb[0].mxu0
        %v1502 = vadd.f32 %v1405, %v1501
        %v1503 = vpop.f32.mrb[0].mxu0
        %v1504 = vpop.f32.mrb[0].mxu0
        %v1505 = vadd.f32 %v1408, %v1504
        %v1506 = vpop.f32.mrb[0].mxu0
        %1507 = vmatprep.mubr.bf16.mxu0 %v898
        %1508 = vmatmul.mubr.bf16.gmra.mrb[0].mxu0 %v897
        %v1509 = vpop.f32.mrb[0].mxu0
        %v1510 = vadd.f32 %v1413, %v1509
        %v1511 = vpop.f32.mrb[0].mxu0
        %v1512 = vpop.f32.mrb[0].mxu0
        %v1513 = vadd.f32 %v1416, %v1512
        %v1514 = vpop.f32.mrb[0].mxu0
        %1515 = vmatprep.mubr.bf16.mxu0 %v904
        %1516 = vmatmul.mubr.bf16.gmra.mrb[0].mxu0 %v903
        %v1517 = vpop.f32.mrb[0].mxu0
        %v1518 = vadd.f32 %v1421, %v1517
        %v1519 = vpop.f32.mrb[0].mxu0
        %v1520 = vpop.f32.mrb[0].mxu0
        %v1521 = vadd.f32 %v1424, %v1520
        %v1522 = vpop.f32.mrb[0].mxu0
        %1523 = vmatprep.mubr.bf16.mxu0 %v910
        %1524 = vmatmul.mubr.bf16.gmra.mrb[0].mxu0 %v909
        %v1525 = vpop.f32.mrb[0].mxu0
        %v1526 = vadd.f32 %v1429, %v1525
        %v1527 = vpop.f32.mrb[0].mxu0
        %v1528 = vpop.f32.mrb[0].mxu0
        %v1529 = vadd.f32 %v1432, %v1528
        %v1530 = vpop.f32.mrb[0].mxu0
        %1531 = vmatprep.mubr.bf16.mxu0 %v916
        %1532 = vmatmul.mubr.bf16.gmra.mrb[0].mxu0 %v915
        %v1533 = vpop.f32.mrb[0].mxu0
        %v1534 = vadd.f32 %v1437, %v1533
        %v1535 = vpop.f32.mrb[0].mxu0
        %v1536 = vpop.f32.mrb[0].mxu0
        %v1537 = vadd.f32 %v1440, %v1536
        %v1538 = vpop.f32.mrb[0].mxu0
        %1539 = vmatprep.mubr.bf16.mxu0 %v922
        %1540 = vmatmul.mubr.bf16.gmra.mrb[0].mxu0 %v921
        %v1541 = vpop.f32.mrb[0].mxu0
        %v1542 = vadd.f32 %v1445, %v1541
        %v1543 = vpop.f32.mrb[0].mxu0
        %v1544 = vpop.f32.mrb[0].mxu0
        %v1545 = vadd.f32 %v1448, %v1544
        %v1546 = vpop.f32.mrb[0].mxu0
        %1547 = vmatprep.mubr.bf16.mxu0 %v928
        %1548 = vmatmul.mubr.bf16.gmra.mrb[0].mxu0 %v927
        %v1549 = vpop.f32.mrb[0].mxu0
        %v1550 = vadd.f32 %v1453, %v1549
        %v1551 = vpop.f32.mrb[0].mxu0
        %v1552 = vpop.f32.mrb[0].mxu0
        %v1553 = vadd.f32 %v1456, %v1552
        %v1554 = vpop.f32.mrb[0].mxu0
        %1555 = vdwg.mxu0
        %vm1556 = vcmp.gt.f32.partialorder %v1494, 0.0
        %vm1557 = vcmp.gt.f32.partialorder %v1497, 0.0
        %vm1558 = vcmp.gt.f32.partialorder %v1502, 0.0
        %vm1559 = vcmp.gt.f32.partialorder %v1505, 0.0
        %vm1560 = vcmp.gt.f32.partialorder %v1510, 0.0
        %vm1561 = vcmp.gt.f32.partialorder %v1513, 0.0
        %vm1562 = vcmp.gt.f32.partialorder %v1518, 0.0
        %vm1563 = vcmp.gt.f32.partialorder %v1521, 0.0
        %vm1564 = vcmp.gt.f32.partialorder %v1526, 0.0
        %vm1565 = vcmp.gt.f32.partialorder %v1529, 0.0
        %vm1566 = vcmp.gt.f32.partialorder %v1534, 0.0
        %vm1567 = vcmp.gt.f32.partialorder %v1537, 0.0
        %vm1568 = vcmp.gt.f32.partialorder %v1542, 0.0
        %vm1569 = vcmp.gt.f32.partialorder %v1545, 0.0
        %vm1570 = vcmp.gt.f32.partialorder %v1550, 0.0
        %vm1571 = vcmp.gt.f32.partialorder %v1553, 0.0
        %v1572 = vmul.f32 %v1494, 0.01
        %v1573 = vmul.f32 %v1497, 0.01
        %v1574 = vmul.f32 %v1502, 0.01
        %v1575 = vmul.f32 %v1505, 0.01
        %v1576 = vmul.f32 %v1510, 0.01
        %v1577 = vmul.f32 %v1513, 0.01
        %v1578 = vmul.f32 %v1518, 0.01
        %v1579 = vmul.f32 %v1521, 0.01
        %v1580 = vmul.f32 %v1526, 0.01
        %v1581 = vmul.f32 %v1529, 0.01
        %v1582 = vmul.f32 %v1534, 0.01
        %v1583 = vmul.f32 %v1537, 0.01
        %v1584 = vmul.f32 %v1542, 0.01
        %v1585 = vmul.f32 %v1545, 0.01
        %v1586 = vmul.f32 %v1550, 0.01
        %v1587 = vmul.f32 %v1553, 0.01
        %v1588 = vsel %vm1556, %v1494, %v1572
        %v1589 = vsel %vm1557, %v1497, %v1573
        %v1590 = vsel %vm1558, %v1502, %v1574
        %v1591 = vsel %vm1559, %v1505, %v1575
        %v1592 = vsel %vm1560, %v1510, %v1576
        %v1593 = vsel %vm1561, %v1513, %v1577
        %v1594 = vsel %vm1562, %v1518, %v1578
        %v1595 = vsel %vm1563, %v1521, %v1579
        %v1596 = vsel %vm1564, %v1526, %v1580
        %v1597 = vsel %vm1565, %v1529, %v1581
        %v1598 = vsel %vm1566, %v1534, %v1582
        %v1599 = vsel %vm1567, %v1537, %v1583
        %v1600 = vsel %vm1568, %v1542, %v1584
        %v1601 = vsel %vm1569, %v1545, %v1585
        %v1602 = vsel %vm1570, %v1550, %v1586
        %v1603 = vsel %vm1571, %v1553, %v1587
        %v1604 = vld [vmem:[%s501] sm:$0xff]
        %v1605 = vld [vmem:[%s501 + $0x8] sm:$0xff]
        %v1606 = vld [vmem:[%s501 + $0x10] sm:$0xff]
        %v1607 = vld [vmem:[%s501 + $0x18] sm:$0xff]
        %v1608 = vld [vmem:[%s501 + $0x20] sm:$0xff]
        %v1609 = vld [vmem:[%s501 + $0x28] sm:$0xff]
        %v1610 = vld [vmem:[%s501 + $0x30] sm:$0xff]
        %v1611 = vld [vmem:[%s501 + $0x38] sm:$0xff]
        %v1612 = vld [vmem:[%s501 + $0x40] sm:$0xff]
        %v1613 = vld [vmem:[%s501 + $0x48] sm:$0xff]
        %v1614 = vld [vmem:[%s501 + $0x50] sm:$0xff]
        %v1615 = vld [vmem:[%s501 + $0x58] sm:$0xff]
        %v1616 = vld [vmem:[%s501 + $0x60] sm:$0xff]
        %v1617 = vld [vmem:[%s501 + $0x68] sm:$0xff]
        %v1618 = vld [vmem:[%s501 + $0x70] sm:$0xff]
        %v1619 = vld [vmem:[%s501 + $0x78] sm:$0xff]
        %v1620 = vld [vmem:[%s501 + $0x80] sm:$0xff]
        %v1621 = vld [vmem:[%s501 + $0x88] sm:$0xff]
        %v1622 = vld [vmem:[%s501 + $0x90] sm:$0xff]
        %v1623 = vld [vmem:[%s501 + $0x98] sm:$0xff]
        %v1624 = vld [vmem:[%s501 + $0xa0] sm:$0xff]
        %v1625 = vld [vmem:[%s501 + $0xa8] sm:$0xff]
        %v1626 = vld [vmem:[%s501 + $0xb0] sm:$0xff]
        %v1627 = vld [vmem:[%s501 + $0xb8] sm:$0xff]
        %v1628 = vld [vmem:[%s501 + $0xc0] sm:$0xff]
        %v1629 = vld [vmem:[%s501 + $0xc8] sm:$0xff]
        %v1630 = vld [vmem:[%s501 + $0xd0] sm:$0xff]
        %v1631 = vld [vmem:[%s501 + $0xd8] sm:$0xff]
        %v1632 = vld [vmem:[%s501 + $0xe0] sm:$0xff]
        %v1633 = vld [vmem:[%s501 + $0xe8] sm:$0xff]
        %v1634 = vld [vmem:[%s501 + $0xf0] sm:$0xff]
        %v1635 = vld [vmem:[%s501 + $0xf8] sm:$0xff]
        %v1636 = vld [vmem:[%s501 + $0x100] sm:$0xff]
        %v1637 = vld [vmem:[%s501 + $0x108] sm:$0xff]
        %v1638 = vld [vmem:[%s501 + $0x110] sm:$0xff]
        %v1639 = vld [vmem:[%s501 + $0x118] sm:$0xff]
        %v1640 = vld [vmem:[%s501 + $0x120] sm:$0xff]
        %v1641 = vld [vmem:[%s501 + $0x128] sm:$0xff]
        %v1642 = vld [vmem:[%s501 + $0x130] sm:$0xff]
        %v1643 = vld [vmem:[%s501 + $0x138] sm:$0xff]
        %v1644 = vld [vmem:[%s501 + $0x140] sm:$0xff]
        %v1645 = vld [vmem:[%s501 + $0x148] sm:$0xff]
        %v1646 = vld [vmem:[%s501 + $0x150] sm:$0xff]
        %v1647 = vld [vmem:[%s501 + $0x158] sm:$0xff]
        %v1648 = vld [vmem:[%s501 + $0x160] sm:$0xff]
        %v1649 = vld [vmem:[%s501 + $0x168] sm:$0xff]
        %v1650 = vld [vmem:[%s501 + $0x170] sm:$0xff]
        %v1651 = vld [vmem:[%s501 + $0x178] sm:$0xff]
        %v1652 = vld [vmem:[%s6] sm:$0xf]
        %v1653 = vld [vmem:[%s6 + $0x4] sm:$0xf]
        %v1654 = vld [vmem:[%s6 + $0x8] sm:$0xf]
        %v1655 = vld [vmem:[%s6 + $0xc] sm:$0xf]
        %v1656 = vld [vmem:[%s6 + $0x10] sm:$0xf]
        %v1657 = vld [vmem:[%s6 + $0x14] sm:$0xf]
        %v1658 = vld [vmem:[%s6 + $0x18] sm:$0xf]
        %v1659 = vld [vmem:[%s6 + $0x1c] sm:$0xf]
        %v1660 = vld [vmem:[%s6 + $0x20] sm:$0xf]
        %v1661 = vld [vmem:[%s6 + $0x24] sm:$0xf]
        %v1662 = vld [vmem:[%s6 + $0x28] sm:$0xf]
        %v1663 = vld [vmem:[%s6 + $0x2c] sm:$0xf]
        %v1664 = vld [vmem:[%s6 + $0x30] sm:$0xf]
        %v1665 = vld [vmem:[%s6 + $0x34] sm:$0xf]
        %v1666 = vld [vmem:[%s6 + $0x38] sm:$0xf]
        %v1667 = vld [vmem:[%s6 + $0x3c] sm:$0xf]
        %v1668 = vld [vmem:[%s6 + $0x40] sm:$0xf]
        %v1669 = vld [vmem:[%s6 + $0x44] sm:$0xf]
        %v1670 = vld [vmem:[%s6 + $0x48] sm:$0xf]
        %v1671 = vld [vmem:[%s6 + $0x4c] sm:$0xf]
        %v1672 = vld [vmem:[%s6 + $0x50] sm:$0xf]
        %v1673 = vld [vmem:[%s6 + $0x54] sm:$0xf]
        %v1674 = vld [vmem:[%s6 + $0x58] sm:$0xf]
        %v1675 = vld [vmem:[%s6 + $0x5c] sm:$0xf]
        %v1676 = vld [vmem:[%s6 + $0x60] sm:$0xf]
        %v1677 = vld [vmem:[%s6 + $0x64] sm:$0xf]
        %v1678 = vld [vmem:[%s6 + $0x68] sm:$0xf]
        %v1679 = vld [vmem:[%s6 + $0x6c] sm:$0xf]
        %v1680 = vld [vmem:[%s6 + $0x70] sm:$0xf]
        %v1681 = vld [vmem:[%s6 + $0x74] sm:$0xf]
        %v1682 = vld [vmem:[%s6 + $0x78] sm:$0xf]
        %v1683 = vld [vmem:[%s6 + $0x7c] sm:$0xf]
        %v1684 = vld [vmem:[%s6 + $0x80] sm:$0xf]
        %v1685 = vld [vmem:[%s6 + $0x84] sm:$0xf]
        %v1686 = vld [vmem:[%s6 + $0x88] sm:$0xf]
        %v1687 = vld [vmem:[%s6 + $0x8c] sm:$0xf]
        %v1688 = vld [vmem:[%s6 + $0x90] sm:$0xf]
        %v1689 = vld [vmem:[%s6 + $0x94] sm:$0xf]
        %v1690 = vld [vmem:[%s6 + $0x98] sm:$0xf]
        %v1691 = vld [vmem:[%s6 + $0x9c] sm:$0xf]
        %v1692 = vld [vmem:[%s6 + $0xa0] sm:$0xf]
        %v1693 = vld [vmem:[%s6 + $0xa4] sm:$0xf]
        %v1694 = vld [vmem:[%s6 + $0xa8] sm:$0xf]
        %v1695 = vld [vmem:[%s6 + $0xac] sm:$0xf]
        %v1696 = vld [vmem:[%s6 + $0xb0] sm:$0xf]
        %v1697 = vld [vmem:[%s6 + $0xb4] sm:$0xf]
        %v1698 = vld [vmem:[%s6 + $0xb8] sm:$0xf]
        %v1699 = vld [vmem:[%s6 + $0xbc] sm:$0xf]
        %v1700 = vld [vmem:[%s6 + $0xc0] sm:$0xf]
        %v1701 = vld [vmem:[%s6 + $0xc4] sm:$0xf]
        %v1702 = vld [vmem:[%s6 + $0xc8] sm:$0xf]
        %v1703 = vld [vmem:[%s6 + $0xcc] sm:$0xf]
        %v1704 = vld [vmem:[%s6 + $0xd0] sm:$0xf]
        %v1705 = vld [vmem:[%s6 + $0xd4] sm:$0xf]
        %v1706 = vld [vmem:[%s6 + $0xd8] sm:$0xf]
        %v1707 = vld [vmem:[%s6 + $0xdc] sm:$0xf]
        %v1708 = vld [vmem:[%s6 + $0xe0] sm:$0xf]
        %v1709 = vld [vmem:[%s6 + $0xe4] sm:$0xf]
        %v1710 = vld [vmem:[%s6 + $0xe8] sm:$0xf]
        %v1711 = vld [vmem:[%s6 + $0xec] sm:$0xf]
        %v1712 = vld [vmem:[%s6 + $0xf0] sm:$0xf]
        %v1713 = vld [vmem:[%s6 + $0xf4] sm:$0xf]
        %v1714 = vld [vmem:[%s6 + $0xf8] sm:$0xf]
        %v1715 = vld [vmem:[%s6 + $0xfc] sm:$0xf]
        %v1716 = vld [vmem:[%s6 + $0x100] sm:$0xf]
        %v1717 = vld [vmem:[%s6 + $0x104] sm:$0xf]
        %v1718 = vld [vmem:[%s6 + $0x108] sm:$0xf]
        %v1719 = vld [vmem:[%s6 + $0x10c] sm:$0xf]
        %v1720 = vld [vmem:[%s6 + $0x110] sm:$0xf]
        %v1721 = vld [vmem:[%s6 + $0x114] sm:$0xf]
        %v1722 = vld [vmem:[%s6 + $0x118] sm:$0xf]
        %v1723 = vld [vmem:[%s6 + $0x11c] sm:$0xf]
        %v1724 = vld [vmem:[%s6 + $0x120] sm:$0xf]
        %v1725 = vld [vmem:[%s6 + $0x124] sm:$0xf]
        %v1726 = vld [vmem:[%s6 + $0x128] sm:$0xf]
        %v1727 = vld [vmem:[%s6 + $0x12c] sm:$0xf]
        %v1728 = vld [vmem:[%s6 + $0x130] sm:$0xf]
        %v1729 = vld [vmem:[%s6 + $0x134] sm:$0xf]
        %v1730 = vld [vmem:[%s6 + $0x138] sm:$0xf]
        %v1731 = vld [vmem:[%s6 + $0x13c] sm:$0xf]
        %v1732 = vld [vmem:[%s6 + $0x140] sm:$0xf]
        %v1733 = vld [vmem:[%s6 + $0x144] sm:$0xf]
        %v1734 = vld [vmem:[%s6 + $0x148] sm:$0xf]
        %v1735 = vld [vmem:[%s6 + $0x14c] sm:$0xf]
        %v1736 = vld [vmem:[%s6 + $0x150] sm:$0xf]
        %v1737 = vld [vmem:[%s6 + $0x154] sm:$0xf]
        %v1738 = vld [vmem:[%s6 + $0x158] sm:$0xf]
        %v1739 = vld [vmem:[%s6 + $0x15c] sm:$0xf]
        %v1740 = vld [vmem:[%s6 + $0x160] sm:$0xf]
        %v1741 = vld [vmem:[%s6 + $0x164] sm:$0xf]
        %v1742 = vld [vmem:[%s6 + $0x168] sm:$0xf]
        %v1743 = vld [vmem:[%s6 + $0x16c] sm:$0xf]
        %v1744 = vld [vmem:[%s6 + $0x170] sm:$0xf]
        %v1745 = vld [vmem:[%s6 + $0x174] sm:$0xf]
        %v1746 = vld [vmem:[%s6 + $0x178] sm:$0xf]
        %v1747 = vld [vmem:[%s6 + $0x17c] sm:$0xf]
        %v1748 = vld [vmem:[%s7] sm:$0x1]
        %v1750 = vlaneseq
        %v1751 = vshrl.u32 %v1750, 7
        %v1752 = vsub.s32 0, %v1751
        %v1753 = vrot.slane %v1748, %v1752
        %v1803 = vunpack.c.l.b16 %v1604
        %v1804 = vunpack.c.h.b16 %v1604
        %v1805 = vunpack.c.l.b16 %v1605
        %v1806 = vunpack.c.h.b16 %v1605
        %v1807 = vunpack.c.l.b16 %v1606
        %v1808 = vunpack.c.h.b16 %v1606
        %v1809 = vunpack.c.l.b16 %v1607
        %v1810 = vunpack.c.h.b16 %v1607
        %v1811 = vunpack.c.l.b16 %v1608
        %v1812 = vunpack.c.h.b16 %v1608
        %v1813 = vunpack.c.l.b16 %v1609
        %v1814 = vunpack.c.h.b16 %v1609
        %v1815 = vunpack.c.l.b16 %v1610
        %v1816 = vunpack.c.h.b16 %v1610
        %v1817 = vunpack.c.l.b16 %v1611
        %v1818 = vunpack.c.h.b16 %v1611
        %v1819 = vunpack.c.l.b16 %v1612
        %v1820 = vunpack.c.h.b16 %v1612
        %v1821 = vunpack.c.l.b16 %v1613
        %v1822 = vunpack.c.h.b16 %v1613
        %v1823 = vunpack.c.l.b16 %v1614
        %v1824 = vunpack.c.h.b16 %v1614
        %v1825 = vunpack.c.l.b16 %v1615
        %v1826 = vunpack.c.h.b16 %v1615
        %v1827 = vunpack.c.l.b16 %v1616
        %v1828 = vunpack.c.h.b16 %v1616
        %v1829 = vunpack.c.l.b16 %v1617
        %v1830 = vunpack.c.h.b16 %v1617
        %v1831 = vunpack.c.l.b16 %v1618
        %v1832 = vunpack.c.h.b16 %v1618
        %v1833 = vunpack.c.l.b16 %v1619
        %v1834 = vunpack.c.h.b16 %v1619
        %v1835 = vunpack.c.l.b16 %v1620
        %v1836 = vunpack.c.h.b16 %v1620
        %v1837 = vunpack.c.l.b16 %v1621
        %v1838 = vunpack.c.h.b16 %v1621
        %v1839 = vunpack.c.l.b16 %v1622
        %v1840 = vunpack.c.h.b16 %v1622
        %v1841 = vunpack.c.l.b16 %v1623
        %v1842 = vunpack.c.h.b16 %v1623
        %v1843 = vunpack.c.l.b16 %v1624
        %v1844 = vunpack.c.h.b16 %v1624
        %v1845 = vunpack.c.l.b16 %v1625
        %v1846 = vunpack.c.h.b16 %v1625
        %v1847 = vunpack.c.l.b16 %v1626
        %v1848 = vunpack.c.h.b16 %v1626
        %v1849 = vunpack.c.l.b16 %v1627
        %v1850 = vunpack.c.h.b16 %v1627
        %v1851 = vunpack.c.l.b16 %v1628
        %v1852 = vunpack.c.h.b16 %v1628
        %v1853 = vunpack.c.l.b16 %v1629
        %v1854 = vunpack.c.h.b16 %v1629
        %v1855 = vunpack.c.l.b16 %v1630
        %v1856 = vunpack.c.h.b16 %v1630
        %v1857 = vunpack.c.l.b16 %v1631
        %v1858 = vunpack.c.h.b16 %v1631
        %v1859 = vunpack.c.l.b16 %v1632
        %v1860 = vunpack.c.h.b16 %v1632
        %v1861 = vunpack.c.l.b16 %v1633
        %v1862 = vunpack.c.h.b16 %v1633
        %v1863 = vunpack.c.l.b16 %v1634
        %v1864 = vunpack.c.h.b16 %v1634
        %v1865 = vunpack.c.l.b16 %v1635
        %v1866 = vunpack.c.h.b16 %v1635
        %v1867 = vunpack.c.l.b16 %v1636
        %v1868 = vunpack.c.h.b16 %v1636
        %v1869 = vunpack.c.l.b16 %v1637
        %v1870 = vunpack.c.h.b16 %v1637
        %v1871 = vunpack.c.l.b16 %v1638
        %v1872 = vunpack.c.h.b16 %v1638
        %v1873 = vunpack.c.l.b16 %v1639
        %v1874 = vunpack.c.h.b16 %v1639
        %v1875 = vunpack.c.l.b16 %v1640
        %v1876 = vunpack.c.h.b16 %v1640
        %v1877 = vunpack.c.l.b16 %v1641
        %v1878 = vunpack.c.h.b16 %v1641
        %v1879 = vunpack.c.l.b16 %v1642
        %v1880 = vunpack.c.h.b16 %v1642
        %v1881 = vunpack.c.l.b16 %v1643
        %v1882 = vunpack.c.h.b16 %v1643
        %v1883 = vunpack.c.l.b16 %v1644
        %v1884 = vunpack.c.h.b16 %v1644
        %v1885 = vunpack.c.l.b16 %v1645
        %v1886 = vunpack.c.h.b16 %v1645
        %v1887 = vunpack.c.l.b16 %v1646
        %v1888 = vunpack.c.h.b16 %v1646
        %v1889 = vunpack.c.l.b16 %v1647
        %v1890 = vunpack.c.h.b16 %v1647
        %v1891 = vunpack.c.l.b16 %v1648
        %v1892 = vunpack.c.h.b16 %v1648
        %v1893 = vunpack.c.l.b16 %v1649
        %v1894 = vunpack.c.h.b16 %v1649
        %v1895 = vunpack.c.l.b16 %v1650
        %v1896 = vunpack.c.h.b16 %v1650
        %v1897 = vunpack.c.l.b16 %v1651
        %v1898 = vunpack.c.h.b16 %v1651
        %v1899 = vpack.c.b16 %v1809, %v1803
        %v1900 = vpack.c.b16 %v1810, %v1804
        %v1901 = vpack.c.b16 %v1811, %v1805
        %v1902 = vpack.c.b16 %v1812, %v1806
        %v1903 = vpack.c.b16 %v1813, %v1807
        %v1904 = vpack.c.b16 %v1814, %v1808
        %v1905 = vpack.c.b16 %v1821, %v1815
        %v1906 = vpack.c.b16 %v1822, %v1816
        %v1907 = vpack.c.b16 %v1823, %v1817
        %v1908 = vpack.c.b16 %v1824, %v1818
        %v1909 = vpack.c.b16 %v1825, %v1819
        %v1910 = vpack.c.b16 %v1826, %v1820
        %v1911 = vpack.c.b16 %v1833, %v1827
        %v1912 = vpack.c.b16 %v1834, %v1828
        %v1913 = vpack.c.b16 %v1835, %v1829
        %v1914 = vpack.c.b16 %v1836, %v1830
        %v1915 = vpack.c.b16 %v1837, %v1831
        %v1916 = vpack.c.b16 %v1838, %v1832
        %v1917 = vpack.c.b16 %v1845, %v1839
        %v1918 = vpack.c.b16 %v1846, %v1840
        %v1919 = vpack.c.b16 %v1847, %v1841
        %v1920 = vpack.c.b16 %v1848, %v1842
        %v1921 = vpack.c.b16 %v1849, %v1843
        %v1922 = vpack.c.b16 %v1850, %v1844
        %v1923 = vpack.c.b16 %v1857, %v1851
        %v1924 = vpack.c.b16 %v1858, %v1852
        %v1925 = vpack.c.b16 %v1859, %v1853
        %v1926 = vpack.c.b16 %v1860, %v1854
        %v1927 = vpack.c.b16 %v1861, %v1855
        %v1928 = vpack.c.b16 %v1862, %v1856
        %v1929 = vpack.c.b16 %v1869, %v1863
        %v1930 = vpack.c.b16 %v1870, %v1864
        %v1931 = vpack.c.b16 %v1871, %v1865
        %v1932 = vpack.c.b16 %v1872, %v1866
        %v1933 = vpack.c.b16 %v1873, %v1867
        %v1934 = vpack.c.b16 %v1874, %v1868
        %v1935 = vpack.c.b16 %v1881, %v1875
        %v1936 = vpack.c.b16 %v1882, %v1876
        %v1937 = vpack.c.b16 %v1883, %v1877
        %v1938 = vpack.c.b16 %v1884, %v1878
        %v1939 = vpack.c.b16 %v1885, %v1879
        %v1940 = vpack.c.b16 %v1886, %v1880
        %v1941 = vpack.c.b16 %v1893, %v1887
        %v1942 = vpack.c.b16 %v1894, %v1888
        %v1943 = vpack.c.b16 %v1895, %v1889
        %v1944 = vpack.c.b16 %v1896, %v1890
        %v1945 = vpack.c.b16 %v1897, %v1891
        %v1946 = vpack.c.b16 %v1898, %v1892
        %v2091 = vunpack.c.l.b16 %v1652
        %v2092 = vunpack.c.l.b16 %v1653
        %v2093 = vunpack.c.l.b16 %v1654
        %v2094 = vunpack.c.l.b16 %v1655
        %v2095 = vunpack.c.l.b16 %v1656
        %v2096 = vunpack.c.l.b16 %v1657
        %v2097 = vunpack.c.l.b16 %v1658
        %v2098 = vunpack.c.l.b16 %v1659
        %v2099 = vunpack.c.l.b16 %v1660
        %v2100 = vunpack.c.l.b16 %v1661
        %v2101 = vunpack.c.l.b16 %v1662
        %v2102 = vunpack.c.l.b16 %v1663
        %v2103 = vunpack.c.l.b16 %v1664
        %v2104 = vunpack.c.l.b16 %v1665
        %v2105 = vunpack.c.l.b16 %v1666
        %v2106 = vunpack.c.l.b16 %v1667
        %v2107 = vunpack.c.l.b16 %v1668
        %v2108 = vunpack.c.l.b16 %v1669
        %v2109 = vunpack.c.l.b16 %v1670
        %v2110 = vunpack.c.l.b16 %v1671
        %v2111 = vunpack.c.l.b16 %v1672
        %v2112 = vunpack.c.l.b16 %v1673
        %v2113 = vunpack.c.l.b16 %v1674
        %v2114 = vunpack.c.l.b16 %v1675
        %v2115 = vunpack.c.l.b16 %v1676
        %v2116 = vunpack.c.l.b16 %v1677
        %v2117 = vunpack.c.l.b16 %v1678
        %v2118 = vunpack.c.l.b16 %v1679
        %v2119 = vunpack.c.l.b16 %v1680
        %v2120 = vunpack.c.l.b16 %v1681
        %v2121 = vunpack.c.l.b16 %v1682
        %v2122 = vunpack.c.l.b16 %v1683
        %v2123 = vunpack.c.l.b16 %v1684
        %v2124 = vunpack.c.l.b16 %v1685
        %v2125 = vunpack.c.l.b16 %v1686
        %v2126 = vunpack.c.l.b16 %v1687
        %v2127 = vunpack.c.l.b16 %v1688
        %v2128 = vunpack.c.l.b16 %v1689
        %v2129 = vunpack.c.l.b16 %v1690
        %v2130 = vunpack.c.l.b16 %v1691
        %v2131 = vunpack.c.l.b16 %v1692
        %v2132 = vunpack.c.l.b16 %v1693
        %v2133 = vunpack.c.l.b16 %v1694
        %v2134 = vunpack.c.l.b16 %v1695
        %v2135 = vunpack.c.l.b16 %v1696
        %v2136 = vunpack.c.l.b16 %v1697
        %v2137 = vunpack.c.l.b16 %v1698
        %v2138 = vunpack.c.l.b16 %v1699
        %v2139 = vunpack.c.l.b16 %v1700
        %v2140 = vunpack.c.l.b16 %v1701
        %v2141 = vunpack.c.l.b16 %v1702
        %v2142 = vunpack.c.l.b16 %v1703
        %v2143 = vunpack.c.l.b16 %v1704
        %v2144 = vunpack.c.l.b16 %v1705
        %v2145 = vunpack.c.l.b16 %v1706
        %v2146 = vunpack.c.l.b16 %v1707
        %v2147 = vunpack.c.l.b16 %v1708
        %v2148 = vunpack.c.l.b16 %v1709
        %v2149 = vunpack.c.l.b16 %v1710
        %v2150 = vunpack.c.l.b16 %v1711
        %v2151 = vunpack.c.l.b16 %v1712
        %v2152 = vunpack.c.l.b16 %v1713
        %v2153 = vunpack.c.l.b16 %v1714
        %v2154 = vunpack.c.l.b16 %v1715
        %v2155 = vunpack.c.l.b16 %v1716
        %v2156 = vunpack.c.l.b16 %v1717
        %v2157 = vunpack.c.l.b16 %v1718
        %v2158 = vunpack.c.l.b16 %v1719
        %v2159 = vunpack.c.l.b16 %v1720
        %v2160 = vunpack.c.l.b16 %v1721
        %v2161 = vunpack.c.l.b16 %v1722
        %v2162 = vunpack.c.l.b16 %v1723
        %v2163 = vunpack.c.l.b16 %v1724
        %v2164 = vunpack.c.l.b16 %v1725
        %v2165 = vunpack.c.l.b16 %v1726
        %v2166 = vunpack.c.l.b16 %v1727
        %v2167 = vunpack.c.l.b16 %v1728
        %v2168 = vunpack.c.l.b16 %v1729
        %v2169 = vunpack.c.l.b16 %v1730
        %v2170 = vunpack.c.l.b16 %v1731
        %v2171 = vunpack.c.l.b16 %v1732
        %v2172 = vunpack.c.l.b16 %v1733
        %v2173 = vunpack.c.l.b16 %v1734
        %v2174 = vunpack.c.l.b16 %v1735
        %v2175 = vunpack.c.l.b16 %v1736
        %v2176 = vunpack.c.l.b16 %v1737
        %v2177 = vunpack.c.l.b16 %v1738
        %v2178 = vunpack.c.l.b16 %v1739
        %v2179 = vunpack.c.l.b16 %v1740
        %v2180 = vunpack.c.l.b16 %v1741
        %v2181 = vunpack.c.l.b16 %v1742
        %v2182 = vunpack.c.l.b16 %v1743
        %v2183 = vunpack.c.l.b16 %v1744
        %v2184 = vunpack.c.l.b16 %v1745
        %v2185 = vunpack.c.l.b16 %v1746
        %v2186 = vunpack.c.l.b16 %v1747
        %v2187 = vpack.c.b16 %v2092, %v2091
        %v2188 = vpack.c.b16 %v2094, %v2093
        %v2189 = vpack.c.b16 %v2096, %v2095
        %v2190 = vpack.c.b16 %v2098, %v2097
        %v2191 = vpack.c.b16 %v2100, %v2099
        %v2192 = vpack.c.b16 %v2102, %v2101
        %v2193 = vpack.c.b16 %v2104, %v2103
        %v2194 = vpack.c.b16 %v2106, %v2105
        %v2195 = vpack.c.b16 %v2108, %v2107
        %v2196 = vpack.c.b16 %v2110, %v2109
        %v2197 = vpack.c.b16 %v2112, %v2111
        %v2198 = vpack.c.b16 %v2114, %v2113
        %v2199 = vpack.c.b16 %v2116, %v2115
        %v2200 = vpack.c.b16 %v2118, %v2117
        %v2201 = vpack.c.b16 %v2120, %v2119
        %v2202 = vpack.c.b16 %v2122, %v2121
        %v2203 = vpack.c.b16 %v2124, %v2123
        %v2204 = vpack.c.b16 %v2126, %v2125
        %v2205 = vpack.c.b16 %v2128, %v2127
        %v2206 = vpack.c.b16 %v2130, %v2129
        %v2207 = vpack.c.b16 %v2132, %v2131
        %v2208 = vpack.c.b16 %v2134, %v2133
        %v2209 = vpack.c.b16 %v2136, %v2135
        %v2210 = vpack.c.b16 %v2138, %v2137
        %v2211 = vpack.c.b16 %v2140, %v2139
        %v2212 = vpack.c.b16 %v2142, %v2141
        %v2213 = vpack.c.b16 %v2144, %v2143
        %v2214 = vpack.c.b16 %v2146, %v2145
        %v2215 = vpack.c.b16 %v2148, %v2147
        %v2216 = vpack.c.b16 %v2150, %v2149
        %v2217 = vpack.c.b16 %v2152, %v2151
        %v2218 = vpack.c.b16 %v2154, %v2153
        %v2219 = vpack.c.b16 %v2156, %v2155
        %v2220 = vpack.c.b16 %v2158, %v2157
        %v2221 = vpack.c.b16 %v2160, %v2159
        %v2222 = vpack.c.b16 %v2162, %v2161
        %v2223 = vpack.c.b16 %v2164, %v2163
        %v2224 = vpack.c.b16 %v2166, %v2165
        %v2225 = vpack.c.b16 %v2168, %v2167
        %v2226 = vpack.c.b16 %v2170, %v2169
        %v2227 = vpack.c.b16 %v2172, %v2171
        %v2228 = vpack.c.b16 %v2174, %v2173
        %v2229 = vpack.c.b16 %v2176, %v2175
        %v2230 = vpack.c.b16 %v2178, %v2177
        %v2231 = vpack.c.b16 %v2180, %v2179
        %v2232 = vpack.c.b16 %v2182, %v2181
        %v2233 = vpack.c.b16 %v2184, %v2183
        %v2234 = vpack.c.b16 %v2186, %v2185
        %2283 = vmatprep.subr.bf16.mxu0 0
        %2284 = vmatpush1.bf16.msra.mxu0 %v2187
        %2285 = vmatprep.subr.bf16.mxu0 0
        %2286 = vmatpush1.bf16.msra.mxu0 %v2188
        %2287 = vmatprep.subr.bf16.mxu0 0
        %2288 = vmatpush1.bf16.msra.mxu0 %v2189
        %2289 = vmatprep.subr.bf16.mxu0 0
        %2290 = vmatpush1.bf16.msra.mxu0 %v2190
        %2291 = vmatprep.subr.bf16.mxu0 0
        %2292 = vmatpush1.bf16.msra.mxu0 %v2191
        %2293 = vmatprep.subr.bf16.mxu0 0
        %2294 = vmatpush1.bf16.msra.mxu0 %v2192
        %2295 = vmatprep.subr.bf16.mxu0 0
        %2296 = vmatpush1.bf16.msra.mxu0 %v2193
        %2297 = vmatprep.subr.bf16.mxu0 0
        %2298 = vmatpush1.bf16.msra.mxu0 %v2194
        %2299 = vmatprep.subr.bf16.mxu0 0
        %2300 = vmatpush1.bf16.msra.mxu0 %v2195
        %2301 = vmatprep.subr.bf16.mxu0 0
        %2302 = vmatpush1.bf16.msra.mxu0 %v2196
        %2303 = vmatprep.subr.bf16.mxu0 0
        %2304 = vmatpush1.bf16.msra.mxu0 %v2197
        %2305 = vmatprep.subr.bf16.mxu0 0
        %2306 = vmatpush1.bf16.msra.mxu0 %v2198
        %2307 = vmatprep.subr.bf16.mxu0 0
        %2308 = vmatpush1.bf16.msra.mxu0 %v2199
        %2309 = vmatprep.subr.bf16.mxu0 0
        %2310 = vmatpush1.bf16.msra.mxu0 %v2200
        %2311 = vmatprep.subr.bf16.mxu0 0
        %2312 = vmatpush1.bf16.msra.mxu0 %v2201
        %2313 = vmatprep.subr.bf16.mxu0 0
        %2314 = vmatpush1.bf16.msra.mxu0 %v2202
        %2315 = vmatprep.mubr.bf16.mxu0 %v1900
        %2316 = vmatmul.mubr.bf16.gmra.mrb[0].mxu0 %v1899
        %v2317 = vpop.f32.mrb[0].mxu0
        %v2318 = vadd.f32 %v1753, %v2317
        %v2319 = vpop.f32.mrb[0].mxu0
        %v2320 = vpop.f32.mrb[0].mxu0
        %v2321 = vadd.f32 %v1753, %v2320
        %v2322 = vpop.f32.mrb[0].mxu0
        %2323 = vmatprep.mubr.bf16.mxu0 %v1906
        %2324 = vmatmul.mubr.bf16.gmra.mrb[0].mxu0 %v1905
        %v2325 = vpop.f32.mrb[0].mxu0
        %v2326 = vadd.f32 %v1753, %v2325
        %v2327 = vpop.f32.mrb[0].mxu0
        %v2328 = vpop.f32.mrb[0].mxu0
        %v2329 = vadd.f32 %v1753, %v2328
        %v2330 = vpop.f32.mrb[0].mxu0
        %2331 = vmatprep.mubr.bf16.mxu0 %v1912
        %2332 = vmatmul.mubr.bf16.gmra.mrb[0].mxu0 %v1911
        %v2333 = vpop.f32.mrb[0].mxu0
        %v2334 = vadd.f32 %v1753, %v2333
        %v2335 = vpop.f32.mrb[0].mxu0
        %v2336 = vpop.f32.mrb[0].mxu0
        %v2337 = vadd.f32 %v1753, %v2336
        %v2338 = vpop.f32.mrb[0].mxu0
        %2339 = vmatprep.mubr.bf16.mxu0 %v1918
        %2340 = vmatmul.mubr.bf16.gmra.mrb[0].mxu0 %v1917
        %v2341 = vpop.f32.mrb[0].mxu0
        %v2342 = vadd.f32 %v1753, %v2341
        %v2343 = vpop.f32.mrb[0].mxu0
        %v2344 = vpop.f32.mrb[0].mxu0
        %v2345 = vadd.f32 %v1753, %v2344
        %v2346 = vpop.f32.mrb[0].mxu0
        %2347 = vmatprep.mubr.bf16.mxu0 %v1924
        %2348 = vmatmul.mubr.bf16.gmra.mrb[0].mxu0 %v1923
        %v2349 = vpop.f32.mrb[0].mxu0
        %v2350 = vadd.f32 %v1753, %v2349
        %v2351 = vpop.f32.mrb[0].mxu0
        %v2352 = vpop.f32.mrb[0].mxu0
        %v2353 = vadd.f32 %v1753, %v2352
        %v2354 = vpop.f32.mrb[0].mxu0
        %2355 = vmatprep.mubr.bf16.mxu0 %v1930
        %2356 = vmatmul.mubr.bf16.gmra.mrb[0].mxu0 %v1929
        %v2357 = vpop.f32.mrb[0].mxu0
        %v2358 = vadd.f32 %v1753, %v2357
        %v2359 = vpop.f32.mrb[0].mxu0
        %v2360 = vpop.f32.mrb[0].mxu0
        %v2361 = vadd.f32 %v1753, %v2360
        %v2362 = vpop.f32.mrb[0].mxu0
        %2363 = vmatprep.mubr.bf16.mxu0 %v1936
        %2364 = vmatmul.mubr.bf16.gmra.mrb[0].mxu0 %v1935
        %v2365 = vpop.f32.mrb[0].mxu0
        %v2366 = vadd.f32 %v1753, %v2365
        %v2367 = vpop.f32.mrb[0].mxu0
        %v2368 = vpop.f32.mrb[0].mxu0
        %v2369 = vadd.f32 %v1753, %v2368
        %v2370 = vpop.f32.mrb[0].mxu0
        %2371 = vmatprep.mubr.bf16.mxu0 %v1942
        %2372 = vmatmul.mubr.bf16.gmra.mrb[0].mxu0 %v1941
        %v2373 = vpop.f32.mrb[0].mxu0
        %v2374 = vadd.f32 %v1753, %v2373
        %v2375 = vpop.f32.mrb[0].mxu0
        %v2376 = vpop.f32.mrb[0].mxu0
        %v2377 = vadd.f32 %v1753, %v2376
        %v2378 = vpop.f32.mrb[0].mxu0
        %2379 = vdwg.mxu0
        %2380 = vmatprep.subr.bf16.mxu0 0
        %2381 = vmatpush1.bf16.msra.mxu0 %v2203
        %2382 = vmatprep.subr.bf16.mxu0 0
        %2383 = vmatpush1.bf16.msra.mxu0 %v2204
        %2384 = vmatprep.subr.bf16.mxu0 0
        %2385 = vmatpush1.bf16.msra.mxu0 %v2205
        %2386 = vmatprep.subr.bf16.mxu0 0
        %2387 = vmatpush1.bf16.msra.mxu0 %v2206
        %2388 = vmatprep.subr.bf16.mxu0 0
        %2389 = vmatpush1.bf16.msra.mxu0 %v2207
        %2390 = vmatprep.subr.bf16.mxu0 0
        %2391 = vmatpush1.bf16.msra.mxu0 %v2208
        %2392 = vmatprep.subr.bf16.mxu0 0
        %2393 = vmatpush1.bf16.msra.mxu0 %v2209
        %2394 = vmatprep.subr.bf16.mxu0 0
        %2395 = vmatpush1.bf16.msra.mxu0 %v2210
        %2396 = vmatprep.subr.bf16.mxu0 0
        %2397 = vmatpush1.bf16.msra.mxu0 %v2211
        %2398 = vmatprep.subr.bf16.mxu0 0
        %2399 = vmatpush1.bf16.msra.mxu0 %v2212
        %2400 = vmatprep.subr.bf16.mxu0 0
        %2401 = vmatpush1.bf16.msra.mxu0 %v2213
        %2402 = vmatprep.subr.bf16.mxu0 0
        %2403 = vmatpush1.bf16.msra.mxu0 %v2214
        %2404 = vmatprep.subr.bf16.mxu0 0
        %2405 = vmatpush1.bf16.msra.mxu0 %v2215
        %2406 = vmatprep.subr.bf16.mxu0 0
        %2407 = vmatpush1.bf16.msra.mxu0 %v2216
        %2408 = vmatprep.subr.bf16.mxu0 0
        %2409 = vmatpush1.bf16.msra.mxu0 %v2217
        %2410 = vmatprep.subr.bf16.mxu0 0
        %2411 = vmatpush1.bf16.msra.mxu0 %v2218
        %2412 = vmatprep.mubr.bf16.mxu0 %v1902
        %2413 = vmatmul.mubr.bf16.gmra.mrb[0].mxu0 %v1901
        %v2414 = vpop.f32.mrb[0].mxu0
        %v2415 = vadd.f32 %v2318, %v2414
        %v2416 = vpop.f32.mrb[0].mxu0
        %v2417 = vpop.f32.mrb[0].mxu0
        %v2418 = vadd.f32 %v2321, %v2417
        %v2419 = vpop.f32.mrb[0].mxu0
        %2420 = vmatprep.mubr.bf16.mxu0 %v1908
        %2421 = vmatmul.mubr.bf16.gmra.mrb[0].mxu0 %v1907
        %v2422 = vpop.f32.mrb[0].mxu0
        %v2423 = vadd.f32 %v2326, %v2422
        %v2424 = vpop.f32.mrb[0].mxu0
        %v2425 = vpop.f32.mrb[0].mxu0
        %v2426 = vadd.f32 %v2329, %v2425
        %v2427 = vpop.f32.mrb[0].mxu0
        %2428 = vmatprep.mubr.bf16.mxu0 %v1914
        %2429 = vmatmul.mubr.bf16.gmra.mrb[0].mxu0 %v1913
        %v2430 = vpop.f32.mrb[0].mxu0
        %v2431 = vadd.f32 %v2334, %v2430
        %v2432 = vpop.f32.mrb[0].mxu0
        %v2433 = vpop.f32.mrb[0].mxu0
        %v2434 = vadd.f32 %v2337, %v2433
        %v2435 = vpop.f32.mrb[0].mxu0
        %2436 = vmatprep.mubr.bf16.mxu0 %v1920
        %2437 = vmatmul.mubr.bf16.gmra.mrb[0].mxu0 %v1919
        %v2438 = vpop.f32.mrb[0].mxu0
        %v2439 = vadd.f32 %v2342, %v2438
        %v2440 = vpop.f32.mrb[0].mxu0
        %v2441 = vpop.f32.mrb[0].mxu0
        %v2442 = vadd.f32 %v2345, %v2441
        %v2443 = vpop.f32.mrb[0].mxu0
        %2444 = vmatprep.mubr.bf16.mxu0 %v1926
        %2445 = vmatmul.mubr.bf16.gmra.mrb[0].mxu0 %v1925
        %v2446 = vpop.f32.mrb[0].mxu0
        %v2447 = vadd.f32 %v2350, %v2446
        %v2448 = vpop.f32.mrb[0].mxu0
        %v2449 = vpop.f32.mrb[0].mxu0
        %v2450 = vadd.f32 %v2353, %v2449
        %v2451 = vpop.f32.mrb[0].mxu0
        %2452 = vmatprep.mubr.bf16.mxu0 %v1932
        %2453 = vmatmul.mubr.bf16.gmra.mrb[0].mxu0 %v1931
        %v2454 = vpop.f32.mrb[0].mxu0
        %v2455 = vadd.f32 %v2358, %v2454
        %v2456 = vpop.f32.mrb[0].mxu0
        %v2457 = vpop.f32.mrb[0].mxu0
        %v2458 = vadd.f32 %v2361, %v2457
        %v2459 = vpop.f32.mrb[0].mxu0
        %2460 = vmatprep.mubr.bf16.mxu0 %v1938
        %2461 = vmatmul.mubr.bf16.gmra.mrb[0].mxu0 %v1937
        %v2462 = vpop.f32.mrb[0].mxu0
        %v2463 = vadd.f32 %v2366, %v2462
        %v2464 = vpop.f32.mrb[0].mxu0
        %v2465 = vpop.f32.mrb[0].mxu0
        %v2466 = vadd.f32 %v2369, %v2465
        %v2467 = vpop.f32.mrb[0].mxu0
        %2468 = vmatprep.mubr.bf16.mxu0 %v1944
        %2469 = vmatmul.mubr.bf16.gmra.mrb[0].mxu0 %v1943
        %v2470 = vpop.f32.mrb[0].mxu0
        %v2471 = vadd.f32 %v2374, %v2470
        %v2472 = vpop.f32.mrb[0].mxu0
        %v2473 = vpop.f32.mrb[0].mxu0
        %v2474 = vadd.f32 %v2377, %v2473
        %v2475 = vpop.f32.mrb[0].mxu0
        %2476 = vdwg.mxu0
        %2477 = vmatprep.subr.bf16.mxu0 0
        %2478 = vmatpush1.bf16.msra.mxu0 %v2219
        %2479 = vmatprep.subr.bf16.mxu0 0
        %2480 = vmatpush1.bf16.msra.mxu0 %v2220
        %2481 = vmatprep.subr.bf16.mxu0 0
        %2482 = vmatpush1.bf16.msra.mxu0 %v2221
        %2483 = vmatprep.subr.bf16.mxu0 0
        %2484 = vmatpush1.bf16.msra.mxu0 %v2222
        %2485 = vmatprep.subr.bf16.mxu0 0
        %2486 = vmatpush1.bf16.msra.mxu0 %v2223
        %2487 = vmatprep.subr.bf16.mxu0 0
        %2488 = vmatpush1.bf16.msra.mxu0 %v2224
        %2489 = vmatprep.subr.bf16.mxu0 0
        %2490 = vmatpush1.bf16.msra.mxu0 %v2225
        %2491 = vmatprep.subr.bf16.mxu0 0
        %2492 = vmatpush1.bf16.msra.mxu0 %v2226
        %2493 = vmatprep.subr.bf16.mxu0 0
        %2494 = vmatpush1.bf16.msra.mxu0 %v2227
        %2495 = vmatprep.subr.bf16.mxu0 0
        %2496 = vmatpush1.bf16.msra.mxu0 %v2228
        %2497 = vmatprep.subr.bf16.mxu0 0
        %2498 = vmatpush1.bf16.msra.mxu0 %v2229
        %2499 = vmatprep.subr.bf16.mxu0 0
        %2500 = vmatpush1.bf16.msra.mxu0 %v2230
        %2501 = vmatprep.subr.bf16.mxu0 0
        %2502 = vmatpush1.bf16.msra.mxu0 %v2231
        %2503 = vmatprep.subr.bf16.mxu0 0
        %2504 = vmatpush1.bf16.msra.mxu0 %v2232
        %2505 = vmatprep.subr.bf16.mxu0 0
        %2506 = vmatpush1.bf16.msra.mxu0 %v2233
        %2507 = vmatprep.subr.bf16.mxu0 0
        %2508 = vmatpush1.bf16.msra.mxu0 %v2234
        %2509 = vmatprep.mubr.bf16.mxu0 %v1904
        %2510 = vmatmul.mubr.bf16.gmra.mrb[0].mxu0 %v1903
        %v2511 = vpop.f32.mrb[0].mxu0
        %v2512 = vadd.f32 %v2415, %v2511
        %v2513 = vpop.f32.mrb[0].mxu0
        %v2514 = vpop.f32.mrb[0].mxu0
        %v2515 = vadd.f32 %v2418, %v2514
        %v2516 = vpop.f32.mrb[0].mxu0
        %2517 = vmatprep.mubr.bf16.mxu0 %v1910
        %2518 = vmatmul.mubr.bf16.gmra.mrb[0].mxu0 %v1909
        %v2519 = vpop.f32.mrb[0].mxu0
        %v2520 = vadd.f32 %v2423, %v2519
        %v2521 = vpop.f32.mrb[0].mxu0
        %v2522 = vpop.f32.mrb[0].mxu0
        %v2523 = vadd.f32 %v2426, %v2522
        %v2524 = vpop.f32.mrb[0].mxu0
        %2525 = vmatprep.mubr.bf16.mxu0 %v1916
        %2526 = vmatmul.mubr.bf16.gmra.mrb[0].mxu0 %v1915
        %v2527 = vpop.f32.mrb[0].mxu0
        %v2528 = vadd.f32 %v2431, %v2527
        %v2529 = vpop.f32.mrb[0].mxu0
        %v2530 = vpop.f32.mrb[0].mxu0
        %v2531 = vadd.f32 %v2434, %v2530
        %v2532 = vpop.f32.mrb[0].mxu0
        %2533 = vmatprep.mubr.bf16.mxu0 %v1922
        %2534 = vmatmul.mubr.bf16.gmra.mrb[0].mxu0 %v1921
        %v2535 = vpop.f32.mrb[0].mxu0
        %v2536 = vadd.f32 %v2439, %v2535
        %v2537 = vpop.f32.mrb[0].mxu0
        %v2538 = vpop.f32.mrb[0].mxu0
        %v2539 = vadd.f32 %v2442, %v2538
        %v2540 = vpop.f32.mrb[0].mxu0
        %2541 = vmatprep.mubr.bf16.mxu0 %v1928
        %2542 = vmatmul.mubr.bf16.gmra.mrb[0].mxu0 %v1927
        %v2543 = vpop.f32.mrb[0].mxu0
        %v2544 = vadd.f32 %v2447, %v2543
        %v2545 = vpop.f32.mrb[0].mxu0
        %v2546 = vpop.f32.mrb[0].mxu0
        %v2547 = vadd.f32 %v2450, %v2546
        %v2548 = vpop.f32.mrb[0].mxu0
        %2549 = vmatprep.mubr.bf16.mxu0 %v1934
        %2550 = vmatmul.mubr.bf16.gmra.mrb[0].mxu0 %v1933
        %v2551 = vpop.f32.mrb[0].mxu0
        %v2552 = vadd.f32 %v2455, %v2551
        %v2553 = vpop.f32.mrb[0].mxu0
        %v2554 = vpop.f32.mrb[0].mxu0
        %v2555 = vadd.f32 %v2458, %v2554
        %v2556 = vpop.f32.mrb[0].mxu0
        %2557 = vmatprep.mubr.bf16.mxu0 %v1940
        %2558 = vmatmul.mubr.bf16.gmra.mrb[0].mxu0 %v1939
        %v2559 = vpop.f32.mrb[0].mxu0
        %v2560 = vadd.f32 %v2463, %v2559
        %v2561 = vpop.f32.mrb[0].mxu0
        %v2562 = vpop.f32.mrb[0].mxu0
        %v2563 = vadd.f32 %v2466, %v2562
        %v2564 = vpop.f32.mrb[0].mxu0
        %2565 = vmatprep.mubr.bf16.mxu0 %v1946
        %2566 = vmatmul.mubr.bf16.gmra.mrb[0].mxu0 %v1945
        %v2567 = vpop.f32.mrb[0].mxu0
        %v2568 = vadd.f32 %v2471, %v2567
        %v2569 = vpop.f32.mrb[0].mxu0
        %v2570 = vpop.f32.mrb[0].mxu0
        %v2571 = vadd.f32 %v2474, %v2570
        %v2572 = vpop.f32.mrb[0].mxu0
        %2573 = vdwg.mxu0
        %vm2574 = vcmp.gt.f32.partialorder %v2512, 0.0
        %vm2575 = vcmp.gt.f32.partialorder %v2515, 0.0
        %vm2576 = vcmp.gt.f32.partialorder %v2520, 0.0
        %vm2577 = vcmp.gt.f32.partialorder %v2523, 0.0
        %vm2578 = vcmp.gt.f32.partialorder %v2528, 0.0
        %vm2579 = vcmp.gt.f32.partialorder %v2531, 0.0
        %vm2580 = vcmp.gt.f32.partialorder %v2536, 0.0
        %vm2581 = vcmp.gt.f32.partialorder %v2539, 0.0
        %vm2582 = vcmp.gt.f32.partialorder %v2544, 0.0
        %vm2583 = vcmp.gt.f32.partialorder %v2547, 0.0
        %vm2584 = vcmp.gt.f32.partialorder %v2552, 0.0
        %vm2585 = vcmp.gt.f32.partialorder %v2555, 0.0
        %vm2586 = vcmp.gt.f32.partialorder %v2560, 0.0
        %vm2587 = vcmp.gt.f32.partialorder %v2563, 0.0
        %vm2588 = vcmp.gt.f32.partialorder %v2568, 0.0
        %vm2589 = vcmp.gt.f32.partialorder %v2571, 0.0
        %v2590 = vmul.f32 %v2512, 0.01
        %v2591 = vmul.f32 %v2515, 0.01
        %v2592 = vmul.f32 %v2520, 0.01
        %v2593 = vmul.f32 %v2523, 0.01
        %v2594 = vmul.f32 %v2528, 0.01
        %v2595 = vmul.f32 %v2531, 0.01
        %v2596 = vmul.f32 %v2536, 0.01
        %v2597 = vmul.f32 %v2539, 0.01
        %v2598 = vmul.f32 %v2544, 0.01
        %v2599 = vmul.f32 %v2547, 0.01
        %v2600 = vmul.f32 %v2552, 0.01
        %v2601 = vmul.f32 %v2555, 0.01
        %v2602 = vmul.f32 %v2560, 0.01
        %v2603 = vmul.f32 %v2563, 0.01
        %v2604 = vmul.f32 %v2568, 0.01
        %v2605 = vmul.f32 %v2571, 0.01
        %v2606 = vsel %vm2574, %v2512, %v2590
        %v2607 = vsel %vm2575, %v2515, %v2591
        %v2608 = vsel %vm2576, %v2520, %v2592
        %v2609 = vsel %vm2577, %v2523, %v2593
        %v2610 = vsel %vm2578, %v2528, %v2594
        %v2611 = vsel %vm2579, %v2531, %v2595
        %v2612 = vsel %vm2580, %v2536, %v2596
        %v2613 = vsel %vm2581, %v2539, %v2597
        %v2614 = vsel %vm2582, %v2544, %v2598
        %v2615 = vsel %vm2583, %v2547, %v2599
        %v2616 = vsel %vm2584, %v2552, %v2600
        %v2617 = vsel %vm2585, %v2555, %v2601
        %v2618 = vsel %vm2586, %v2560, %v2602
        %v2619 = vsel %vm2587, %v2563, %v2603
        %v2620 = vsel %vm2588, %v2568, %v2604
        %v2621 = vsel %vm2589, %v2571, %v2605
        %v2622 = vld [vmem:[%s576] sm:$0xf]
        %v2623 = vld [vmem:[%s576 + $0x4] sm:$0xf]
        %v2624 = vld [vmem:[%s576 + $0x8] sm:$0xf]
        %v2625 = vld [vmem:[%s576 + $0xc] sm:$0xf]
        %v2626 = vld [vmem:[%s576 + $0x10] sm:$0xf]
        %v2627 = vld [vmem:[%s576 + $0x14] sm:$0xf]
        %v2628 = vld [vmem:[%s576 + $0x18] sm:$0xf]
        %v2629 = vld [vmem:[%s576 + $0x1c] sm:$0xf]
        %v2630 = vld [vmem:[%s576 + $0x20] sm:$0xf]
        %v2631 = vld [vmem:[%s576 + $0x24] sm:$0xf]
        %v2632 = vld [vmem:[%s576 + $0x28] sm:$0xf]
        %v2633 = vld [vmem:[%s576 + $0x2c] sm:$0xf]
        %v2634 = vld [vmem:[%s576 + $0x30] sm:$0xf]
        %v2635 = vld [vmem:[%s576 + $0x34] sm:$0xf]
        %v2636 = vld [vmem:[%s576 + $0x38] sm:$0xf]
        %v2637 = vld [vmem:[%s576 + $0x3c] sm:$0xf]
        %v2638 = vld [vmem:[%s8] sm:$0xf]
        %v2639 = vld [vmem:[%s9] sm:$0x1]
        %v2641 = vlaneseq
        %v2642 = vshrl.u32 %v2641, 7
        %v2643 = vsub.s32 0, %v2642
        %v2644 = vrot.slane %v2639, %v2643
        %v2662 = vunpack.c.l.b16 %v2622
        %v2663 = vunpack.c.l.b16 %v2623
        %v2664 = vunpack.c.l.b16 %v2624
        %v2665 = vunpack.c.l.b16 %v2625
        %v2666 = vunpack.c.l.b16 %v2626
        %v2667 = vunpack.c.l.b16 %v2627
        %v2668 = vunpack.c.l.b16 %v2628
        %v2669 = vunpack.c.l.b16 %v2629
        %v2670 = vunpack.c.l.b16 %v2630
        %v2671 = vunpack.c.l.b16 %v2631
        %v2672 = vunpack.c.l.b16 %v2632
        %v2673 = vunpack.c.l.b16 %v2633
        %v2674 = vunpack.c.l.b16 %v2634
        %v2675 = vunpack.c.l.b16 %v2635
        %v2676 = vunpack.c.l.b16 %v2636
        %v2677 = vunpack.c.l.b16 %v2637
        %v2678 = vpack.c.b16 %v2663, %v2662
        %v2679 = vpack.c.b16 %v2665, %v2664
        %v2680 = vpack.c.b16 %v2667, %v2666
        %v2681 = vpack.c.b16 %v2669, %v2668
        %v2682 = vpack.c.b16 %v2671, %v2670
        %v2683 = vpack.c.b16 %v2673, %v2672
        %v2684 = vpack.c.b16 %v2675, %v2674
        %v2685 = vpack.c.b16 %v2677, %v2676
        %vm2686 = vcmask 64512
        %v2688 = vsel %vm2686, %v2678, 0
        %v2691 = vsel %vm2686, %v2679, 0
        %v2694 = vsel %vm2686, %v2680, 0
        %v2697 = vsel %vm2686, %v2681, 0
        %v2700 = vsel %vm2686, %v2682, 0
        %v2703 = vsel %vm2686, %v2683, 0
        %v2706 = vsel %vm2686, %v2684, 0
        %v2709 = vsel %vm2686, %v2685, 0
        %vm2711 = vcmask 1043456
        %v2713 = vsel %vm2711, %v2638, 0
        %2715 = vmatprep.subr.bf16.mxu0 0
        %2716 = vmatpush1.bf16.msra.mxu0 %v2713
        %2717 = vmatprep.subr.bf16.mxu0 0
        %2718 = vmatpush1.bf16.msra.mxu0 0
        %2719 = vmatprep.subr.bf16.mxu0 0
        %2720 = vmatpush1.bf16.msra.mxu0 0
        %2721 = vmatprep.subr.bf16.mxu0 0
        %2722 = vmatpush1.bf16.msra.mxu0 0
        %2723 = vmatprep.subr.bf16.mxu0 0
        %2724 = vmatpush1.bf16.msra.mxu0 0
        %2725 = vmatprep.subr.bf16.mxu0 0
        %2726 = vmatpush1.bf16.msra.mxu0 0
        %2727 = vmatprep.subr.bf16.mxu0 0
        %2728 = vmatpush1.bf16.msra.mxu0 0
        %2729 = vmatprep.subr.bf16.mxu0 0
        %2730 = vmatpush1.bf16.msra.mxu0 0
        %2731 = vmatprep.subr.bf16.mxu0 0
        %2732 = vmatpush1.bf16.msra.mxu0 0
        %2733 = vmatprep.subr.bf16.mxu0 0
        %2734 = vmatpush1.bf16.msra.mxu0 0
        %2735 = vmatprep.subr.bf16.mxu0 0
        %2736 = vmatpush1.bf16.msra.mxu0 0
        %2737 = vmatprep.subr.bf16.mxu0 0
        %2738 = vmatpush1.bf16.msra.mxu0 0
        %2739 = vmatprep.subr.bf16.mxu0 0
        %2740 = vmatpush1.bf16.msra.mxu0 0
        %2741 = vmatprep.subr.bf16.mxu0 0
        %2742 = vmatpush1.bf16.msra.mxu0 0
        %2743 = vmatprep.subr.bf16.mxu0 0
        %2744 = vmatpush1.bf16.msra.mxu0 0
        %2745 = vmatprep.subr.bf16.mxu0 0
        %2746 = vmatpush1.bf16.msra.mxu0 0
        %2747 = vmatprep.mubr.bf16.mxu0 0
        %2748 = vmatmul.mubr.bf16.gmra.mrb[0].mxu0 %v2688
        %v2749 = vpop.f32.mrb[0].mxu0
        %v2750 = vadd.f32 %v2644, %v2749
        %v2751 = vpop.f32.mrb[0].mxu0
        %v2752 = vpop.f32.mrb[0].mxu0
        %v2753 = vadd.f32 %v2644, %v2752
        %v2754 = vpop.f32.mrb[0].mxu0
        %2755 = vmatprep.mubr.bf16.mxu0 0
        %2756 = vmatmul.mubr.bf16.gmra.mrb[0].mxu0 %v2691
        %v2757 = vpop.f32.mrb[0].mxu0
        %v2758 = vadd.f32 %v2644, %v2757
        %v2759 = vpop.f32.mrb[0].mxu0
        %v2760 = vpop.f32.mrb[0].mxu0
        %v2761 = vadd.f32 %v2644, %v2760
        %v2762 = vpop.f32.mrb[0].mxu0
        %2763 = vmatprep.mubr.bf16.mxu0 0
        %2764 = vmatmul.mubr.bf16.gmra.mrb[0].mxu0 %v2694
        %v2765 = vpop.f32.mrb[0].mxu0
        %v2766 = vadd.f32 %v2644, %v2765
        %v2767 = vpop.f32.mrb[0].mxu0
        %v2768 = vpop.f32.mrb[0].mxu0
        %v2769 = vadd.f32 %v2644, %v2768
        %v2770 = vpop.f32.mrb[0].mxu0
        %2771 = vmatprep.mubr.bf16.mxu0 0
        %2772 = vmatmul.mubr.bf16.gmra.mrb[0].mxu0 %v2697
        %v2773 = vpop.f32.mrb[0].mxu0
        %v2774 = vadd.f32 %v2644, %v2773
        %v2775 = vpop.f32.mrb[0].mxu0
        %v2776 = vpop.f32.mrb[0].mxu0
        %v2777 = vadd.f32 %v2644, %v2776
        %v2778 = vpop.f32.mrb[0].mxu0
        %2779 = vmatprep.mubr.bf16.mxu0 0
        %2780 = vmatmul.mubr.bf16.gmra.mrb[0].mxu0 %v2700
        %v2781 = vpop.f32.mrb[0].mxu0
        %v2782 = vadd.f32 %v2644, %v2781
        %v2783 = vpop.f32.mrb[0].mxu0
        %v2784 = vpop.f32.mrb[0].mxu0
        %v2785 = vadd.f32 %v2644, %v2784
        %v2786 = vpop.f32.mrb[0].mxu0
        %2787 = vmatprep.mubr.bf16.mxu0 0
        %2788 = vmatmul.mubr.bf16.gmra.mrb[0].mxu0 %v2703
        %v2789 = vpop.f32.mrb[0].mxu0
        %v2790 = vadd.f32 %v2644, %v2789
        %v2791 = vpop.f32.mrb[0].mxu0
        %v2792 = vpop.f32.mrb[0].mxu0
        %v2793 = vadd.f32 %v2644, %v2792
        %v2794 = vpop.f32.mrb[0].mxu0
        %2795 = vmatprep.mubr.bf16.mxu0 0
        %2796 = vmatmul.mubr.bf16.gmra.mrb[0].mxu0 %v2706
        %v2797 = vpop.f32.mrb[0].mxu0
        %v2798 = vadd.f32 %v2644, %v2797
        %v2799 = vpop.f32.mrb[0].mxu0
        %v2800 = vpop.f32.mrb[0].mxu0
        %v2801 = vadd.f32 %v2644, %v2800
        %v2802 = vpop.f32.mrb[0].mxu0
        %2803 = vmatprep.mubr.bf16.mxu0 0
        %2804 = vmatmul.mubr.bf16.gmra.mrb[0].mxu0 %v2709
        %v2805 = vpop.f32.mrb[0].mxu0
        %v2806 = vadd.f32 %v2644, %v2805
        %v2807 = vpop.f32.mrb[0].mxu0
        %v2808 = vpop.f32.mrb[0].mxu0
        %v2809 = vadd.f32 %v2644, %v2808
        %v2810 = vpop.f32.mrb[0].mxu0
        %2811 = vdwg.mxu0
        %vm2812 = vcmp.gt.f32.partialorder %v2750, 0.0
        %vm2813 = vcmp.gt.f32.partialorder %v2753, 0.0
        %vm2814 = vcmp.gt.f32.partialorder %v2758, 0.0
        %vm2815 = vcmp.gt.f32.partialorder %v2761, 0.0
        %vm2816 = vcmp.gt.f32.partialorder %v2766, 0.0
        %vm2817 = vcmp.gt.f32.partialorder %v2769, 0.0
        %vm2818 = vcmp.gt.f32.partialorder %v2774, 0.0
        %vm2819 = vcmp.gt.f32.partialorder %v2777, 0.0
        %vm2820 = vcmp.gt.f32.partialorder %v2782, 0.0
        %vm2821 = vcmp.gt.f32.partialorder %v2785, 0.0
        %vm2822 = vcmp.gt.f32.partialorder %v2790, 0.0
        %vm2823 = vcmp.gt.f32.partialorder %v2793, 0.0
        %vm2824 = vcmp.gt.f32.partialorder %v2798, 0.0
        %vm2825 = vcmp.gt.f32.partialorder %v2801, 0.0
        %vm2826 = vcmp.gt.f32.partialorder %v2806, 0.0
        %vm2827 = vcmp.gt.f32.partialorder %v2809, 0.0
        %v2828 = vmul.f32 %v2750, 0.01
        %v2829 = vmul.f32 %v2753, 0.01
        %v2830 = vmul.f32 %v2758, 0.01
        %v2831 = vmul.f32 %v2761, 0.01
        %v2832 = vmul.f32 %v2766, 0.01
        %v2833 = vmul.f32 %v2769, 0.01
        %v2834 = vmul.f32 %v2774, 0.01
        %v2835 = vmul.f32 %v2777, 0.01
        %v2836 = vmul.f32 %v2782, 0.01
        %v2837 = vmul.f32 %v2785, 0.01
        %v2838 = vmul.f32 %v2790, 0.01
        %v2839 = vmul.f32 %v2793, 0.01
        %v2840 = vmul.f32 %v2798, 0.01
        %v2841 = vmul.f32 %v2801, 0.01
        %v2842 = vmul.f32 %v2806, 0.01
        %v2843 = vmul.f32 %v2809, 0.01
        %v2844 = vsel %vm2812, %v2750, %v2828
        %v2845 = vsel %vm2813, %v2753, %v2829
        %v2846 = vsel %vm2814, %v2758, %v2830
        %v2847 = vsel %vm2815, %v2761, %v2831
        %v2848 = vsel %vm2816, %v2766, %v2832
        %v2849 = vsel %vm2817, %v2769, %v2833
        %v2850 = vsel %vm2818, %v2774, %v2834
        %v2851 = vsel %vm2819, %v2777, %v2835
        %v2852 = vsel %vm2820, %v2782, %v2836
        %v2853 = vsel %vm2821, %v2785, %v2837
        %v2854 = vsel %vm2822, %v2790, %v2838
        %v2855 = vsel %vm2823, %v2793, %v2839
        %v2856 = vsel %vm2824, %v2798, %v2840
        %v2857 = vsel %vm2825, %v2801, %v2841
        %v2858 = vsel %vm2826, %v2806, %v2842
        %v2859 = vsel %vm2827, %v2809, %v2843
        %v2860 = vld [vmem:[%s10] sm:$0xff]
        %v2861 = vld [vmem:[%s11] sm:$0xff]
        %v2863 = vsel %vm2686, %v2606, 0
        %v2866 = vsel %vm2686, %v2607, 0
        %v2869 = vsel %vm2686, %v2608, 0
        %v2872 = vsel %vm2686, %v2609, 0
        %v2875 = vsel %vm2686, %v2610, 0
        %v2878 = vsel %vm2686, %v2611, 0
        %v2881 = vsel %vm2686, %v2612, 0
        %v2884 = vsel %vm2686, %v2613, 0
        %v2887 = vsel %vm2686, %v2614, 0
        %v2890 = vsel %vm2686, %v2615, 0
        %v2893 = vsel %vm2686, %v2616, 0
        %v2896 = vsel %vm2686, %v2617, 0
        %v2899 = vsel %vm2686, %v2618, 0
        %v2902 = vsel %vm2686, %v2619, 0
        %v2905 = vsel %vm2686, %v2620, 0
        %v2908 = vsel %vm2686, %v2621, 0
        %2910 = vmatprep.subr.mxu0 0.0
        %2911 = vmatpush1.msra.mxu0 %v2861
        %2912 = vmatprep.subr.mxu0 0.0
        %2913 = vmatpush1.msra.mxu0 0.0
        %2914 = vmatprep.subr.mxu0 0.0
        %2915 = vmatpush1.msra.mxu0 0.0
        %2916 = vmatprep.subr.mxu0 0.0
        %2917 = vmatpush1.msra.mxu0 0.0
        %2918 = vmatprep.subr.mxu0 0.0
        %2919 = vmatpush1.msra.mxu0 0.0
        %2920 = vmatprep.subr.mxu0 0.0
        %2921 = vmatpush1.msra.mxu0 0.0
        %2922 = vmatprep.subr.mxu0 0.0
        %2923 = vmatpush1.msra.mxu0 0.0
        %2924 = vmatprep.subr.mxu0 0.0
        %2925 = vmatpush1.msra.mxu0 0.0
        %2926 = vmatprep.subr.mxu0 0.0
        %2927 = vmatpush1.msra.mxu0 0.0
        %2928 = vmatprep.subr.mxu0 0.0
        %2929 = vmatpush1.msra.mxu0 0.0
        %2930 = vmatprep.subr.mxu0 0.0
        %2931 = vmatpush1.msra.mxu0 0.0
        %2932 = vmatprep.subr.mxu0 0.0
        %2933 = vmatpush1.msra.mxu0 0.0
        %2934 = vmatprep.subr.mxu0 0.0
        %2935 = vmatpush1.msra.mxu0 0.0
        %2936 = vmatprep.subr.mxu0 0.0
        %2937 = vmatpush1.msra.mxu0 0.0
        %2938 = vmatprep.subr.mxu0 0.0
        %2939 = vmatpush1.msra.mxu0 0.0
        %2940 = vmatprep.subr.mxu0 0.0
        %2941 = vmatpush1.msra.mxu0 0.0
        %2942 = vmatprep.subr.mxu0 0.0
        %2943 = vmatpush1.msra.mxu0 0.0
        %2944 = vmatprep.subr.mxu0 0.0
        %2945 = vmatpush1.msra.mxu0 0.0
        %2946 = vmatprep.subr.mxu0 0.0
        %2947 = vmatpush1.msra.mxu0 0.0
        %2948 = vmatprep.subr.mxu0 0.0
        %2949 = vmatpush1.msra.mxu0 0.0
        %2950 = vmatprep.subr.mxu0 0.0
        %2951 = vmatpush1.msra.mxu0 0.0
        %2952 = vmatprep.subr.mxu0 0.0
        %2953 = vmatpush1.msra.mxu0 0.0
        %2954 = vmatprep.subr.mxu0 0.0
        %2955 = vmatpush1.msra.mxu0 0.0
        %2956 = vmatprep.subr.mxu0 0.0
        %2957 = vmatpush1.msra.mxu0 0.0
        %2958 = vmatprep.subr.mxu0 0.0
        %2959 = vmatpush1.msra.mxu0 0.0
        %2960 = vmatprep.subr.mxu0 0.0
        %2961 = vmatpush1.msra.mxu0 0.0
        %2962 = vmatprep.subr.mxu0 0.0
        %2963 = vmatpush1.msra.mxu0 0.0
        %2964 = vmatprep.subr.mxu0 0.0
        %2965 = vmatpush1.msra.mxu0 0.0
        %2966 = vmatprep.subr.mxu0 0.0
        %2967 = vmatpush1.msra.mxu0 0.0
        %2968 = vmatprep.subr.mxu0 0.0
        %2969 = vmatpush1.msra.mxu0 0.0
        %2970 = vmatprep.subr.mxu0 0.0
        %2971 = vmatpush1.msra.mxu0 0.0
        %2972 = vmatprep.subr.mxu0 0.0
        %2973 = vmatpush1.msra.mxu0 0.0
        %2974 = vmatprep.mubr.f32.mxu0 0.0
        %2975 = vmatmul.mubr.f32.gmra.mrb[0].mxu0 %v2863
        %v2976 = vpop.f32.mrb[0].mxu0
        %v2977 = vadd.f32 0.0, %v2976
        %v2978 = vpop.f32.mrb[0].mxu0
        %2979 = vmatprep.mubr.f32.mxu0 0.0
        %2980 = vmatmul.mubr.f32.gmra.mrb[0].mxu0 %v2866
        %v2981 = vpop.f32.mrb[0].mxu0
        %v2982 = vadd.f32 0.0, %v2981
        %v2983 = vpop.f32.mrb[0].mxu0
        %2984 = vmatprep.mubr.f32.mxu0 0.0
        %2985 = vmatmul.mubr.f32.gmra.mrb[0].mxu0 %v2869
        %v2986 = vpop.f32.mrb[0].mxu0
        %v2987 = vadd.f32 0.0, %v2986
        %v2988 = vpop.f32.mrb[0].mxu0
        %2989 = vmatprep.mubr.f32.mxu0 0.0
        %2990 = vmatmul.mubr.f32.gmra.mrb[0].mxu0 %v2872
        %v2991 = vpop.f32.mrb[0].mxu0
        %v2992 = vadd.f32 0.0, %v2991
        %v2993 = vpop.f32.mrb[0].mxu0
        %2994 = vmatprep.mubr.f32.mxu0 0.0
        %2995 = vmatmul.mubr.f32.gmra.mrb[0].mxu0 %v2875
        %v2996 = vpop.f32.mrb[0].mxu0
        %v2997 = vadd.f32 0.0, %v2996
        %v2998 = vpop.f32.mrb[0].mxu0
        %2999 = vmatprep.mubr.f32.mxu0 0.0
        %3000 = vmatmul.mubr.f32.gmra.mrb[0].mxu0 %v2878
        %v3001 = vpop.f32.mrb[0].mxu0
        %v3002 = vadd.f32 0.0, %v3001
        %v3003 = vpop.f32.mrb[0].mxu0
        %3004 = vmatprep.mubr.f32.mxu0 0.0
        %3005 = vmatmul.mubr.f32.gmra.mrb[0].mxu0 %v2881
        %v3006 = vpop.f32.mrb[0].mxu0
        %v3007 = vadd.f32 0.0, %v3006
        %v3008 = vpop.f32.mrb[0].mxu0
        %3009 = vmatprep.mubr.f32.mxu0 0.0
        %3010 = vmatmul.mubr.f32.gmra.mrb[0].mxu0 %v2884
        %v3011 = vpop.f32.mrb[0].mxu0
        %v3012 = vadd.f32 0.0, %v3011
        %v3013 = vpop.f32.mrb[0].mxu0
        %3014 = vmatprep.mubr.f32.mxu0 0.0
        %3015 = vmatmul.mubr.f32.gmra.mrb[0].mxu0 %v2887
        %v3016 = vpop.f32.mrb[0].mxu0
        %v3017 = vadd.f32 0.0, %v3016
        %v3018 = vpop.f32.mrb[0].mxu0
        %3019 = vmatprep.mubr.f32.mxu0 0.0
        %3020 = vmatmul.mubr.f32.gmra.mrb[0].mxu0 %v2890
        %v3021 = vpop.f32.mrb[0].mxu0
        %v3022 = vadd.f32 0.0, %v3021
        %v3023 = vpop.f32.mrb[0].mxu0
        %3024 = vmatprep.mubr.f32.mxu0 0.0
        %3025 = vmatmul.mubr.f32.gmra.mrb[0].mxu0 %v2893
        %v3026 = vpop.f32.mrb[0].mxu0
        %v3027 = vadd.f32 0.0, %v3026
        %v3028 = vpop.f32.mrb[0].mxu0
        %3029 = vmatprep.mubr.f32.mxu0 0.0
        %3030 = vmatmul.mubr.f32.gmra.mrb[0].mxu0 %v2896
        %v3031 = vpop.f32.mrb[0].mxu0
        %v3032 = vadd.f32 0.0, %v3031
        %v3033 = vpop.f32.mrb[0].mxu0
        %3034 = vmatprep.mubr.f32.mxu0 0.0
        %3035 = vmatmul.mubr.f32.gmra.mrb[0].mxu0 %v2899
        %v3036 = vpop.f32.mrb[0].mxu0
        %v3037 = vadd.f32 0.0, %v3036
        %v3038 = vpop.f32.mrb[0].mxu0
        %3039 = vmatprep.mubr.f32.mxu0 0.0
        %3040 = vmatmul.mubr.f32.gmra.mrb[0].mxu0 %v2902
        %v3041 = vpop.f32.mrb[0].mxu0
        %v3042 = vadd.f32 0.0, %v3041
        %v3043 = vpop.f32.mrb[0].mxu0
        %3044 = vmatprep.mubr.f32.mxu0 0.0
        %3045 = vmatmul.mubr.f32.gmra.mrb[0].mxu0 %v2905
        %v3046 = vpop.f32.mrb[0].mxu0
        %v3047 = vadd.f32 0.0, %v3046
        %v3048 = vpop.f32.mrb[0].mxu0
        %3049 = vmatprep.mubr.f32.mxu0 0.0
        %3050 = vmatmul.mubr.f32.gmra.mrb[0].mxu0 %v2908
        %v3051 = vpop.f32.mrb[0].mxu0
        %v3052 = vadd.f32 0.0, %v3051
        %v3053 = vpop.f32.mrb[0].mxu0
        %3054 = vdwg.mxu0
        %v3056 = vsel %vm2686, %v1588, 0
        %v3059 = vsel %vm2686, %v1589, 0
        %v3062 = vsel %vm2686, %v1590, 0
        %v3065 = vsel %vm2686, %v1591, 0
        %v3068 = vsel %vm2686, %v1592, 0
        %v3071 = vsel %vm2686, %v1593, 0
        %v3074 = vsel %vm2686, %v1594, 0
        %v3077 = vsel %vm2686, %v1595, 0
        %v3080 = vsel %vm2686, %v1596, 0
        %v3083 = vsel %vm2686, %v1597, 0
        %v3086 = vsel %vm2686, %v1598, 0
        %v3089 = vsel %vm2686, %v1599, 0
        %v3092 = vsel %vm2686, %v1600, 0
        %v3095 = vsel %vm2686, %v1601, 0
        %v3098 = vsel %vm2686, %v1602, 0
        %v3101 = vsel %vm2686, %v1603, 0
        %3103 = vmatprep.subr.mxu0 0.0
        %3104 = vmatpush1.msra.mxu0 %v2860
        %3105 = vmatprep.subr.mxu0 0.0
        %3106 = vmatpush1.msra.mxu0 0.0
        %3107 = vmatprep.subr.mxu0 0.0
        %3108 = vmatpush1.msra.mxu0 0.0
        %3109 = vmatprep.subr.mxu0 0.0
        %3110 = vmatpush1.msra.mxu0 0.0
        %3111 = vmatprep.subr.mxu0 0.0
        %3112 = vmatpush1.msra.mxu0 0.0
        %3113 = vmatprep.subr.mxu0 0.0
        %3114 = vmatpush1.msra.mxu0 0.0
        %3115 = vmatprep.subr.mxu0 0.0
        %3116 = vmatpush1.msra.mxu0 0.0
        %3117 = vmatprep.subr.mxu0 0.0
        %3118 = vmatpush1.msra.mxu0 0.0
        %3119 = vmatprep.subr.mxu0 0.0
        %3120 = vmatpush1.msra.mxu0 0.0
        %3121 = vmatprep.subr.mxu0 0.0
        %3122 = vmatpush1.msra.mxu0 0.0
        %3123 = vmatprep.subr.mxu0 0.0
        %3124 = vmatpush1.msra.mxu0 0.0
        %3125 = vmatprep.subr.mxu0 0.0
        %3126 = vmatpush1.msra.mxu0 0.0
        %3127 = vmatprep.subr.mxu0 0.0
        %3128 = vmatpush1.msra.mxu0 0.0
        %3129 = vmatprep.subr.mxu0 0.0
        %3130 = vmatpush1.msra.mxu0 0.0
        %3131 = vmatprep.subr.mxu0 0.0
        %3132 = vmatpush1.msra.mxu0 0.0
        %3133 = vmatprep.subr.mxu0 0.0
        %3134 = vmatpush1.msra.mxu0 0.0
        %3135 = vmatprep.subr.mxu0 0.0
        %3136 = vmatpush1.msra.mxu0 0.0
        %3137 = vmatprep.subr.mxu0 0.0
        %3138 = vmatpush1.msra.mxu0 0.0
        %3139 = vmatprep.subr.mxu0 0.0
        %3140 = vmatpush1.msra.mxu0 0.0
        %3141 = vmatprep.subr.mxu0 0.0
        %3142 = vmatpush1.msra.mxu0 0.0
        %3143 = vmatprep.subr.mxu0 0.0
        %3144 = vmatpush1.msra.mxu0 0.0
        %3145 = vmatprep.subr.mxu0 0.0
        %3146 = vmatpush1.msra.mxu0 0.0
        %3147 = vmatprep.subr.mxu0 0.0
        %3148 = vmatpush1.msra.mxu0 0.0
        %3149 = vmatprep.subr.mxu0 0.0
        %3150 = vmatpush1.msra.mxu0 0.0
        %3151 = vmatprep.subr.mxu0 0.0
        %3152 = vmatpush1.msra.mxu0 0.0
        %3153 = vmatprep.subr.mxu0 0.0
        %3154 = vmatpush1.msra.mxu0 0.0
        %3155 = vmatprep.subr.mxu0 0.0
        %3156 = vmatpush1.msra.mxu0 0.0
        %3157 = vmatprep.subr.mxu0 0.0
        %3158 = vmatpush1.msra.mxu0 0.0
        %3159 = vmatprep.subr.mxu0 0.0
        %3160 = vmatpush1.msra.mxu0 0.0
        %3161 = vmatprep.subr.mxu0 0.0
        %3162 = vmatpush1.msra.mxu0 0.0
        %3163 = vmatprep.subr.mxu0 0.0
        %3164 = vmatpush1.msra.mxu0 0.0
        %3165 = vmatprep.subr.mxu0 0.0
        %3166 = vmatpush1.msra.mxu0 0.0
        %3167 = vmatprep.mubr.f32.mxu0 0.0
        %3168 = vmatmul.mubr.f32.gmra.mrb[0].mxu0 %v3056
        %v3169 = vpop.f32.mrb[0].mxu0
        %v3170 = vadd.f32 %v2977, %v3169
        %v3171 = vpop.f32.mrb[0].mxu0
        %3172 = vmatprep.mubr.f32.mxu0 0.0
        %3173 = vmatmul.mubr.f32.gmra.mrb[0].mxu0 %v3059
        %v3174 = vpop.f32.mrb[0].mxu0
        %v3175 = vadd.f32 %v2982, %v3174
        %v3176 = vpop.f32.mrb[0].mxu0
        %3177 = vmatprep.mubr.f32.mxu0 0.0
        %3178 = vmatmul.mubr.f32.gmra.mrb[0].mxu0 %v3062
        %v3179 = vpop.f32.mrb[0].mxu0
        %v3180 = vadd.f32 %v2987, %v3179
        %v3181 = vpop.f32.mrb[0].mxu0
        %3182 = vmatprep.mubr.f32.mxu0 0.0
        %3183 = vmatmul.mubr.f32.gmra.mrb[0].mxu0 %v3065
        %v3184 = vpop.f32.mrb[0].mxu0
        %v3185 = vadd.f32 %v2992, %v3184
        %v3186 = vpop.f32.mrb[0].mxu0
        %3187 = vmatprep.mubr.f32.mxu0 0.0
        %3188 = vmatmul.mubr.f32.gmra.mrb[0].mxu0 %v3068
        %v3189 = vpop.f32.mrb[0].mxu0
        %v3190 = vadd.f32 %v2997, %v3189
        %v3191 = vpop.f32.mrb[0].mxu0
        %3192 = vmatprep.mubr.f32.mxu0 0.0
        %3193 = vmatmul.mubr.f32.gmra.mrb[0].mxu0 %v3071
        %v3194 = vpop.f32.mrb[0].mxu0
        %v3195 = vadd.f32 %v3002, %v3194
        %v3196 = vpop.f32.mrb[0].mxu0
        %3197 = vmatprep.mubr.f32.mxu0 0.0
        %3198 = vmatmul.mubr.f32.gmra.mrb[0].mxu0 %v3074
        %v3199 = vpop.f32.mrb[0].mxu0
        %v3200 = vadd.f32 %v3007, %v3199
        %v3201 = vpop.f32.mrb[0].mxu0
        %3202 = vmatprep.mubr.f32.mxu0 0.0
        %3203 = vmatmul.mubr.f32.gmra.mrb[0].mxu0 %v3077
        %v3204 = vpop.f32.mrb[0].mxu0
        %v3205 = vadd.f32 %v3012, %v3204
        %v3206 = vpop.f32.mrb[0].mxu0
        %3207 = vmatprep.mubr.f32.mxu0 0.0
        %3208 = vmatmul.mubr.f32.gmra.mrb[0].mxu0 %v3080
        %v3209 = vpop.f32.mrb[0].mxu0
        %v3210 = vadd.f32 %v3017, %v3209
        %v3211 = vpop.f32.mrb[0].mxu0
        %3212 = vmatprep.mubr.f32.mxu0 0.0
        %3213 = vmatmul.mubr.f32.gmra.mrb[0].mxu0 %v3083
        %v3214 = vpop.f32.mrb[0].mxu0
        %v3215 = vadd.f32 %v3022, %v3214
        %v3216 = vpop.f32.mrb[0].mxu0
        %3217 = vmatprep.mubr.f32.mxu0 0.0
        %3218 = vmatmul.mubr.f32.gmra.mrb[0].mxu0 %v3086
        %v3219 = vpop.f32.mrb[0].mxu0
        %v3220 = vadd.f32 %v3027, %v3219
        %v3221 = vpop.f32.mrb[0].mxu0
        %3222 = vmatprep.mubr.f32.mxu0 0.0
        %3223 = vmatmul.mubr.f32.gmra.mrb[0].mxu0 %v3089
        %v3224 = vpop.f32.mrb[0].mxu0
        %v3225 = vadd.f32 %v3032, %v3224
        %v3226 = vpop.f32.mrb[0].mxu0
        %3227 = vmatprep.mubr.f32.mxu0 0.0
        %3228 = vmatmul.mubr.f32.gmra.mrb[0].mxu0 %v3092
        %v3229 = vpop.f32.mrb[0].mxu0
        %v3230 = vadd.f32 %v3037, %v3229
        %v3231 = vpop.f32.mrb[0].mxu0
        %3232 = vmatprep.mubr.f32.mxu0 0.0
        %3233 = vmatmul.mubr.f32.gmra.mrb[0].mxu0 %v3095
        %v3234 = vpop.f32.mrb[0].mxu0
        %v3235 = vadd.f32 %v3042, %v3234
        %v3236 = vpop.f32.mrb[0].mxu0
        %3237 = vmatprep.mubr.f32.mxu0 0.0
        %3238 = vmatmul.mubr.f32.gmra.mrb[0].mxu0 %v3098
        %v3239 = vpop.f32.mrb[0].mxu0
        %v3240 = vadd.f32 %v3047, %v3239
        %v3241 = vpop.f32.mrb[0].mxu0
        %3242 = vmatprep.mubr.f32.mxu0 0.0
        %3243 = vmatmul.mubr.f32.gmra.mrb[0].mxu0 %v3101
        %v3244 = vpop.f32.mrb[0].mxu0
        %v3245 = vadd.f32 %v3052, %v3244
        %v3246 = vpop.f32.mrb[0].mxu0
        %3247 = vdwg.mxu0
        %v3248 = vld [vmem:[%s12] sm:$0xff]
        %v3249 = vld [vmem:[%s12 + $0x8] sm:$0xff]
        %vm3250 = vcmask 130048
        %v3252 = vsel %vm3250, %v2844, 0
        %v3255 = vsel %vm3250, %v2845, 0
        %v3258 = vsel %vm3250, %v2846, 0
        %v3261 = vsel %vm3250, %v2847, 0
        %v3264 = vsel %vm3250, %v2848, 0
        %v3267 = vsel %vm3250, %v2849, 0
        %v3270 = vsel %vm3250, %v2850, 0
        %v3273 = vsel %vm3250, %v2851, 0
        %v3276 = vsel %vm3250, %v2852, 0
        %v3279 = vsel %vm3250, %v2853, 0
        %v3282 = vsel %vm3250, %v2854, 0
        %v3285 = vsel %vm3250, %v2855, 0
        %v3288 = vsel %vm3250, %v2856, 0
        %v3291 = vsel %vm3250, %v2857, 0
        %v3294 = vsel %vm3250, %v2858, 0
        %v3297 = vsel %vm3250, %v2859, 0
        %3299 = vmatprep.subr.mxu0 0.0
        %3300 = vmatpush1.msra.mxu0 %v3248
        %3301 = vmatprep.subr.mxu0 0.0
        %3302 = vmatpush1.msra.mxu0 %v3249
        %3303 = vmatprep.subr.mxu0 0.0
        %3304 = vmatpush1.msra.mxu0 0.0
        %3305 = vmatprep.subr.mxu0 0.0
        %3306 = vmatpush1.msra.mxu0 0.0
        %3307 = vmatprep.subr.mxu0 0.0
        %3308 = vmatpush1.msra.mxu0 0.0
        %3309 = vmatprep.subr.mxu0 0.0
        %3310 = vmatpush1.msra.mxu0 0.0
        %3311 = vmatprep.subr.mxu0 0.0
        %3312 = vmatpush1.msra.mxu0 0.0
        %3313 = vmatprep.subr.mxu0 0.0
        %3314 = vmatpush1.msra.mxu0 0.0
        %3315 = vmatprep.subr.mxu0 0.0
        %3316 = vmatpush1.msra.mxu0 0.0
        %3317 = vmatprep.subr.mxu0 0.0
        %3318 = vmatpush1.msra.mxu0 0.0
        %3319 = vmatprep.subr.mxu0 0.0
        %3320 = vmatpush1.msra.mxu0 0.0
        %3321 = vmatprep.subr.mxu0 0.0
        %3322 = vmatpush1.msra.mxu0 0.0
        %3323 = vmatprep.subr.mxu0 0.0
        %3324 = vmatpush1.msra.mxu0 0.0
        %3325 = vmatprep.subr.mxu0 0.0
        %3326 = vmatpush1.msra.mxu0 0.0
        %3327 = vmatprep.subr.mxu0 0.0
        %3328 = vmatpush1.msra.mxu0 0.0
        %3329 = vmatprep.subr.mxu0 0.0
        %3330 = vmatpush1.msra.mxu0 0.0
        %3331 = vmatprep.subr.mxu0 0.0
        %3332 = vmatpush1.msra.mxu0 0.0
        %3333 = vmatprep.subr.mxu0 0.0
        %3334 = vmatpush1.msra.mxu0 0.0
        %3335 = vmatprep.subr.mxu0 0.0
        %3336 = vmatpush1.msra.mxu0 0.0
        %3337 = vmatprep.subr.mxu0 0.0
        %3338 = vmatpush1.msra.mxu0 0.0
        %3339 = vmatprep.subr.mxu0 0.0
        %3340 = vmatpush1.msra.mxu0 0.0
        %3341 = vmatprep.subr.mxu0 0.0
        %3342 = vmatpush1.msra.mxu0 0.0
        %3343 = vmatprep.subr.mxu0 0.0
        %3344 = vmatpush1.msra.mxu0 0.0
        %3345 = vmatprep.subr.mxu0 0.0
        %3346 = vmatpush1.msra.mxu0 0.0
        %3347 = vmatprep.subr.mxu0 0.0
        %3348 = vmatpush1.msra.mxu0 0.0
        %3349 = vmatprep.subr.mxu0 0.0
        %3350 = vmatpush1.msra.mxu0 0.0
        %3351 = vmatprep.subr.mxu0 0.0
        %3352 = vmatpush1.msra.mxu0 0.0
        %3353 = vmatprep.subr.mxu0 0.0
        %3354 = vmatpush1.msra.mxu0 0.0
        %3355 = vmatprep.subr.mxu0 0.0
        %3356 = vmatpush1.msra.mxu0 0.0
        %3357 = vmatprep.subr.mxu0 0.0
        %3358 = vmatpush1.msra.mxu0 0.0
        %3359 = vmatprep.subr.mxu0 0.0
        %3360 = vmatpush1.msra.mxu0 0.0
        %3361 = vmatprep.subr.mxu0 0.0
        %3362 = vmatpush1.msra.mxu0 0.0
        %3363 = vmatprep.mubr.f32.mxu0 0.0
        %3364 = vmatmul.mubr.f32.gmra.mrb[0].mxu0 %v3252
        %v3365 = vpop.f32.mrb[0].mxu0
        %v3366 = vadd.f32 0.0, %v3365
        %v3367 = vpop.f32.mrb[0].mxu0
        %3368 = vmatprep.mubr.f32.mxu0 0.0
        %3369 = vmatmul.mubr.f32.gmra.mrb[0].mxu0 %v3255
        %v3370 = vpop.f32.mrb[0].mxu0
        %v3371 = vadd.f32 0.0, %v3370
        %v3372 = vpop.f32.mrb[0].mxu0
        %3373 = vmatprep.mubr.f32.mxu0 0.0
        %3374 = vmatmul.mubr.f32.gmra.mrb[0].mxu0 %v3258
        %v3375 = vpop.f32.mrb[0].mxu0
        %v3376 = vadd.f32 0.0, %v3375
        %v3377 = vpop.f32.mrb[0].mxu0
        %3378 = vmatprep.mubr.f32.mxu0 0.0
        %3379 = vmatmul.mubr.f32.gmra.mrb[0].mxu0 %v3261
        %v3380 = vpop.f32.mrb[0].mxu0
        %v3381 = vadd.f32 0.0, %v3380
        %v3382 = vpop.f32.mrb[0].mxu0
        %3383 = vmatprep.mubr.f32.mxu0 0.0
        %3384 = vmatmul.mubr.f32.gmra.mrb[0].mxu0 %v3264
        %v3385 = vpop.f32.mrb[0].mxu0
        %v3386 = vadd.f32 0.0, %v3385
        %v3387 = vpop.f32.mrb[0].mxu0
        %3388 = vmatprep.mubr.f32.mxu0 0.0
        %3389 = vmatmul.mubr.f32.gmra.mrb[0].mxu0 %v3267
        %v3390 = vpop.f32.mrb[0].mxu0
        %v3391 = vadd.f32 0.0, %v3390
        %v3392 = vpop.f32.mrb[0].mxu0
        %3393 = vmatprep.mubr.f32.mxu0 0.0
        %3394 = vmatmul.mubr.f32.gmra.mrb[0].mxu0 %v3270
        %v3395 = vpop.f32.mrb[0].mxu0
        %v3396 = vadd.f32 0.0, %v3395
        %v3397 = vpop.f32.mrb[0].mxu0
        %3398 = vmatprep.mubr.f32.mxu0 0.0
        %3399 = vmatmul.mubr.f32.gmra.mrb[0].mxu0 %v3273
        %v3400 = vpop.f32.mrb[0].mxu0
        %v3401 = vadd.f32 0.0, %v3400
        %v3402 = vpop.f32.mrb[0].mxu0
        %3403 = vmatprep.mubr.f32.mxu0 0.0
        %3404 = vmatmul.mubr.f32.gmra.mrb[0].mxu0 %v3276
        %v3405 = vpop.f32.mrb[0].mxu0
        %v3406 = vadd.f32 0.0, %v3405
        %v3407 = vpop.f32.mrb[0].mxu0
        %3408 = vmatprep.mubr.f32.mxu0 0.0
        %3409 = vmatmul.mubr.f32.gmra.mrb[0].mxu0 %v3279
        %v3410 = vpop.f32.mrb[0].mxu0
        %v3411 = vadd.f32 0.0, %v3410
        %v3412 = vpop.f32.mrb[0].mxu0
        %3413 = vmatprep.mubr.f32.mxu0 0.0
        %3414 = vmatmul.mubr.f32.gmra.mrb[0].mxu0 %v3282
        %v3415 = vpop.f32.mrb[0].mxu0
        %v3416 = vadd.f32 0.0, %v3415
        %v3417 = vpop.f32.mrb[0].mxu0
        %3418 = vmatprep.mubr.f32.mxu0 0.0
        %3419 = vmatmul.mubr.f32.gmra.mrb[0].mxu0 %v3285
        %v3420 = vpop.f32.mrb[0].mxu0
        %v3421 = vadd.f32 0.0, %v3420
        %v3422 = vpop.f32.mrb[0].mxu0
        %3423 = vmatprep.mubr.f32.mxu0 0.0
        %3424 = vmatmul.mubr.f32.gmra.mrb[0].mxu0 %v3288
        %v3425 = vpop.f32.mrb[0].mxu0
        %v3426 = vadd.f32 0.0, %v3425
        %v3427 = vpop.f32.mrb[0].mxu0
        %3428 = vmatprep.mubr.f32.mxu0 0.0
        %3429 = vmatmul.mubr.f32.gmra.mrb[0].mxu0 %v3291
        %v3430 = vpop.f32.mrb[0].mxu0
        %v3431 = vadd.f32 0.0, %v3430
        %v3432 = vpop.f32.mrb[0].mxu0
        %3433 = vmatprep.mubr.f32.mxu0 0.0
        %3434 = vmatmul.mubr.f32.gmra.mrb[0].mxu0 %v3294
        %v3435 = vpop.f32.mrb[0].mxu0
        %v3436 = vadd.f32 0.0, %v3435
        %v3437 = vpop.f32.mrb[0].mxu0
        %3438 = vmatprep.mubr.f32.mxu0 0.0
        %3439 = vmatmul.mubr.f32.gmra.mrb[0].mxu0 %v3297
        %v3440 = vpop.f32.mrb[0].mxu0
        %v3441 = vadd.f32 0.0, %v3440
        %v3442 = vpop.f32.mrb[0].mxu0
        %3443 = vdwg.mxu0
        %v3444 = vadd.f32 %v3170, %v3366
        %v3445 = vadd.f32 %v3175, %v3371
        %v3446 = vadd.f32 %v3180, %v3376
        %v3447 = vadd.f32 %v3185, %v3381
        %v3448 = vadd.f32 %v3190, %v3386
        %v3449 = vadd.f32 %v3195, %v3391
        %v3450 = vadd.f32 %v3200, %v3396
        %v3451 = vadd.f32 %v3205, %v3401
        %v3452 = vadd.f32 %v3210, %v3406
        %v3453 = vadd.f32 %v3215, %v3411
        %v3454 = vadd.f32 %v3220, %v3416
        %v3455 = vadd.f32 %v3225, %v3421
        %v3456 = vadd.f32 %v3230, %v3426
        %v3457 = vadd.f32 %v3235, %v3431
        %v3458 = vadd.f32 %v3240, %v3436
        %v3459 = vadd.f32 %v3245, %v3441
        %v3460 = vld [vmem:[%s13] sm:$0x1]
        %v3462 = vlaneseq
        %v3463 = vshrl.u32 %v3462, 7
        %v3464 = vsub.s32 0, %v3463
        %v3465 = vrot.slane %v3460, %v3464
        %v3467 = vadd.f32 %v3444, %v3465
        %v3468 = vadd.f32 %v3445, %v3465
        %v3469 = vadd.f32 %v3446, %v3465
        %v3470 = vadd.f32 %v3447, %v3465
        %v3471 = vadd.f32 %v3448, %v3465
        %v3472 = vadd.f32 %v3449, %v3465
        %v3473 = vadd.f32 %v3450, %v3465
        %v3474 = vadd.f32 %v3451, %v3465
        %v3475 = vadd.f32 %v3452, %v3465
        %v3476 = vadd.f32 %v3453, %v3465
        %v3477 = vadd.f32 %v3454, %v3465
        %v3478 = vadd.f32 %v3455, %v3465
        %v3479 = vadd.f32 %v3456, %v3465
        %v3480 = vadd.f32 %v3457, %v3465
        %v3481 = vadd.f32 %v3458, %v3465
        %v3482 = vadd.f32 %v3459, %v3465
        %vm3483 = vcmp.gt.f32.partialorder %v3467, 0.0
        %vm3484 = vcmp.gt.f32.partialorder %v3468, 0.0
        %vm3485 = vcmp.gt.f32.partialorder %v3469, 0.0
        %vm3486 = vcmp.gt.f32.partialorder %v3470, 0.0
        %vm3487 = vcmp.gt.f32.partialorder %v3471, 0.0
        %vm3488 = vcmp.gt.f32.partialorder %v3472, 0.0
        %vm3489 = vcmp.gt.f32.partialorder %v3473, 0.0
        %vm3490 = vcmp.gt.f32.partialorder %v3474, 0.0
        %vm3491 = vcmp.gt.f32.partialorder %v3475, 0.0
        %vm3492 = vcmp.gt.f32.partialorder %v3476, 0.0
        %vm3493 = vcmp.gt.f32.partialorder %v3477, 0.0
        %vm3494 = vcmp.gt.f32.partialorder %v3478, 0.0
        %vm3495 = vcmp.gt.f32.partialorder %v3479, 0.0
        %vm3496 = vcmp.gt.f32.partialorder %v3480, 0.0
        %vm3497 = vcmp.gt.f32.partialorder %v3481, 0.0
        %vm3498 = vcmp.gt.f32.partialorder %v3482, 0.0
        %v3499 = vmul.f32 %v3467, 0.01
        %v3500 = vmul.f32 %v3468, 0.01
        %v3501 = vmul.f32 %v3469, 0.01
        %v3502 = vmul.f32 %v3470, 0.01
        %v3503 = vmul.f32 %v3471, 0.01
        %v3504 = vmul.f32 %v3472, 0.01
        %v3505 = vmul.f32 %v3473, 0.01
        %v3506 = vmul.f32 %v3474, 0.01
        %v3507 = vmul.f32 %v3475, 0.01
        %v3508 = vmul.f32 %v3476, 0.01
        %v3509 = vmul.f32 %v3477, 0.01
        %v3510 = vmul.f32 %v3478, 0.01
        %v3511 = vmul.f32 %v3479, 0.01
        %v3512 = vmul.f32 %v3480, 0.01
        %v3513 = vmul.f32 %v3481, 0.01
        %v3514 = vmul.f32 %v3482, 0.01
        %v3515 = vsel %vm3483, %v3467, %v3499
        %v3516 = vsel %vm3484, %v3468, %v3500
        %v3517 = vsel %vm3485, %v3469, %v3501
        %v3518 = vsel %vm3486, %v3470, %v3502
        %v3519 = vsel %vm3487, %v3471, %v3503
        %v3520 = vsel %vm3488, %v3472, %v3504
        %v3521 = vsel %vm3489, %v3473, %v3505
        %v3522 = vsel %vm3490, %v3474, %v3506
        %v3523 = vsel %vm3491, %v3475, %v3507
        %v3524 = vsel %vm3492, %v3476, %v3508
        %v3525 = vsel %vm3493, %v3477, %v3509
        %v3526 = vsel %vm3494, %v3478, %v3510
        %v3527 = vsel %vm3495, %v3479, %v3511
        %v3528 = vsel %vm3496, %v3480, %v3512
        %v3529 = vsel %vm3497, %v3481, %v3513
        %v3530 = vsel %vm3498, %v3482, %v3514
        %v3531 = vld [vmem:[%s582] sm:$0xff]
        %v3532 = vld [vmem:[%s582 + $0x8] sm:$0xff]
        %v3533 = vld [vmem:[%s582 + $0x10] sm:$0xff]
        %v3534 = vld [vmem:[%s582 + $0x18] sm:$0xff]
        %v3535 = vld [vmem:[%s582 + $0x20] sm:$0xff]
        %v3536 = vld [vmem:[%s582 + $0x28] sm:$0xff]
        %v3537 = vld [vmem:[%s582 + $0x30] sm:$0xff]
        %v3538 = vld [vmem:[%s582 + $0x38] sm:$0xff]
        %v3539 = vld [vmem:[%s582 + $0x40] sm:$0xff]
        %v3540 = vld [vmem:[%s582 + $0x48] sm:$0xff]
        %v3541 = vld [vmem:[%s582 + $0x50] sm:$0xff]
        %v3542 = vld [vmem:[%s582 + $0x58] sm:$0xff]
        %v3543 = vld [vmem:[%s582 + $0x60] sm:$0xff]
        %v3544 = vld [vmem:[%s582 + $0x68] sm:$0xff]
        %v3545 = vld [vmem:[%s582 + $0x70] sm:$0xff]
        %v3546 = vld [vmem:[%s582 + $0x78] sm:$0xff]
        %v3547 = vld [vmem:[%s14] sm:$0xff]
        %v3548 = vld [vmem:[%s14 + $0x8] sm:$0xff]
        %v3549 = vld [vmem:[%s14 + $0x10] sm:$0xff]
        %v3550 = vld [vmem:[%s14 + $0x18] sm:$0xff]
        %v3551 = vld [vmem:[%s14 + $0x20] sm:$0xff]
        %v3552 = vld [vmem:[%s14 + $0x28] sm:$0xff]
        %v3553 = vld [vmem:[%s14 + $0x30] sm:$0xff]
        %v3554 = vld [vmem:[%s14 + $0x38] sm:$0xff]
        %v3555 = vld [vmem:[%s14 + $0x40] sm:$0xff]
        %v3556 = vld [vmem:[%s14 + $0x48] sm:$0xff]
        %v3557 = vld [vmem:[%s14 + $0x50] sm:$0xff]
        %v3558 = vld [vmem:[%s14 + $0x58] sm:$0xff]
        %v3559 = vld [vmem:[%s14 + $0x60] sm:$0xff]
        %v3560 = vld [vmem:[%s14 + $0x68] sm:$0xff]
        %v3561 = vld [vmem:[%s14 + $0x70] sm:$0xff]
        %v3562 = vld [vmem:[%s14 + $0x78] sm:$0xff]
        %3563 = vmatprep.subr.mxu0 0.0
        %3564 = vmatpush1.msra.mxu0 %v3547
        %3565 = vmatprep.subr.mxu0 0.0
        %3566 = vmatpush1.msra.mxu0 %v3548
        %3567 = vmatprep.subr.mxu0 0.0
        %3568 = vmatpush1.msra.mxu0 %v3549
        %3569 = vmatprep.subr.mxu0 0.0
        %3570 = vmatpush1.msra.mxu0 %v3550
        %3571 = vmatprep.subr.mxu0 0.0
        %3572 = vmatpush1.msra.mxu0 %v3551
        %3573 = vmatprep.subr.mxu0 0.0
        %3574 = vmatpush1.msra.mxu0 %v3552
        %3575 = vmatprep.subr.mxu0 0.0
        %3576 = vmatpush1.msra.mxu0 %v3553
        %3577 = vmatprep.subr.mxu0 0.0
        %3578 = vmatpush1.msra.mxu0 %v3554
        %3579 = vmatprep.subr.mxu0 0.0
        %3580 = vmatpush1.msra.mxu0 %v3555
        %3581 = vmatprep.subr.mxu0 0.0
        %3582 = vmatpush1.msra.mxu0 %v3556
        %3583 = vmatprep.subr.mxu0 0.0
        %3584 = vmatpush1.msra.mxu0 %v3557
        %3585 = vmatprep.subr.mxu0 0.0
        %3586 = vmatpush1.msra.mxu0 %v3558
        %3587 = vmatprep.subr.mxu0 0.0
        %3588 = vmatpush1.msra.mxu0 %v3559
        %3589 = vmatprep.subr.mxu0 0.0
        %3590 = vmatpush1.msra.mxu0 %v3560
        %3591 = vmatprep.subr.mxu0 0.0
        %3592 = vmatpush1.msra.mxu0 %v3561
        %3593 = vmatprep.subr.mxu0 0.0
        %3594 = vmatpush1.msra.mxu0 %v3562
        %3595 = vmatprep.subr.mxu0 0.0
        %3596 = vmatpush1.msra.mxu0 0.0
        %3597 = vmatprep.subr.mxu0 0.0
        %3598 = vmatpush1.msra.mxu0 0.0
        %3599 = vmatprep.subr.mxu0 0.0
        %3600 = vmatpush1.msra.mxu0 0.0
        %3601 = vmatprep.subr.mxu0 0.0
        %3602 = vmatpush1.msra.mxu0 0.0
        %3603 = vmatprep.subr.mxu0 0.0
        %3604 = vmatpush1.msra.mxu0 0.0
        %3605 = vmatprep.subr.mxu0 0.0
        %3606 = vmatpush1.msra.mxu0 0.0
        %3607 = vmatprep.subr.mxu0 0.0
        %3608 = vmatpush1.msra.mxu0 0.0
        %3609 = vmatprep.subr.mxu0 0.0
        %3610 = vmatpush1.msra.mxu0 0.0
        %3611 = vmatprep.subr.mxu0 0.0
        %3612 = vmatpush1.msra.mxu0 0.0
        %3613 = vmatprep.subr.mxu0 0.0
        %3614 = vmatpush1.msra.mxu0 0.0
        %3615 = vmatprep.subr.mxu0 0.0
        %3616 = vmatpush1.msra.mxu0 0.0
        %3617 = vmatprep.subr.mxu0 0.0
        %3618 = vmatpush1.msra.mxu0 0.0
        %3619 = vmatprep.subr.mxu0 0.0
        %3620 = vmatpush1.msra.mxu0 0.0
        %3621 = vmatprep.subr.mxu0 0.0
        %3622 = vmatpush1.msra.mxu0 0.0
        %3623 = vmatprep.subr.mxu0 0.0
        %3624 = vmatpush1.msra.mxu0 0.0
        %3625 = vmatprep.subr.mxu0 0.0
        %3626 = vmatpush1.msra.mxu0 0.0
        %3627 = vmatprep.mubr.f32.mxu0 0.0
        %3628 = vmatmul.mubr.f32.gmra.mrb[0].mxu0 %v3515
        %v3629 = vpop.f32.mrb[0].mxu0
        %v3630 = vadd.f32 0.0, %v3629
        %v3631 = vpop.f32.mrb[0].mxu0
        %3632 = vmatprep.mubr.f32.mxu0 0.0
        %3633 = vmatmul.mubr.f32.gmra.mrb[0].mxu0 %v3516
        %v3634 = vpop.f32.mrb[0].mxu0
        %v3635 = vadd.f32 0.0, %v3634
        %v3636 = vpop.f32.mrb[0].mxu0
        %3637 = vmatprep.mubr.f32.mxu0 0.0
        %3638 = vmatmul.mubr.f32.gmra.mrb[0].mxu0 %v3517
        %v3639 = vpop.f32.mrb[0].mxu0
        %v3640 = vadd.f32 0.0, %v3639
        %v3641 = vpop.f32.mrb[0].mxu0
        %3642 = vmatprep.mubr.f32.mxu0 0.0
        %3643 = vmatmul.mubr.f32.gmra.mrb[0].mxu0 %v3518
        %v3644 = vpop.f32.mrb[0].mxu0
        %v3645 = vadd.f32 0.0, %v3644
        %v3646 = vpop.f32.mrb[0].mxu0
        %3647 = vmatprep.mubr.f32.mxu0 0.0
        %3648 = vmatmul.mubr.f32.gmra.mrb[0].mxu0 %v3519
        %v3649 = vpop.f32.mrb[0].mxu0
        %v3650 = vadd.f32 0.0, %v3649
        %v3651 = vpop.f32.mrb[0].mxu0
        %3652 = vmatprep.mubr.f32.mxu0 0.0
        %3653 = vmatmul.mubr.f32.gmra.mrb[0].mxu0 %v3520
        %v3654 = vpop.f32.mrb[0].mxu0
        %v3655 = vadd.f32 0.0, %v3654
        %v3656 = vpop.f32.mrb[0].mxu0
        %3657 = vmatprep.mubr.f32.mxu0 0.0
        %3658 = vmatmul.mubr.f32.gmra.mrb[0].mxu0 %v3521
        %v3659 = vpop.f32.mrb[0].mxu0
        %v3660 = vadd.f32 0.0, %v3659
        %v3661 = vpop.f32.mrb[0].mxu0
        %3662 = vmatprep.mubr.f32.mxu0 0.0
        %3663 = vmatmul.mubr.f32.gmra.mrb[0].mxu0 %v3522
        %v3664 = vpop.f32.mrb[0].mxu0
        %v3665 = vadd.f32 0.0, %v3664
        %v3666 = vpop.f32.mrb[0].mxu0
        %3667 = vmatprep.mubr.f32.mxu0 0.0
        %3668 = vmatmul.mubr.f32.gmra.mrb[0].mxu0 %v3523
        %v3669 = vpop.f32.mrb[0].mxu0
        %v3670 = vadd.f32 0.0, %v3669
        %v3671 = vpop.f32.mrb[0].mxu0
        %3672 = vmatprep.mubr.f32.mxu0 0.0
        %3673 = vmatmul.mubr.f32.gmra.mrb[0].mxu0 %v3524
        %v3674 = vpop.f32.mrb[0].mxu0
        %v3675 = vadd.f32 0.0, %v3674
        %v3676 = vpop.f32.mrb[0].mxu0
        %3677 = vmatprep.mubr.f32.mxu0 0.0
        %3678 = vmatmul.mubr.f32.gmra.mrb[0].mxu0 %v3525
        %v3679 = vpop.f32.mrb[0].mxu0
        %v3680 = vadd.f32 0.0, %v3679
        %v3681 = vpop.f32.mrb[0].mxu0
        %3682 = vmatprep.mubr.f32.mxu0 0.0
        %3683 = vmatmul.mubr.f32.gmra.mrb[0].mxu0 %v3526
        %v3684 = vpop.f32.mrb[0].mxu0
        %v3685 = vadd.f32 0.0, %v3684
        %v3686 = vpop.f32.mrb[0].mxu0
        %3687 = vmatprep.mubr.f32.mxu0 0.0
        %3688 = vmatmul.mubr.f32.gmra.mrb[0].mxu0 %v3527
        %v3689 = vpop.f32.mrb[0].mxu0
        %v3690 = vadd.f32 0.0, %v3689
        %v3691 = vpop.f32.mrb[0].mxu0
        %3692 = vmatprep.mubr.f32.mxu0 0.0
        %3693 = vmatmul.mubr.f32.gmra.mrb[0].mxu0 %v3528
        %v3694 = vpop.f32.mrb[0].mxu0
        %v3695 = vadd.f32 0.0, %v3694
        %v3696 = vpop.f32.mrb[0].mxu0
        %3697 = vmatprep.mubr.f32.mxu0 0.0
        %3698 = vmatmul.mubr.f32.gmra.mrb[0].mxu0 %v3529
        %v3699 = vpop.f32.mrb[0].mxu0
        %v3700 = vadd.f32 0.0, %v3699
        %v3701 = vpop.f32.mrb[0].mxu0
        %3702 = vmatprep.mubr.f32.mxu0 0.0
        %3703 = vmatmul.mubr.f32.gmra.mrb[0].mxu0 %v3530
        %v3704 = vpop.f32.mrb[0].mxu0
        %v3705 = vadd.f32 0.0, %v3704
        %v3706 = vpop.f32.mrb[0].mxu0
        %3707 = vdwg.mxu0
        %3709 = vset.pattern.permute.xlu0 0
        %3710 = vperm.xlu0 %3709, %v3531
        %v3711 = vpop.permute.xlu0 %3710
        %3714 = vset.pattern.permute.xlu0 0
        %3715 = vperm.xlu0 %3714, %v3532
        %v3716 = vpop.permute.xlu0 %3715
        %3719 = vset.pattern.permute.xlu0 0
        %3720 = vperm.xlu0 %3719, %v3533
        %v3721 = vpop.permute.xlu0 %3720
        %3724 = vset.pattern.permute.xlu0 0
        %3725 = vperm.xlu0 %3724, %v3534
        %v3726 = vpop.permute.xlu0 %3725
        %3729 = vset.pattern.permute.xlu0 0
        %3730 = vperm.xlu0 %3729, %v3535
        %v3731 = vpop.permute.xlu0 %3730
        %3734 = vset.pattern.permute.xlu0 0
        %3735 = vperm.xlu0 %3734, %v3536
        %v3736 = vpop.permute.xlu0 %3735
        %3739 = vset.pattern.permute.xlu0 0
        %3740 = vperm.xlu0 %3739, %v3537
        %v3741 = vpop.permute.xlu0 %3740
        %3744 = vset.pattern.permute.xlu0 0
        %3745 = vperm.xlu0 %3744, %v3538
        %v3746 = vpop.permute.xlu0 %3745
        %3749 = vset.pattern.permute.xlu0 0
        %3750 = vperm.xlu0 %3749, %v3539
        %v3751 = vpop.permute.xlu0 %3750
        %3754 = vset.pattern.permute.xlu0 0
        %3755 = vperm.xlu0 %3754, %v3540
        %v3756 = vpop.permute.xlu0 %3755
        %3759 = vset.pattern.permute.xlu0 0
        %3760 = vperm.xlu0 %3759, %v3541
        %v3761 = vpop.permute.xlu0 %3760
        %3764 = vset.pattern.permute.xlu0 0
        %3765 = vperm.xlu0 %3764, %v3542
        %v3766 = vpop.permute.xlu0 %3765
        %3769 = vset.pattern.permute.xlu0 0
        %3770 = vperm.xlu0 %3769, %v3543
        %v3771 = vpop.permute.xlu0 %3770
        %3774 = vset.pattern.permute.xlu0 0
        %3775 = vperm.xlu0 %3774, %v3544
        %v3776 = vpop.permute.xlu0 %3775
        %3779 = vset.pattern.permute.xlu0 0
        %3780 = vperm.xlu0 %3779, %v3545
        %v3781 = vpop.permute.xlu0 %3780
        %3784 = vset.pattern.permute.xlu0 0
        %3785 = vperm.xlu0 %3784, %v3546
        %v3786 = vpop.permute.xlu0 %3785
        %v3788 = vmul.f32 %v3711, %v3630
        %v3789 = vmul.f32 %v3716, %v3635
        %v3790 = vmul.f32 %v3721, %v3640
        %v3791 = vmul.f32 %v3726, %v3645
        %v3792 = vmul.f32 %v3731, %v3650
        %v3793 = vmul.f32 %v3736, %v3655
        %v3794 = vmul.f32 %v3741, %v3660
        %v3795 = vmul.f32 %v3746, %v3665
        %v3796 = vmul.f32 %v3751, %v3670
        %v3797 = vmul.f32 %v3756, %v3675
        %v3798 = vmul.f32 %v3761, %v3680
        %v3799 = vmul.f32 %v3766, %v3685
        %v3800 = vmul.f32 %v3771, %v3690
        %v3801 = vmul.f32 %v3776, %v3695
        %v3802 = vmul.f32 %v3781, %v3700
        %v3803 = vmul.f32 %v3786, %v3705
        %v3804 = vpack.c.bf16 %v3789, %v3788
        %v3805 = vpack.c.bf16 %v3791, %v3790
        %v3806 = vpack.c.bf16 %v3793, %v3792
        %v3807 = vpack.c.bf16 %v3795, %v3794
        %v3808 = vpack.c.bf16 %v3797, %v3796
        %v3809 = vpack.c.bf16 %v3799, %v3798
        %v3810 = vpack.c.bf16 %v3801, %v3800
        %v3811 = vpack.c.bf16 %v3803, %v3802
        %v3820 = vunpack.c.l.b16 %v3804
        %v3821 = vunpack.c.h.b16 %v3804
        %v3822 = vunpack.c.l.b16 %v3805
        %v3823 = vunpack.c.h.b16 %v3805
        %v3824 = vunpack.c.l.b16 %v3806
        %v3825 = vunpack.c.h.b16 %v3806
        %v3826 = vunpack.c.l.b16 %v3807
        %v3827 = vunpack.c.h.b16 %v3807
        %v3828 = vunpack.c.l.b16 %v3808
        %v3829 = vunpack.c.h.b16 %v3808
        %v3830 = vunpack.c.l.b16 %v3809
        %v3831 = vunpack.c.h.b16 %v3809
        %v3832 = vunpack.c.l.b16 %v3810
        %v3833 = vunpack.c.h.b16 %v3810
        %v3834 = vunpack.c.l.b16 %v3811
        %v3835 = vunpack.c.h.b16 %v3811
        %v3836 = vpack.c.b16 %v3820, %v3820
        %v3837 = vpack.c.b16 %v3821, %v3821
        %v3838 = vpack.c.b16 %v3822, %v3822
        %v3839 = vpack.c.b16 %v3823, %v3823
        %v3840 = vpack.c.b16 %v3824, %v3824
        %v3841 = vpack.c.b16 %v3825, %v3825
        %v3842 = vpack.c.b16 %v3826, %v3826
        %v3843 = vpack.c.b16 %v3827, %v3827
        %v3844 = vpack.c.b16 %v3828, %v3828
        %v3845 = vpack.c.b16 %v3829, %v3829
        %v3846 = vpack.c.b16 %v3830, %v3830
        %v3847 = vpack.c.b16 %v3831, %v3831
        %v3848 = vpack.c.b16 %v3832, %v3832
        %v3849 = vpack.c.b16 %v3833, %v3833
        %v3850 = vpack.c.b16 %v3834, %v3834
        %v3851 = vpack.c.b16 %v3835, %v3835
        %3868 = vst [vmem:[%s563] sm:$0xf] %v3836
        %3869 = vst [vmem:[%s563 + $0x4] sm:$0xf] %v3837
        %3870 = vst [vmem:[%s563 + $0x8] sm:$0xf] %v3838
        %3871 = vst [vmem:[%s563 + $0xc] sm:$0xf] %v3839
        %3872 = vst [vmem:[%s563 + $0x10] sm:$0xf] %v3840
        %3873 = vst [vmem:[%s563 + $0x14] sm:$0xf] %v3841
        %3874 = vst [vmem:[%s563 + $0x18] sm:$0xf] %v3842
        %3875 = vst [vmem:[%s563 + $0x1c] sm:$0xf] %v3843
        %3876 = vst [vmem:[%s563 + $0x20] sm:$0xf] %v3844
        %3877 = vst [vmem:[%s563 + $0x24] sm:$0xf] %v3845
        %3878 = vst [vmem:[%s563 + $0x28] sm:$0xf] %v3846
        %3879 = vst [vmem:[%s563 + $0x2c] sm:$0xf] %v3847
        %3880 = vst [vmem:[%s563 + $0x30] sm:$0xf] %v3848
        %3881 = vst [vmem:[%s563 + $0x34] sm:$0xf] %v3849
        %3882 = vst [vmem:[%s563 + $0x38] sm:$0xf] %v3850
        %3883 = vst [vmem:[%s563 + $0x3c] sm:$0xf] %v3851
        %s3884 = sand.u32 %s375, 1
        %s3885 = scalar_lea.sflag [#allocation4], %s3884
        %s3886 = sand.u32 %s375, 1
        %s3887 = smul.addr %s3886, 64
        %s3888 = scalar_lea.vmem [#allocation5], %s3887
        // Predicated region
        $region85: #{tpu_custom_call.1} parent=79 // pred_check
          %p3889 = pneg %p385
        $region86: #{tpu_custom_call.1} parent=79 // pred_check_branch
          %3891 = sbr.rel (%p3889) target = $region88
        $region87: #{tpu_custom_call.1} parent=79 // pred_region
          %s3892 = smul.u32 16, %s32
          %s3894 = ssub.s32 1024, 1024
          %3895 = vsyncadd %s3885, %s3894
          %s3896 = smul.addr %s3892, 64
          %s3897 = scalar_lea.hbm %s15, %s3896
          %s3898 = sshll.u32 %s3888, 4
          %s3899 = int_to_ptr.vmem [resolvable:$true] %s3898
          %3904 = dma.vmem_to_hbm [thread:$0]  %s3899, 1024, %s3897, %s3885, 64, 64, 4
        $region88: #{tpu_custom_call.1} parent=79 // pred_fallthru
          _
      $region80: #{tpu_custom_call.1} parent=5 // pred_fallthru
        _
      %p3905 = scmp.le.s32.totalorder 2, %s27
      // Predicated region
      $region89: #{tpu_custom_call.1} parent=5 // pred_check
        %p3906 = pneg %p3905
      $region90: #{tpu_custom_call.1} parent=5 // pred_check_branch
        %3908 = sbr.rel (%p3906) target = $region92
      $region91: #{tpu_custom_call.1} parent=5 // pred_region
        %s3909 = ssub.s32 %s27, 2
        // Predicated region
        $region93: #{tpu_custom_call.1} parent=91 // pred_check
          %p3910 = pneg %p391
        $region94: #{tpu_custom_call.1} parent=91 // pred_check_branch
          %3912 = sbr.rel (%p3910) target = $region96
        $region95: #{tpu_custom_call.1} parent=91 // pred_region
          %s3913 = sand.u32 %s376, 1
          %s3914 = scalar_lea.sflag [#allocation4], %s3913
          %s3915 = sand.u32 %s376, 1
          %s3916 = smul.addr %s3915, 64
          %s3917 = scalar_lea.vmem [#allocation5], %s3916
          %3918 = dma.done %s3914, 1024
        $region96: #{tpu_custom_call.1} parent=91 // pred_fallthru
          _
      $region92: #{tpu_custom_call.1} parent=5 // pred_fallthru
        _
    $region6: #{tpu_custom_call.1} parent=1 // loop_footer
      %s31 = sadd.s32 1, %s27
    $region7: #{tpu_custom_call.1} parent=1 // loop_footer_branch
      %26 = sbr.rel target = $region3
    $region8: #{tpu_custom_call.1} parent=1 // loop_exit
      _
    %3919 = vsyncpa [#allocation3], 1
    %s3920 = scalar_lea.sflag [#allocation3], 1
    %3921 = vsyncpa %s3920, 1
    %3922 = vsyncpa [#allocation4], 1
    %s3923 = scalar_lea.sflag [#allocation4], 1
    %3924 = vsyncpa %s3923, 1

</llo_original>
